<compile_context>
chip_gen: v6e
topology: v6e:2x2x1
jax: 0.10.0
libtpu: 0.0.40
codegen_flags: <defaults>
</compile_context>

<pallas_src>
import jax
import jax.numpy as jnp
from jax.experimental import pallas as pl
from jax.experimental.pallas import tpu as pltpu


def _resblock_kernel(x_ref, w20_ref, b20_ref, w21_ref, b21_ref, alpha_ref,
                     o_ref, xp_ref, rp_ref):
    # x_ref    : (1, H, W, C)    f32  whole input image (resident across row tiles)
    # w2*_ref  : (3, 3*C, C)     bf16 im2col weights, w[ky][kx*C + ci, co]
    # b2*_ref  : (1, C)          f32
    # alpha_ref: (1, 1)          f32  (SMEM) shared PReLU slope
    # o_ref    : (1, TH, W, C)   f32  output row tile
    # xp_ref   : (H+4, W+2, C)   bf16 zero-padded input   (2-row / 1-col halo)
    # rp_ref   : (TH+2, W+2, C)  bf16 zero-padded rs1 tile (1-row / 1-col halo)
    _, H, W, C = x_ref.shape
    TH = o_ref.shape[1]
    t = pl.program_id(1)
    y0 = pl.multiple_of(t * TH, TH)            # first output row of this tile

    # Once per image: build the zero-padded bf16 input in VMEM (replaces the
    # old wrapper-side jnp.pad).  The row-tile axis is "arbitrary", so this
    # scratch stays resident for every t of the current batch element.
    @pl.when(t == 0)
    def _():
        xp_ref[...] = jnp.zeros_like(xp_ref)
        rp_ref[...] = jnp.zeros_like(rp_ref)   # border columns stay zero forever
        xp_ref[2:H + 2, 1:W + 1, :] = x_ref[0].astype(xp_ref.dtype)

    def conv3x3(read_rows, w_ref, m):
        # im2col conv: for each kernel row ky, concatenate the 3 kx-shifted
        # patches along channels -> one (m, 3C) @ (3C, C) bf16 MXU matmul,
        # accumulated in f32.
        acc = jnp.zeros((m, C), jnp.float32)
        for ky in range(3):
            rows = read_rows(ky)                                    # (m//W, W+2, C) bf16
            slab = jnp.concatenate(
                [rows[:, kx:kx + W, :].reshape(m, C) for kx in range(3)],
                axis=-1)                                            # (m, 3C) bf16
            acc = acc + jnp.dot(slab, w_ref[ky],
                                preferred_element_type=jnp.float32)
        return acc

    # ---- conv20 + bias + PReLU over TH+2 rows (tile + 1-row rs1 halo) ----
    M1 = (TH + 2) * W
    acc1 = conv3x3(lambda ky: xp_ref[pl.ds(y0 + ky, TH + 2), :, :], w20_ref, M1)
    acc1 = acc1 + b20_ref[...]                                      # bias once, hoisted
    alpha = alpha_ref[0, 0]
    acc1 = jnp.where(acc1 > 0, acc1, alpha * acc1)                  # PReLU (shared slope)

    # rs1 rows that fall outside the image are conv21's zero padding -> mask.
    rs1 = acc1.reshape(TH + 2, W, C)
    rid = jax.lax.broadcasted_iota(jnp.int32, (TH + 2, W, C), 0) + (y0 - 1)
    rs1 = jnp.where((rid >= 0) & (rid < H), rs1, 0.0)
    rp_ref[:, 1:W + 1, :] = rs1.astype(rp_ref.dtype)                # stays in VMEM

    # ---- conv21 + bias + residual add over the TH output rows ----
    M2 = TH * W
    acc2 = conv3x3(lambda ky: rp_ref[ky:ky + TH, :, :], w21_ref, M2)
    acc2 = acc2 + b21_ref[...]
    acc2 = acc2 + x_ref[0, pl.ds(y0, TH), :, :].reshape(M2, C)      # residual in f32
    o_ref[...] = acc2.reshape(1, TH, W, C).astype(o_ref.dtype)


def _pick_row_tile(H, W):
    """Largest divisor of H giving a matmul M (= TH*W) of roughly 128 rows."""
    target = max(1, 128 // max(W, 1))
    for th in range(min(target, H), 0, -1):
        if H % th == 0:
            return th
    return 1


def resblock_forward(x_nchw, w20, b20, w21, b21, alpha):
    """Pallas Resblock forward.  x_nchw: (B, C, H, W) float32 (C == 64)."""
    x = jnp.transpose(x_nchw, (0, 2, 3, 1))                  # NCHW -> NHWC
    B, H, W, C = x.shape
    TH = _pick_row_tile(H, W)
    assert H % TH == 0

    # PyTorch conv weights (Cout, Cin, kh, kw) -> (ky, kx*Cin, Cout) bf16, i.e.
    # w_t[ky, kx*C + ci, co] == w[co, ci, ky, kx]  (matches the im2col slab).
    def prep_w(w):
        return jnp.transpose(w, (2, 3, 1, 0)).reshape(3, 3 * C, C).astype(jnp.bfloat16)

    w20_t, w21_t = prep_w(w20), prep_w(w21)
    b20_r = b20.reshape(1, C).astype(jnp.float32)
    b21_r = b21.reshape(1, C).astype(jnp.float32)
    alpha_r = jnp.asarray(alpha, jnp.float32).reshape(1, 1)

    out = pl.pallas_call(
        _resblock_kernel,
        out_shape=jax.ShapeDtypeStruct((B, H, W, C), x.dtype),
        grid=(B, H // TH),
        in_specs=[
            pl.BlockSpec((1, H, W, C), lambda b, t: (b, 0, 0, 0)),   # x (resident over t)
            pl.BlockSpec((3, 3 * C, C), lambda b, t: (0, 0, 0)),     # conv20 weights
            pl.BlockSpec((1, C), lambda b, t: (0, 0)),               # conv20 bias
            pl.BlockSpec((3, 3 * C, C), lambda b, t: (0, 0, 0)),     # conv21 weights
            pl.BlockSpec((1, C), lambda b, t: (0, 0)),               # conv21 bias
            pl.BlockSpec(memory_space=pltpu.MemorySpace.SMEM),       # PReLU alpha
        ],
        out_specs=pl.BlockSpec((1, TH, W, C), lambda b, t: (b, t, 0, 0)),
        scratch_shapes=[
            pltpu.VMEM((H + 4, W + 2, C), jnp.bfloat16),             # zero-padded x
            pltpu.VMEM((TH + 2, W + 2, C), jnp.bfloat16),            # zero-padded rs1 tile
        ],
        compiler_params=pltpu.CompilerParams(
            dimension_semantics=("parallel", "arbitrary"),
            vmem_limit_bytes=32 * 1024 * 1024,
        ),
    )(x, w20_t, b20_r, w21_t, b21_r, alpha_r)
    return jnp.transpose(out, (0, 3, 1, 2))                  # NHWC -> NCHW


def _reference(x, w20, b20, w21, b21, alpha, *, bf16_inputs=False):
    """Pure-XLA NCHW reference mirroring the PyTorch module.

    With bf16_inputs=True the conv operands are pre-rounded to bfloat16 — the
    same precision the Pallas kernel feeds the MXU (accumulation stays f32).
    """
    def prep(a):
        return a.astype(jnp.bfloat16).astype(jnp.float32) if bf16_inputs else a

    def conv(v, w, b):
        y = jax.lax.conv_general_dilated(
            prep(v), prep(w), window_strides=(1, 1), padding=((1, 1), (1, 1)),
            dimension_numbers=("NCHW", "OIHW", "NCHW"))
        return y + b.reshape(1, -1, 1, 1)

    r = conv(x, w20, b20)
    r = jnp.where(r > 0, r, alpha * r)
    r = conv(r, w21, b21)
    return x + r


if __name__ == "__main__":
    C = 64                     # channel count is fixed to 64 by the module
    B, H, W = 2, 16, 16

    key = jax.random.PRNGKey(0)
    k1, k2, k3, k4, kx = jax.random.split(key, 5)

    # Deterministic synthetic parameters with PyTorch shapes.
    w20 = jax.random.normal(k1, (C, C, 3, 3), jnp.float32) * 0.05
    b20 = jax.random.normal(k2, (C,), jnp.float32) * 0.05
    w21 = jax.random.normal(k3, (C, C, 3, 3), jnp.float32) * 0.05
    b21 = jax.random.normal(k4, (C,), jnp.float32) * 0.05
    alpha = jnp.float32(0.2)   # nn.PReLU(num_parameters=1, init=0.2)

    x_nchw = jax.random.normal(kx, (B, C, H, W), jnp.float32)

    out = resblock_forward(x_nchw, w20, b20, w21, b21, alpha)
    out = jax.block_until_ready(out)
    assert out.shape == (B, C, H, W)

    # Tight check vs. a reference with bf16-rounded conv operands (what the
    # kernel feeds the MXU), loose check vs. the pure-f32 module semantics.
    ref_bf16 = _reference(x_nchw, w20, b20, w21, b21, alpha, bf16_inputs=True)
    ref_f32 = _reference(x_nchw, w20, b20, w21, b21, alpha, bf16_inputs=False)
    assert jnp.allclose(out, ref_bf16, atol=5e-3, rtol=5e-3), "mismatch vs bf16-input reference"
    assert jnp.allclose(out, ref_f32, atol=3e-2, rtol=3e-2), "mismatch vs f32 reference"

    print("KERNEL_OK")
</pallas_src>

<mosaic_0001>
module attributes {stable_mosaic.version = 11 : i64} {
  func.func @_resblock_kernel(%arg0: i32, %arg1: i32, %arg2: memref<1x16x16x64xf32, #tpu.memory_space<vmem>>, %arg3: memref<3x192x64xbf16, #tpu.memory_space<vmem>>, %arg4: memref<1x64xf32, #tpu.memory_space<vmem>>, %arg5: memref<3x192x64xbf16, #tpu.memory_space<vmem>>, %arg6: memref<1x64xf32, #tpu.memory_space<vmem>>, %arg7: memref<1x1xf32, #tpu.memory_space<smem>>, %arg8: memref<1x8x16x64xf32, #tpu.memory_space<vmem>>, %arg9: memref<20x18x64xbf16, #tpu.memory_space<vmem>>, %arg10: memref<10x18x64xbf16, #tpu.memory_space<vmem>>) attributes {dimension_semantics = [#tpu.dimension_semantics<parallel>, #tpu.dimension_semantics<arbitrary>], iteration_bounds = array<i64: 2, 2>, scalar_prefetch = 0 : i64, scratch_operands = 2 : i64, tpu.core_type = #tpu.core_type<tc>, window_params = [{transform_indices = @transform_0, window_bounds = array<i64: 1, 16, 16, 64>}, {pipeline_mode = #tpu.pipeline_mode<synchronous>, transform_indices = @transform_1, window_bounds = array<i64: 3, 192, 64>}, {pipeline_mode = #tpu.pipeline_mode<synchronous>, transform_indices = @transform_2, window_bounds = array<i64: 1, 64>}, {pipeline_mode = #tpu.pipeline_mode<synchronous>, transform_indices = @transform_3, window_bounds = array<i64: 3, 192, 64>}, {pipeline_mode = #tpu.pipeline_mode<synchronous>, transform_indices = @transform_4, window_bounds = array<i64: 1, 64>}, {transform_indices = @transform_5, window_bounds = array<i64: 1, 1>}, {transform_indices = @transform_6, window_bounds = array<i64: 1, 8, 16, 64>}]} {
    %c8_i32 = arith.constant 8 : i32
    %0 = arith.muli %arg1, %c8_i32 : i32
    %1 = tpu.assume_multiple %0, 8 : i32
    %c0_i32 = arith.constant 0 : i32
    %2 = arith.cmpi eq, %arg1, %c0_i32 : i32
    %3 = arith.extui %2 : i1 to i32
    %c0_i32_0 = arith.constant 0 : i32
    %4 = arith.cmpi ne, %3, %c0_i32_0 : i32
    scf.if %4 {
      %cst_59 = arith.constant 0.000000e+00 : bf16
      %118 = vector.broadcast %cst_59 : bf16 to vector<20x18x64xbf16>
      %c0_60 = arith.constant 0 : index
      %c0_61 = arith.constant 0 : index
      %c0_62 = arith.constant 0 : index
      %119 = vector.load %arg9[%c0_60, %c0_61, %c0_62] : memref<20x18x64xbf16, #tpu.memory_space<vmem>>, vector<20x18x64xbf16>
      tpu.vector_store %arg9[%c0_60, %c0_61, %c0_62], %118 {strides = array<i32>} : memref<20x18x64xbf16, #tpu.memory_space<vmem>>, vector<20x18x64xbf16>,
      %cst_63 = arith.constant 0.000000e+00 : bf16
      %120 = vector.broadcast %cst_63 : bf16 to vector<10x18x64xbf16>
      %c0_64 = arith.constant 0 : index
      %c0_65 = arith.constant 0 : index
      %c0_66 = arith.constant 0 : index
      %121 = vector.load %arg10[%c0_64, %c0_65, %c0_66] : memref<10x18x64xbf16, #tpu.memory_space<vmem>>, vector<10x18x64xbf16>
      tpu.vector_store %arg10[%c0_64, %c0_65, %c0_66], %120 {strides = array<i32>} : memref<10x18x64xbf16, #tpu.memory_space<vmem>>, vector<10x18x64xbf16>,
      %c0_67 = arith.constant 0 : index
      %c0_68 = arith.constant 0 : index
      %c0_69 = arith.constant 0 : index
      %c0_70 = arith.constant 0 : index
      %122 = vector.load %arg2[%c0_67, %c0_68, %c0_69, %c0_70] : memref<1x16x16x64xf32, #tpu.memory_space<vmem>>, vector<1x16x16x64xf32>
      %123 = vector.shape_cast %122 : vector<1x16x16x64xf32> to vector<16x16x64xf32>
      %124 = arith.truncf %123 : vector<16x16x64xf32> to vector<16x16x64xbf16>
      %c2_71 = arith.constant 2 : index
      %c1_72 = arith.constant 1 : index
      %c0_73 = arith.constant 0 : index
      %125 = vector.load %arg9[%c2_71, %c1_72, %c0_73] : memref<20x18x64xbf16, #tpu.memory_space<vmem>>, vector<16x16x64xbf16>
      tpu.vector_store %arg9[%c2_71, %c1_72, %c0_73], %124 {strides = array<i32>} : memref<20x18x64xbf16, #tpu.memory_space<vmem>>, vector<16x16x64xbf16>,
    } else {
    }
    %cst = arith.constant 0.000000e+00 : f32
    %5 = vector.broadcast %cst : f32 to vector<160x64xf32>
    %c0_i32_1 = arith.constant 0 : i32
    %6 = arith.addi %1, %c0_i32_1 : i32
    %7 = arith.index_cast %6 : i32 to index
    %c0 = arith.constant 0 : index
    %c0_2 = arith.constant 0 : index
    %8 = vector.load %arg9[%7, %c0, %c0_2] : memref<20x18x64xbf16, #tpu.memory_space<vmem>>, vector<10x18x64xbf16>
    %9 = vector.extract_strided_slice %8 {offsets = [0, 0, 0], sizes = [10, 16, 64], strides = [1, 1, 1]} : vector<10x18x64xbf16> to vector<10x16x64xbf16>
    %10 = vector.shape_cast %9 : vector<10x16x64xbf16> to vector<160x64xbf16>
    %11 = vector.extract_strided_slice %8 {offsets = [0, 1, 0], sizes = [10, 16, 64], strides = [1, 1, 1]} : vector<10x18x64xbf16> to vector<10x16x64xbf16>
    %12 = vector.shape_cast %11 : vector<10x16x64xbf16> to vector<160x64xbf16>
    %13 = vector.extract_strided_slice %8 {offsets = [0, 2, 0], sizes = [10, 16, 64], strides = [1, 1, 1]} : vector<10x18x64xbf16> to vector<10x16x64xbf16>
    %14 = vector.shape_cast %13 : vector<10x16x64xbf16> to vector<160x64xbf16>
    %15 = tpu.concatenate %10, %12, %14 in 1 : vector<160x64xbf16>, vector<160x64xbf16>, vector<160x64xbf16> -> vector<160x192xbf16>
    %c0_3 = arith.constant 0 : index
    %c0_4 = arith.constant 0 : index
    %c0_5 = arith.constant 0 : index
    %16 = vector.load %arg3[%c0_3, %c0_4, %c0_5] : memref<3x192x64xbf16, #tpu.memory_space<vmem>>, vector<1x192x64xbf16>
    %17 = vector.shape_cast %16 : vector<1x192x64xbf16> to vector<192x64xbf16>
    %cst_6 = arith.constant dense<0.000000e+00> : vector<160x64xf32>
    %18 = tpu.matmul %15, %17, %cst_6 {dimension_numbers = #tpu.dot_dimension_numbers<[1], [0], [0], [1], [0, 0, 1, 1], [], []>} : vector<160x192xbf16>, vector<192x64xbf16>, vector<160x64xf32> -> vector<160x64xf32>
    %19 = arith.addf %5, %18 : vector<160x64xf32>
    %c1_i32 = arith.constant 1 : i32
    %20 = arith.addi %1, %c1_i32 : i32
    %21 = arith.index_cast %20 : i32 to index
    %c0_7 = arith.constant 0 : index
    %c0_8 = arith.constant 0 : index
    %22 = vector.load %arg9[%21, %c0_7, %c0_8] : memref<20x18x64xbf16, #tpu.memory_space<vmem>>, vector<10x18x64xbf16>
    %23 = vector.extract_strided_slice %22 {offsets = [0, 0, 0], sizes = [10, 16, 64], strides = [1, 1, 1]} : vector<10x18x64xbf16> to vector<10x16x64xbf16>
    %24 = vector.shape_cast %23 : vector<10x16x64xbf16> to vector<160x64xbf16>
    %25 = vector.extract_strided_slice %22 {offsets = [0, 1, 0], sizes = [10, 16, 64], strides = [1, 1, 1]} : vector<10x18x64xbf16> to vector<10x16x64xbf16>
    %26 = vector.shape_cast %25 : vector<10x16x64xbf16> to vector<160x64xbf16>
    %27 = vector.extract_strided_slice %22 {offsets = [0, 2, 0], sizes = [10, 16, 64], strides = [1, 1, 1]} : vector<10x18x64xbf16> to vector<10x16x64xbf16>
    %28 = vector.shape_cast %27 : vector<10x16x64xbf16> to vector<160x64xbf16>
    %29 = tpu.concatenate %24, %26, %28 in 1 : vector<160x64xbf16>, vector<160x64xbf16>, vector<160x64xbf16> -> vector<160x192xbf16>
    %c1 = arith.constant 1 : index
    %c0_9 = arith.constant 0 : index
    %c0_10 = arith.constant 0 : index
    %30 = vector.load %arg3[%c1, %c0_9, %c0_10] : memref<3x192x64xbf16, #tpu.memory_space<vmem>>, vector<1x192x64xbf16>
    %31 = vector.shape_cast %30 : vector<1x192x64xbf16> to vector<192x64xbf16>
    %cst_11 = arith.constant dense<0.000000e+00> : vector<160x64xf32>
    %32 = tpu.matmul %29, %31, %cst_11 {dimension_numbers = #tpu.dot_dimension_numbers<[1], [0], [0], [1], [0, 0, 1, 1], [], []>} : vector<160x192xbf16>, vector<192x64xbf16>, vector<160x64xf32> -> vector<160x64xf32>
    %33 = arith.addf %19, %32 : vector<160x64xf32>
    %c2_i32 = arith.constant 2 : i32
    %34 = arith.addi %1, %c2_i32 : i32
    %35 = arith.index_cast %34 : i32 to index
    %c0_12 = arith.constant 0 : index
    %c0_13 = arith.constant 0 : index
    %36 = vector.load %arg9[%35, %c0_12, %c0_13] : memref<20x18x64xbf16, #tpu.memory_space<vmem>>, vector<10x18x64xbf16>
    %37 = vector.extract_strided_slice %36 {offsets = [0, 0, 0], sizes = [10, 16, 64], strides = [1, 1, 1]} : vector<10x18x64xbf16> to vector<10x16x64xbf16>
    %38 = vector.shape_cast %37 : vector<10x16x64xbf16> to vector<160x64xbf16>
    %39 = vector.extract_strided_slice %36 {offsets = [0, 1, 0], sizes = [10, 16, 64], strides = [1, 1, 1]} : vector<10x18x64xbf16> to vector<10x16x64xbf16>
    %40 = vector.shape_cast %39 : vector<10x16x64xbf16> to vector<160x64xbf16>
    %41 = vector.extract_strided_slice %36 {offsets = [0, 2, 0], sizes = [10, 16, 64], strides = [1, 1, 1]} : vector<10x18x64xbf16> to vector<10x16x64xbf16>
    %42 = vector.shape_cast %41 : vector<10x16x64xbf16> to vector<160x64xbf16>
    %43 = tpu.concatenate %38, %40, %42 in 1 : vector<160x64xbf16>, vector<160x64xbf16>, vector<160x64xbf16> -> vector<160x192xbf16>
    %c2 = arith.constant 2 : index
    %c0_14 = arith.constant 0 : index
    %c0_15 = arith.constant 0 : index
    %44 = vector.load %arg3[%c2, %c0_14, %c0_15] : memref<3x192x64xbf16, #tpu.memory_space<vmem>>, vector<1x192x64xbf16>
    %45 = vector.shape_cast %44 : vector<1x192x64xbf16> to vector<192x64xbf16>
    %cst_16 = arith.constant dense<0.000000e+00> : vector<160x64xf32>
    %46 = tpu.matmul %43, %45, %cst_16 {dimension_numbers = #tpu.dot_dimension_numbers<[1], [0], [0], [1], [0, 0, 1, 1], [], []>} : vector<160x192xbf16>, vector<192x64xbf16>, vector<160x64xf32> -> vector<160x64xf32>
    %47 = arith.addf %33, %46 : vector<160x64xf32>
    %c0_17 = arith.constant 0 : index
    %c0_18 = arith.constant 0 : index
    %48 = vector.load %arg4[%c0_17, %c0_18] : memref<1x64xf32, #tpu.memory_space<vmem>>, vector<1x64xf32>
    %49 = vector.broadcast %48 : vector<1x64xf32> to vector<160x64xf32>
    %50 = arith.addf %47, %49 : vector<160x64xf32>
    %c0_19 = arith.constant 0 : index
    %c0_20 = arith.constant 0 : index
    %51 = memref.load %arg7[%c0_19, %c0_20] : memref<1x1xf32, #tpu.memory_space<smem>>
    %cst_21 = arith.constant 0.000000e+00 : f32
    %52 = vector.broadcast %cst_21 : f32 to vector<160x64xf32>
    %53 = arith.cmpf ogt, %50, %52 : vector<160x64xf32>
    %54 = vector.broadcast %51 : f32 to vector<160x64xf32>
    %55 = arith.mulf %54, %50 : vector<160x64xf32>
    %56 = arith.select %53, %50, %55 : vector<160x64xi1>, vector<160x64xf32>
    %57 = vector.shape_cast %56 : vector<160x64xf32> to vector<10x16x64xf32>
    %58 = tpu.iota {dimensions = array<i32: 0>} : vector<10x16x64xi32>
    %c1_i32_22 = arith.constant 1 : i32
    %59 = arith.subi %1, %c1_i32_22 : i32
    %60 = vector.broadcast %59 : i32 to vector<10x16x64xi32>
    %61 = arith.addi %58, %60 : vector<10x16x64xi32>
    %c0_i32_23 = arith.constant 0 : i32
    %62 = vector.broadcast %c0_i32_23 : i32 to vector<10x16x64xi32>
    %63 = arith.cmpi sge, %61, %62 : vector<10x16x64xi32>
    %c16_i32 = arith.constant 16 : i32
    %64 = vector.broadcast %c16_i32 : i32 to vector<10x16x64xi32>
    %65 = arith.cmpi slt, %61, %64 : vector<10x16x64xi32>
    %66 = arith.andi %63, %65 : vector<10x16x64xi1>
    %cst_24 = arith.constant 0.000000e+00 : f32
    %67 = vector.broadcast %cst_24 : f32 to vector<10x16x64xf32>
    %68 = arith.select %66, %57, %67 : vector<10x16x64xi1>, vector<10x16x64xf32>
    %69 = arith.truncf %68 : vector<10x16x64xf32> to vector<10x16x64xbf16>
    %c0_25 = arith.constant 0 : index
    %c1_26 = arith.constant 1 : index
    %c0_27 = arith.constant 0 : index
    %70 = vector.load %arg10[%c0_25, %c1_26, %c0_27] : memref<10x18x64xbf16, #tpu.memory_space<vmem>>, vector<10x16x64xbf16>
    tpu.vector_store %arg10[%c0_25, %c1_26, %c0_27], %69 {strides = array<i32>} : memref<10x18x64xbf16, #tpu.memory_space<vmem>>, vector<10x16x64xbf16>,
    %cst_28 = arith.constant 0.000000e+00 : f32
    %71 = vector.broadcast %cst_28 : f32 to vector<128x64xf32>
    %c0_29 = arith.constant 0 : index
    %c0_30 = arith.constant 0 : index
    %c0_31 = arith.constant 0 : index
    %72 = vector.load %arg10[%c0_29, %c0_30, %c0_31] : memref<10x18x64xbf16, #tpu.memory_space<vmem>>, vector<8x18x64xbf16>
    %73 = vector.extract_strided_slice %72 {offsets = [0, 0, 0], sizes = [8, 16, 64], strides = [1, 1, 1]} : vector<8x18x64xbf16> to vector<8x16x64xbf16>
    %74 = vector.shape_cast %73 : vector<8x16x64xbf16> to vector<128x64xbf16>
    %75 = vector.extract_strided_slice %72 {offsets = [0, 1, 0], sizes = [8, 16, 64], strides = [1, 1, 1]} : vector<8x18x64xbf16> to vector<8x16x64xbf16>
    %76 = vector.shape_cast %75 : vector<8x16x64xbf16> to vector<128x64xbf16>
    %77 = vector.extract_strided_slice %72 {offsets = [0, 2, 0], sizes = [8, 16, 64], strides = [1, 1, 1]} : vector<8x18x64xbf16> to vector<8x16x64xbf16>
    %78 = vector.shape_cast %77 : vector<8x16x64xbf16> to vector<128x64xbf16>
    %79 = tpu.concatenate %74, %76, %78 in 1 : vector<128x64xbf16>, vector<128x64xbf16>, vector<128x64xbf16> -> vector<128x192xbf16>
    %c0_32 = arith.constant 0 : index
    %c0_33 = arith.constant 0 : index
    %c0_34 = arith.constant 0 : index
    %80 = vector.load %arg5[%c0_32, %c0_33, %c0_34] : memref<3x192x64xbf16, #tpu.memory_space<vmem>>, vector<1x192x64xbf16>
    %81 = vector.shape_cast %80 : vector<1x192x64xbf16> to vector<192x64xbf16>
    %cst_35 = arith.constant dense<0.000000e+00> : vector<128x64xf32>
    %82 = tpu.matmul %79, %81, %cst_35 {dimension_numbers = #tpu.dot_dimension_numbers<[1], [0], [0], [1], [0, 0, 1, 1], [], []>} : vector<128x192xbf16>, vector<192x64xbf16>, vector<128x64xf32> -> vector<128x64xf32>
    %83 = arith.addf %71, %82 : vector<128x64xf32>
    %c1_36 = arith.constant 1 : index
    %c0_37 = arith.constant 0 : index
    %c0_38 = arith.constant 0 : index
    %84 = vector.load %arg10[%c1_36, %c0_37, %c0_38] : memref<10x18x64xbf16, #tpu.memory_space<vmem>>, vector<8x18x64xbf16>
    %85 = vector.extract_strided_slice %84 {offsets = [0, 0, 0], sizes = [8, 16, 64], strides = [1, 1, 1]} : vector<8x18x64xbf16> to vector<8x16x64xbf16>
    %86 = vector.shape_cast %85 : vector<8x16x64xbf16> to vector<128x64xbf16>
    %87 = vector.extract_strided_slice %84 {offsets = [0, 1, 0], sizes = [8, 16, 64], strides = [1, 1, 1]} : vector<8x18x64xbf16> to vector<8x16x64xbf16>
    %88 = vector.shape_cast %87 : vector<8x16x64xbf16> to vector<128x64xbf16>
    %89 = vector.extract_strided_slice %84 {offsets = [0, 2, 0], sizes = [8, 16, 64], strides = [1, 1, 1]} : vector<8x18x64xbf16> to vector<8x16x64xbf16>
    %90 = vector.shape_cast %89 : vector<8x16x64xbf16> to vector<128x64xbf16>
    %91 = tpu.concatenate %86, %88, %90 in 1 : vector<128x64xbf16>, vector<128x64xbf16>, vector<128x64xbf16> -> vector<128x192xbf16>
    %c1_39 = arith.constant 1 : index
    %c0_40 = arith.constant 0 : index
    %c0_41 = arith.constant 0 : index
    %92 = vector.load %arg5[%c1_39, %c0_40, %c0_41] : memref<3x192x64xbf16, #tpu.memory_space<vmem>>, vector<1x192x64xbf16>
    %93 = vector.shape_cast %92 : vector<1x192x64xbf16> to vector<192x64xbf16>
    %cst_42 = arith.constant dense<0.000000e+00> : vector<128x64xf32>
    %94 = tpu.matmul %91, %93, %cst_42 {dimension_numbers = #tpu.dot_dimension_numbers<[1], [0], [0], [1], [0, 0, 1, 1], [], []>} : vector<128x192xbf16>, vector<192x64xbf16>, vector<128x64xf32> -> vector<128x64xf32>
    %95 = arith.addf %83, %94 : vector<128x64xf32>
    %c2_43 = arith.constant 2 : index
    %c0_44 = arith.constant 0 : index
    %c0_45 = arith.constant 0 : index
    %96 = vector.load %arg10[%c2_43, %c0_44, %c0_45] : memref<10x18x64xbf16, #tpu.memory_space<vmem>>, vector<8x18x64xbf16>
    %97 = vector.extract_strided_slice %96 {offsets = [0, 0, 0], sizes = [8, 16, 64], strides = [1, 1, 1]} : vector<8x18x64xbf16> to vector<8x16x64xbf16>
    %98 = vector.shape_cast %97 : vector<8x16x64xbf16> to vector<128x64xbf16>
    %99 = vector.extract_strided_slice %96 {offsets = [0, 1, 0], sizes = [8, 16, 64], strides = [1, 1, 1]} : vector<8x18x64xbf16> to vector<8x16x64xbf16>
    %100 = vector.shape_cast %99 : vector<8x16x64xbf16> to vector<128x64xbf16>
    %101 = vector.extract_strided_slice %96 {offsets = [0, 2, 0], sizes = [8, 16, 64], strides = [1, 1, 1]} : vector<8x18x64xbf16> to vector<8x16x64xbf16>
    %102 = vector.shape_cast %101 : vector<8x16x64xbf16> to vector<128x64xbf16>
    %103 = tpu.concatenate %98, %100, %102 in 1 : vector<128x64xbf16>, vector<128x64xbf16>, vector<128x64xbf16> -> vector<128x192xbf16>
    %c2_46 = arith.constant 2 : index
    %c0_47 = arith.constant 0 : index
    %c0_48 = arith.constant 0 : index
    %104 = vector.load %arg5[%c2_46, %c0_47, %c0_48] : memref<3x192x64xbf16, #tpu.memory_space<vmem>>, vector<1x192x64xbf16>
    %105 = vector.shape_cast %104 : vector<1x192x64xbf16> to vector<192x64xbf16>
    %cst_49 = arith.constant dense<0.000000e+00> : vector<128x64xf32>
    %106 = tpu.matmul %103, %105, %cst_49 {dimension_numbers = #tpu.dot_dimension_numbers<[1], [0], [0], [1], [0, 0, 1, 1], [], []>} : vector<128x192xbf16>, vector<192x64xbf16>, vector<128x64xf32> -> vector<128x64xf32>
    %107 = arith.addf %95, %106 : vector<128x64xf32>
    %c0_50 = arith.constant 0 : index
    %c0_51 = arith.constant 0 : index
    %108 = vector.load %arg6[%c0_50, %c0_51] : memref<1x64xf32, #tpu.memory_space<vmem>>, vector<1x64xf32>
    %109 = vector.broadcast %108 : vector<1x64xf32> to vector<128x64xf32>
    %110 = arith.addf %107, %109 : vector<128x64xf32>
    %c0_52 = arith.constant 0 : index
    %111 = arith.index_cast %1 : i32 to index
    %c0_53 = arith.constant 0 : index
    %c0_54 = arith.constant 0 : index
    %112 = vector.load %arg2[%c0_52, %111, %c0_53, %c0_54] : memref<1x16x16x64xf32, #tpu.memory_space<vmem>>, vector<1x8x16x64xf32>
    %113 = vector.shape_cast %112 : vector<1x8x16x64xf32> to vector<8x16x64xf32>
    %114 = vector.shape_cast %113 : vector<8x16x64xf32> to vector<128x64xf32>
    %115 = arith.addf %110, %114 : vector<128x64xf32>
    %116 = vector.shape_cast %115 : vector<128x64xf32> to vector<1x8x16x64xf32>
    %c0_55 = arith.constant 0 : index
    %c0_56 = arith.constant 0 : index
    %c0_57 = arith.constant 0 : index
    %c0_58 = arith.constant 0 : index
    %117 = vector.load %arg8[%c0_55, %c0_56, %c0_57, %c0_58] : memref<1x8x16x64xf32, #tpu.memory_space<vmem>>, vector<1x8x16x64xf32>
    tpu.vector_store %arg8[%c0_55, %c0_56, %c0_57, %c0_58], %116 {strides = array<i32>} : memref<1x8x16x64xf32, #tpu.memory_space<vmem>>, vector<1x8x16x64xf32>,
    return
  }
  func.func @transform_0(%arg0: i32, %arg1: i32) -> (i32, i32, i32, i32) {
    %c0_i32 = arith.constant 0 : i32
    %c0_i32_0 = arith.constant 0 : i32
    %c0_i32_1 = arith.constant 0 : i32
    %c0_i32_2 = arith.constant 0 : i32
    return %arg0, %c0_i32, %c0_i32_0, %c0_i32_1 : i32, i32, i32, i32
  }
  func.func @transform_1(%arg0: i32, %arg1: i32) -> (i32, i32, i32) {
    %c0_i32 = arith.constant 0 : i32
    %c0_i32_0 = arith.constant 0 : i32
    %c0_i32_1 = arith.constant 0 : i32
    %c0_i32_2 = arith.constant 0 : i32
    return %c0_i32, %c0_i32_0, %c0_i32_1 : i32, i32, i32
  }
  func.func @transform_2(%arg0: i32, %arg1: i32) -> (i32, i32) {
    %c0_i32 = arith.constant 0 : i32
    %c0_i32_0 = arith.constant 0 : i32
    %c0_i32_1 = arith.constant 0 : i32
    return %c0_i32, %c0_i32_0 : i32, i32
  }
  func.func @transform_3(%arg0: i32, %arg1: i32) -> (i32, i32, i32) {
    %c0_i32 = arith.constant 0 : i32
    %c0_i32_0 = arith.constant 0 : i32
    %c0_i32_1 = arith.constant 0 : i32
    %c0_i32_2 = arith.constant 0 : i32
    return %c0_i32, %c0_i32_0, %c0_i32_1 : i32, i32, i32
  }
  func.func @transform_4(%arg0: i32, %arg1: i32) -> (i32, i32) {
    %c0_i32 = arith.constant 0 : i32
    %c0_i32_0 = arith.constant 0 : i32
    %c0_i32_1 = arith.constant 0 : i32
    return %c0_i32, %c0_i32_0 : i32, i32
  }
  func.func @transform_5(%arg0: i32, %arg1: i32) -> (i32, i32) {
    %c0_i32 = arith.constant 0 : i32
    %c0_i32_0 = arith.constant 0 : i32
    %c0_i32_1 = arith.constant 0 : i32
    return %c0_i32, %c0_i32_0 : i32, i32
  }
  func.func @transform_6(%arg0: i32, %arg1: i32) -> (i32, i32, i32, i32) {
    %c0_i32 = arith.constant 0 : i32
    %c0_i32_0 = arith.constant 0 : i32
    %c0_i32_1 = arith.constant 0 : i32
    return %arg0, %arg1, %c0_i32, %c0_i32_0 : i32, i32, i32, i32
  }
}

</mosaic_0001>

<llo_original>
// kernel: tpu_custom_call.1
$region0: #{tpu_custom_call.1}
  #allocation0 [shape = 'u32[]', space=smem, size = 0x4, offset = 0x4, fixed_abs, tag = 'smem constant byte address 0x4 - core index']
  #allocation1 [shape = 'u32[144,128]{1,0:T(1,128)}', space=vmem, size = 0x12000, scoped, tag = 'internal scratch']
  #allocation2 [shape = 'bf16[20,18,64]{2,1,0:T(8,128)(2,1)}', space=vmem, size = 0x1e000, scoped, tag = 'scratch operand']
  #allocation3 [shape = 'bf16[10,18,64]{2,1,0:T(8,128)(2,1)}', space=vmem, size = 0xf000, scoped, tag = 'scratch operand']
  #allocation4 [shape = 'f32[1,1]{1,0:T(1,128)S(6)}', space=smem, size = 0x200, scoped, tag = 'scoped memory for tpu_custom_call.1']
  %s0 = inlined_call_operand.vmem [shape: f32[2,16,16,64], index: 0, kind: input, shape index: {}]
  %s1 = inlined_call_operand.vmem [shape: bf16[3,192,64], index: 1, kind: input, shape index: {}]
  %s2 = inlined_call_operand.vmem [shape: f32[1,64], index: 2, kind: input, shape index: {}]
  %s3 = inlined_call_operand.vmem [shape: bf16[3,192,64], index: 3, kind: input, shape index: {}]
  %s4 = inlined_call_operand.vmem [shape: f32[1,64], index: 4, kind: input, shape index: {}]
  %s5 = inlined_call_operand.<no memory space> [shape: f32[1,1], index: 5, kind: input, shape index: {}]
  %s6 = inlined_call_operand.hbm [shape: f32[2,16,16,64], index: 6, kind: output, shape index: {}]
  %s7 = sld [smem:[#allocation0]]
  $region61: #{tpu_custom_call.1} parent=0
    _
  %s9 = ssub.s32 1, %s7
  %s10 = scalar_select 0, %s9, %s7
  %11 = sst [smem:[#allocation4]] %s5
  $region1: #{tpu_custom_call.1} parent=0
    #allocation5 [shape = 'u8[131072]{0}', space=vmem, size = 0x20000, scoped, tag = 'output window, operand 0']
    #allocation6 [shape = 's32[2]{0}', space=sflag, size = 0x8, scoped, tag = 'scoped memory for tpu_custom_call.1']
    %12 = vsyncpa [#allocation6], 0
    %s13 = scalar_lea.sflag [#allocation6], 1
    %14 = vsyncpa %s13, 0
    loop: start=0, step=1, limit=6
    $region2: #{tpu_custom_call.1} parent=1 // loop_pre_header
      _
    $region3: #{tpu_custom_call.1} parent=1 // loop_header
      %s16 = sphi 0, %s20
      %p17 = scmp.ge.s32.totalorder %s16, 6
      %s23 = sphi 0, %s35
      %s24 = sphi 0, %s31
      %s25 = sphi 0, %s23
      %s26 = sphi 0, %s24
      %s27 = sphi 0, %s25
      %s28 = sphi 0, %s26
      %s38 = sphi 0, %s40
      %s41 = sphi 0, %s38
      %s42 = sphi 0, %s41
      %s58 = sphi 0, %s42
      %s62 = sphi 0, %s62
      %s64 = sphi 0, %s62
      %s65 = sphi 0, %s64
      %s79 = sphi 0, %s65
      %s83 = sphi 0, %s83
      %s85 = sphi 0, %s83
      %s86 = sphi 0, %s85
      %s100 = sphi 0, %s86
      %s104 = sphi 0, %s104
      %s106 = sphi 0, %s104
      %s107 = sphi 0, %s106
      %s121 = sphi 0, %s107
      %s125 = sphi 0, %s125
      %s127 = sphi 0, %s125
      %s128 = sphi 0, %s127
      %s142 = sphi 0, %s128
      %s146 = sphi 0, %s146
      %s148 = sphi 0, %s146
      %s149 = sphi 0, %s148
      %s163 = sphi 0, %s149
      %s171 = sphi 0, %s173
      %s174 = sphi 0, %s171
      %s175 = sphi 0, %s174
      %s191 = sphi 0, %s175
    $region4: #{tpu_custom_call.1} parent=1 // loop_header_branch
      %19 = sbr.rel (%p17) target = $region8
    $region5: #{tpu_custom_call.1} parent=1 // loop_body
      %s21 = ssub.s32 %s16, 1
      %s22 = ssub.s32 %s16, 2
      %s29 = sadd.s32 1, %s24
      %p30 = scmp.ge.s32.totalorder %s29, 2
      %s31 = scalar_select %p30, 0, %s29
      %s32 = sadd.s32 1, %s23
      %s33 = scalar_select %p30, %s32, %s23
      %p34 = scmp.ge.s32.totalorder %s33, 2
      %s35 = scalar_select %p34, 0, %s33
      %s36 = ssub.s32 %s23, %s35
      %p37 = scmp.eq.s32.totalorder %s36, 0
      %s39 = sadd.s32 %s38, 1
      %s40 = scalar_select %p37, %s38, %s39
      %p43 = pneg %p37
      %p44 = scmp.eq.s32.totalorder %s16, 3
      %p45 = por %p43, %p44
      %p46 = scmp.ne.s32.totalorder %s38, %s41
      %p47 = scmp.eq.s32.totalorder %s16, 0
      %p48 = por %p46, %p47
      %p49 = scmp.ne.s32.totalorder %s38, %s41
      %p50 = scmp.eq.s32.totalorder %s21, 3
      %p51 = por %p49, %p50
      %p52 = scmp.ne.s32.totalorder %s41, %s42
      %p53 = scmp.eq.s32.totalorder %s21, 0
      %p54 = por %p52, %p53
      %p55 = scmp.ne.s32.totalorder %s41, %s42
      %p56 = scmp.eq.s32.totalorder %s22, 3
      %p57 = por %p55, %p56
      %p59 = scmp.ne.s32.totalorder %s42, %s58
      %p60 = scmp.eq.s32.totalorder %s22, 0
      %p61 = por %p59, %p60
      %s63 = sadd.s32 %s62, 1
      %p66 = scmp.eq.s32.totalorder %s16, 3
      %p67 = scmp.ne.s32.totalorder %s62, %s64
      %p68 = scmp.eq.s32.totalorder %s16, 0
      %p69 = por %p67, %p68
      %p70 = scmp.ne.s32.totalorder %s62, %s64
      %p71 = scmp.eq.s32.totalorder %s21, 3
      %p72 = por %p70, %p71
      %p73 = scmp.ne.s32.totalorder %s64, %s65
      %p74 = scmp.eq.s32.totalorder %s21, 0
      %p75 = por %p73, %p74
      %p76 = scmp.ne.s32.totalorder %s64, %s65
      %p77 = scmp.eq.s32.totalorder %s22, 3
      %p78 = por %p76, %p77
      %p80 = scmp.ne.s32.totalorder %s65, %s79
      %p81 = scmp.eq.s32.totalorder %s22, 0
      %p82 = por %p80, %p81
      %s84 = sadd.s32 %s83, 1
      %p87 = scmp.eq.s32.totalorder %s16, 3
      %p88 = scmp.ne.s32.totalorder %s83, %s85
      %p89 = scmp.eq.s32.totalorder %s16, 0
      %p90 = por %p88, %p89
      %p91 = scmp.ne.s32.totalorder %s83, %s85
      %p92 = scmp.eq.s32.totalorder %s21, 3
      %p93 = por %p91, %p92
      %p94 = scmp.ne.s32.totalorder %s85, %s86
      %p95 = scmp.eq.s32.totalorder %s21, 0
      %p96 = por %p94, %p95
      %p97 = scmp.ne.s32.totalorder %s85, %s86
      %p98 = scmp.eq.s32.totalorder %s22, 3
      %p99 = por %p97, %p98
      %p101 = scmp.ne.s32.totalorder %s86, %s100
      %p102 = scmp.eq.s32.totalorder %s22, 0
      %p103 = por %p101, %p102
      %s105 = sadd.s32 %s104, 1
      %p108 = scmp.eq.s32.totalorder %s16, 3
      %p109 = scmp.ne.s32.totalorder %s104, %s106
      %p110 = scmp.eq.s32.totalorder %s16, 0
      %p111 = por %p109, %p110
      %p112 = scmp.ne.s32.totalorder %s104, %s106
      %p113 = scmp.eq.s32.totalorder %s21, 3
      %p114 = por %p112, %p113
      %p115 = scmp.ne.s32.totalorder %s106, %s107
      %p116 = scmp.eq.s32.totalorder %s21, 0
      %p117 = por %p115, %p116
      %p118 = scmp.ne.s32.totalorder %s106, %s107
      %p119 = scmp.eq.s32.totalorder %s22, 3
      %p120 = por %p118, %p119
      %p122 = scmp.ne.s32.totalorder %s107, %s121
      %p123 = scmp.eq.s32.totalorder %s22, 0
      %p124 = por %p122, %p123
      %s126 = sadd.s32 %s125, 1
      %p129 = scmp.eq.s32.totalorder %s16, 3
      %p130 = scmp.ne.s32.totalorder %s125, %s127
      %p131 = scmp.eq.s32.totalorder %s16, 0
      %p132 = por %p130, %p131
      %p133 = scmp.ne.s32.totalorder %s125, %s127
      %p134 = scmp.eq.s32.totalorder %s21, 3
      %p135 = por %p133, %p134
      %p136 = scmp.ne.s32.totalorder %s127, %s128
      %p137 = scmp.eq.s32.totalorder %s21, 0
      %p138 = por %p136, %p137
      %p139 = scmp.ne.s32.totalorder %s127, %s128
      %p140 = scmp.eq.s32.totalorder %s22, 3
      %p141 = por %p139, %p140
      %p143 = scmp.ne.s32.totalorder %s128, %s142
      %p144 = scmp.eq.s32.totalorder %s22, 0
      %p145 = por %p143, %p144
      %s147 = sadd.s32 %s146, 1
      %p150 = scmp.eq.s32.totalorder %s16, 3
      %p151 = scmp.ne.s32.totalorder %s146, %s148
      %p152 = scmp.eq.s32.totalorder %s16, 0
      %p153 = por %p151, %p152
      %p154 = scmp.ne.s32.totalorder %s146, %s148
      %p155 = scmp.eq.s32.totalorder %s21, 3
      %p156 = por %p154, %p155
      %p157 = scmp.ne.s32.totalorder %s148, %s149
      %p158 = scmp.eq.s32.totalorder %s21, 0
      %p159 = por %p157, %p158
      %p160 = scmp.ne.s32.totalorder %s148, %s149
      %p161 = scmp.eq.s32.totalorder %s22, 3
      %p162 = por %p160, %p161
      %p164 = scmp.ne.s32.totalorder %s149, %s163
      %p165 = scmp.eq.s32.totalorder %s22, 0
      %p166 = por %p164, %p165
      %s167 = ssub.s32 %s23, %s35
      %s168 = ssub.s32 %s24, %s31
      %s169 = sor.u32 %s167, %s168
      %p170 = scmp.eq.s32.totalorder %s169, 0
      %s172 = sadd.s32 %s171, 1
      %s173 = scalar_select %p170, %s171, %s172
      %p176 = pneg %p170
      %p177 = scmp.eq.s32.totalorder %s16, 3
      %p178 = por %p176, %p177
      %p179 = scmp.ne.s32.totalorder %s171, %s174
      %p180 = scmp.eq.s32.totalorder %s16, 0
      %p181 = por %p179, %p180
      %p182 = scmp.ne.s32.totalorder %s171, %s174
      %p183 = scmp.eq.s32.totalorder %s21, 3
      %p184 = por %p182, %p183
      %p185 = scmp.ne.s32.totalorder %s174, %s175
      %p186 = scmp.eq.s32.totalorder %s21, 0
      %p187 = por %p185, %p186
      %p188 = scmp.ne.s32.totalorder %s174, %s175
      %p189 = scmp.eq.s32.totalorder %s22, 3
      %p190 = por %p188, %p189
      %p192 = scmp.ne.s32.totalorder %s175, %s191
      %p193 = scmp.eq.s32.totalorder %s22, 0
      %p194 = por %p192, %p193
      %p195 = scmp.le.s32.totalorder 1, %s16
      %p196 = scmp.lt.s32.totalorder %s16, 5
      %p197 = pnand %p195, %p196
      %p198 = pneg %p197
      // Predicated region
      $region9: #{tpu_custom_call.1} parent=5 // pred_check
        _
      $region10: #{tpu_custom_call.1} parent=5 // pred_check_branch
        %200 = sbr.rel (%p197) target = $region12
      $region11: #{tpu_custom_call.1} parent=5 // pred_region
        %s201 = ssub.s32 %s16, 1
        // Predicated region
        $region13: #{tpu_custom_call.1} parent=11 // pred_check
          %p202 = pneg %p75
        $region14: #{tpu_custom_call.1} parent=11 // pred_check_branch
          %204 = sbr.rel (%p202) target = $region16
        $region15: #{tpu_custom_call.1} parent=11 // pred_region
          _
        $region16: #{tpu_custom_call.1} parent=11 // pred_fallthru
          _
        // Predicated region
        $region17: #{tpu_custom_call.1} parent=11 // pred_check
          %p205 = pneg %p96
        $region18: #{tpu_custom_call.1} parent=11 // pred_check_branch
          %207 = sbr.rel (%p205) target = $region20
        $region19: #{tpu_custom_call.1} parent=11 // pred_region
          _
        $region20: #{tpu_custom_call.1} parent=11 // pred_fallthru
          _
        // Predicated region
        $region21: #{tpu_custom_call.1} parent=11 // pred_check
          %p208 = pneg %p117
        $region22: #{tpu_custom_call.1} parent=11 // pred_check_branch
          %210 = sbr.rel (%p208) target = $region24
        $region23: #{tpu_custom_call.1} parent=11 // pred_region
          _
        $region24: #{tpu_custom_call.1} parent=11 // pred_fallthru
          _
        // Predicated region
        $region25: #{tpu_custom_call.1} parent=11 // pred_check
          %p211 = pneg %p138
        $region26: #{tpu_custom_call.1} parent=11 // pred_check_branch
          %213 = sbr.rel (%p211) target = $region28
        $region27: #{tpu_custom_call.1} parent=11 // pred_region
          _
        $region28: #{tpu_custom_call.1} parent=11 // pred_fallthru
          _
        // Predicated region
        $region29: #{tpu_custom_call.1} parent=11 // pred_check
          %p214 = pneg %p159
        $region30: #{tpu_custom_call.1} parent=11 // pred_check_branch
          %216 = sbr.rel (%p214) target = $region32
        $region31: #{tpu_custom_call.1} parent=11 // pred_region
          _
        $region32: #{tpu_custom_call.1} parent=11 // pred_fallthru
          _
      $region12: #{tpu_custom_call.1} parent=5 // pred_fallthru
        _
      %p217 = scmp.lt.s32.totalorder %s16, 4
      // Predicated region
      $region33: #{tpu_custom_call.1} parent=5 // pred_check
        %p218 = pneg %p217
      $region34: #{tpu_custom_call.1} parent=5 // pred_check_branch
        %220 = sbr.rel (%p218) target = $region36
      $region35: #{tpu_custom_call.1} parent=5 // pred_region
        // Predicated region
        $region37: #{tpu_custom_call.1} parent=35 // pred_check
          %p221 = pneg %p48
        $region38: #{tpu_custom_call.1} parent=35 // pred_check_branch
          %223 = sbr.rel (%p221) target = $region40
        $region39: #{tpu_custom_call.1} parent=35 // pred_region
          %p224 = scmp.lt.s32.totalorder %s23, 1
          %s225 = scalar_select %p224, %s23, 1
          %s226 = smul.addr %s225, 32
          %s227 = smul.addr %s226, 8
          %s228 = scalar_lea.vmem %s0, %s227
        $region40: #{tpu_custom_call.1} parent=35 // pred_fallthru
          _
      $region36: #{tpu_custom_call.1} parent=5 // pred_fallthru
        _
      %p229 = scmp.le.s32.totalorder 1, %s16
      %p230 = scmp.lt.s32.totalorder %s16, 5
      %p231 = pnand %p229, %p230
      %p232 = pneg %p231
      // Predicated region
      $region41: #{tpu_custom_call.1} parent=5 // pred_check
        _
      $region42: #{tpu_custom_call.1} parent=5 // pred_check_branch
        %234 = sbr.rel (%p231) target = $region44
      $region43: #{tpu_custom_call.1} parent=5 // pred_region
        %s235 = ssub.s32 %s16, 1
        %p236 = scmp.lt.s32.totalorder %s25, 1
        %s237 = scalar_select %p236, %s25, 1
        %s238 = smul.addr %s237, 32
        %s239 = smul.addr %s238, 8
        %s240 = scalar_lea.vmem %s0, %s239
        %p241 = pneg %p54
        %p242 = pneg %p51
        %p243 = pneg %p75
        %p244 = pneg %p72
        %p245 = pneg %p96
        %p246 = pneg %p93
        %p247 = pneg %p117
        %p248 = pneg %p114
        %p249 = pneg %p138
        %p250 = pneg %p135
        %p251 = pneg %p159
        %p252 = pneg %p156
        %p253 = pneg %p187
        %p254 = pneg %p184
        %s255 = sand.u32 %s174, 1
        %s256 = scalar_lea.sflag [#allocation6], %s255
        %s257 = sand.u32 %s174, 1
        %s258 = smul.addr %s257, 128
        %s259 = scalar_lea.vmem [#allocation5], %s258
        %p260 = scmp.lt.s32.totalorder %s25, 1
        %s261 = scalar_select %p260, %s25, 1
        %s262 = smul.addr %s261, 32
        %s263 = smul.addr %s262, 8
        %s264 = scalar_lea.vmem %s0, %s263
        %s265 = smul.u32 8, %s26
        %s267 = smul.u32 %s26, 8
        %p268 = scmp.eq.s32.totalorder %s26, 0
        // Predicated region
        $region45: #{tpu_custom_call.1} parent=43 // pred_check
          %p269 = pneg %p268
        $region46: #{tpu_custom_call.1} parent=43 // pred_check_branch
          %271 = sbr.rel (%p269) target = $region48
        $region47: #{tpu_custom_call.1} parent=43 // pred_region
          %vm272 = vcmask 519168
          %273 = vst.msk [vmem:[#allocation2] sm:$0xf] %vm272, 0
          %274 = vst.msk [vmem:[#allocation2 + $0x4] sm:$0xf] %vm272, 0
          %vm275 = vcmask 516096
          %276 = vst.msk [vmem:[#allocation2 + $0x8] sm:$0x1] %vm275, 0
          %277 = vst.msk [vmem:[#allocation2 + $0xc] sm:$0xf] %vm272, 0
          %278 = vst.msk [vmem:[#allocation2 + $0x10] sm:$0xf] %vm272, 0
          %279 = vst.msk [vmem:[#allocation2 + $0x14] sm:$0x1] %vm275, 0
          %280 = vst.msk [vmem:[#allocation2 + $0x18] sm:$0xf] %vm272, 0
          %281 = vst.msk [vmem:[#allocation2 + $0x1c] sm:$0xf] %vm272, 0
          %282 = vst.msk [vmem:[#allocation2 + $0x20] sm:$0x1] %vm275, 0
          %283 = vst.msk [vmem:[#allocation2 + $0x24] sm:$0xf] %vm272, 0
          %284 = vst.msk [vmem:[#allocation2 + $0x28] sm:$0xf] %vm272, 0
          %285 = vst.msk [vmem:[#allocation2 + $0x2c] sm:$0x1] %vm275, 0
          %286 = vst.msk [vmem:[#allocation2 + $0x30] sm:$0xf] %vm272, 0
          %287 = vst.msk [vmem:[#allocation2 + $0x34] sm:$0xf] %vm272, 0
          %288 = vst.msk [vmem:[#allocation2 + $0x38] sm:$0x1] %vm275, 0
          %289 = vst.msk [vmem:[#allocation2 + $0x3c] sm:$0xf] %vm272, 0
          %290 = vst.msk [vmem:[#allocation2 + $0x40] sm:$0xf] %vm272, 0
          %291 = vst.msk [vmem:[#allocation2 + $0x44] sm:$0x1] %vm275, 0
          %292 = vst.msk [vmem:[#allocation2 + $0x48] sm:$0xf] %vm272, 0
          %293 = vst.msk [vmem:[#allocation2 + $0x4c] sm:$0xf] %vm272, 0
          %294 = vst.msk [vmem:[#allocation2 + $0x50] sm:$0x1] %vm275, 0
          %295 = vst.msk [vmem:[#allocation2 + $0x54] sm:$0xf] %vm272, 0
          %296 = vst.msk [vmem:[#allocation2 + $0x58] sm:$0xf] %vm272, 0
          %297 = vst.msk [vmem:[#allocation2 + $0x5c] sm:$0x1] %vm275, 0
          %298 = vst.msk [vmem:[#allocation2 + $0x60] sm:$0xf] %vm272, 0
          %299 = vst.msk [vmem:[#allocation2 + $0x64] sm:$0xf] %vm272, 0
          %300 = vst.msk [vmem:[#allocation2 + $0x68] sm:$0x1] %vm275, 0
          %301 = vst.msk [vmem:[#allocation2 + $0x6c] sm:$0xf] %vm272, 0
          %302 = vst.msk [vmem:[#allocation2 + $0x70] sm:$0xf] %vm272, 0
          %303 = vst.msk [vmem:[#allocation2 + $0x74] sm:$0x1] %vm275, 0
          %304 = vst.msk [vmem:[#allocation2 + $0x78] sm:$0xf] %vm272, 0
          %305 = vst.msk [vmem:[#allocation2 + $0x7c] sm:$0xf] %vm272, 0
          %306 = vst.msk [vmem:[#allocation2 + $0x80] sm:$0x1] %vm275, 0
          %307 = vst.msk [vmem:[#allocation2 + $0x84] sm:$0xf] %vm272, 0
          %308 = vst.msk [vmem:[#allocation2 + $0x88] sm:$0xf] %vm272, 0
          %309 = vst.msk [vmem:[#allocation2 + $0x8c] sm:$0x1] %vm275, 0
          %310 = vst.msk [vmem:[#allocation2 + $0x90] sm:$0xf] %vm272, 0
          %311 = vst.msk [vmem:[#allocation2 + $0x94] sm:$0xf] %vm272, 0
          %312 = vst.msk [vmem:[#allocation2 + $0x98] sm:$0x1] %vm275, 0
          %313 = vst.msk [vmem:[#allocation2 + $0x9c] sm:$0xf] %vm272, 0
          %314 = vst.msk [vmem:[#allocation2 + $0xa0] sm:$0xf] %vm272, 0
          %315 = vst.msk [vmem:[#allocation2 + $0xa4] sm:$0x1] %vm275, 0
          %316 = vst.msk [vmem:[#allocation2 + $0xa8] sm:$0xf] %vm272, 0
          %317 = vst.msk [vmem:[#allocation2 + $0xac] sm:$0xf] %vm272, 0
          %318 = vst.msk [vmem:[#allocation2 + $0xb0] sm:$0x1] %vm275, 0
          %319 = vst.msk [vmem:[#allocation2 + $0xb4] sm:$0xf] %vm272, 0
          %320 = vst.msk [vmem:[#allocation2 + $0xb8] sm:$0xf] %vm272, 0
          %321 = vst.msk [vmem:[#allocation2 + $0xbc] sm:$0x1] %vm275, 0
          %322 = vst.msk [vmem:[#allocation2 + $0xc0] sm:$0xf] %vm272, 0
          %323 = vst.msk [vmem:[#allocation2 + $0xc4] sm:$0xf] %vm272, 0
          %324 = vst.msk [vmem:[#allocation2 + $0xc8] sm:$0x1] %vm275, 0
          %325 = vst.msk [vmem:[#allocation2 + $0xcc] sm:$0xf] %vm272, 0
          %326 = vst.msk [vmem:[#allocation2 + $0xd0] sm:$0xf] %vm272, 0
          %327 = vst.msk [vmem:[#allocation2 + $0xd4] sm:$0x1] %vm275, 0
          %328 = vst.msk [vmem:[#allocation2 + $0xd8] sm:$0xf] %vm272, 0
          %329 = vst.msk [vmem:[#allocation2 + $0xdc] sm:$0xf] %vm272, 0
          %330 = vst.msk [vmem:[#allocation2 + $0xe0] sm:$0x1] %vm275, 0
          %331 = vst.msk [vmem:[#allocation2 + $0xe4] sm:$0xf] %vm272, 0
          %332 = vst.msk [vmem:[#allocation2 + $0xe8] sm:$0xf] %vm272, 0
          %333 = vst.msk [vmem:[#allocation2 + $0xec] sm:$0x1] %vm275, 0
          %334 = vst.msk [vmem:[#allocation3] sm:$0xf] %vm272, 0
          %335 = vst.msk [vmem:[#allocation3 + $0x4] sm:$0xf] %vm272, 0
          %336 = vst.msk [vmem:[#allocation3 + $0x8] sm:$0x1] %vm275, 0
          %337 = vst.msk [vmem:[#allocation3 + $0xc] sm:$0xf] %vm272, 0
          %338 = vst.msk [vmem:[#allocation3 + $0x10] sm:$0xf] %vm272, 0
          %339 = vst.msk [vmem:[#allocation3 + $0x14] sm:$0x1] %vm275, 0
          %340 = vst.msk [vmem:[#allocation3 + $0x18] sm:$0xf] %vm272, 0
          %341 = vst.msk [vmem:[#allocation3 + $0x1c] sm:$0xf] %vm272, 0
          %342 = vst.msk [vmem:[#allocation3 + $0x20] sm:$0x1] %vm275, 0
          %343 = vst.msk [vmem:[#allocation3 + $0x24] sm:$0xf] %vm272, 0
          %344 = vst.msk [vmem:[#allocation3 + $0x28] sm:$0xf] %vm272, 0
          %345 = vst.msk [vmem:[#allocation3 + $0x2c] sm:$0x1] %vm275, 0
          %346 = vst.msk [vmem:[#allocation3 + $0x30] sm:$0xf] %vm272, 0
          %347 = vst.msk [vmem:[#allocation3 + $0x34] sm:$0xf] %vm272, 0
          %348 = vst.msk [vmem:[#allocation3 + $0x38] sm:$0x1] %vm275, 0
          %349 = vst.msk [vmem:[#allocation3 + $0x3c] sm:$0xf] %vm272, 0
          %350 = vst.msk [vmem:[#allocation3 + $0x40] sm:$0xf] %vm272, 0
          %351 = vst.msk [vmem:[#allocation3 + $0x44] sm:$0x1] %vm275, 0
          %352 = vst.msk [vmem:[#allocation3 + $0x48] sm:$0xf] %vm272, 0
          %353 = vst.msk [vmem:[#allocation3 + $0x4c] sm:$0xf] %vm272, 0
          %354 = vst.msk [vmem:[#allocation3 + $0x50] sm:$0x1] %vm275, 0
          %355 = vst.msk [vmem:[#allocation3 + $0x54] sm:$0xf] %vm272, 0
          %356 = vst.msk [vmem:[#allocation3 + $0x58] sm:$0xf] %vm272, 0
          %357 = vst.msk [vmem:[#allocation3 + $0x5c] sm:$0x1] %vm275, 0
          %358 = vst.msk [vmem:[#allocation3 + $0x60] sm:$0xf] %vm272, 0
          %359 = vst.msk [vmem:[#allocation3 + $0x64] sm:$0xf] %vm272, 0
          %360 = vst.msk [vmem:[#allocation3 + $0x68] sm:$0x1] %vm275, 0
          %361 = vst.msk [vmem:[#allocation3 + $0x6c] sm:$0xf] %vm272, 0
          %362 = vst.msk [vmem:[#allocation3 + $0x70] sm:$0xf] %vm272, 0
          %363 = vst.msk [vmem:[#allocation3 + $0x74] sm:$0x1] %vm275, 0
          %v364 = vld [vmem:[%s264] sm:$0xff]
          %v365 = vld [vmem:[%s264 + $0x8] sm:$0xff]
          %v366 = vld [vmem:[%s264 + $0x10] sm:$0xff]
          %v367 = vld [vmem:[%s264 + $0x18] sm:$0xff]
          %v368 = vld [vmem:[%s264 + $0x20] sm:$0xff]
          %v369 = vld [vmem:[%s264 + $0x28] sm:$0xff]
          %v370 = vld [vmem:[%s264 + $0x30] sm:$0xff]
          %v371 = vld [vmem:[%s264 + $0x38] sm:$0xff]
          %v372 = vld [vmem:[%s264 + $0x40] sm:$0xff]
          %v373 = vld [vmem:[%s264 + $0x48] sm:$0xff]
          %v374 = vld [vmem:[%s264 + $0x50] sm:$0xff]
          %v375 = vld [vmem:[%s264 + $0x58] sm:$0xff]
          %v376 = vld [vmem:[%s264 + $0x60] sm:$0xff]
          %v377 = vld [vmem:[%s264 + $0x68] sm:$0xff]
          %v378 = vld [vmem:[%s264 + $0x70] sm:$0xff]
          %v379 = vld [vmem:[%s264 + $0x78] sm:$0xff]
          %v380 = vld [vmem:[%s264 + $0x80] sm:$0xff]
          %v381 = vld [vmem:[%s264 + $0x88] sm:$0xff]
          %v382 = vld [vmem:[%s264 + $0x90] sm:$0xff]
          %v383 = vld [vmem:[%s264 + $0x98] sm:$0xff]
          %v384 = vld [vmem:[%s264 + $0xa0] sm:$0xff]
          %v385 = vld [vmem:[%s264 + $0xa8] sm:$0xff]
          %v386 = vld [vmem:[%s264 + $0xb0] sm:$0xff]
          %v387 = vld [vmem:[%s264 + $0xb8] sm:$0xff]
          %v388 = vld [vmem:[%s264 + $0xc0] sm:$0xff]
          %v389 = vld [vmem:[%s264 + $0xc8] sm:$0xff]
          %v390 = vld [vmem:[%s264 + $0xd0] sm:$0xff]
          %v391 = vld [vmem:[%s264 + $0xd8] sm:$0xff]
          %v392 = vld [vmem:[%s264 + $0xe0] sm:$0xff]
          %v393 = vld [vmem:[%s264 + $0xe8] sm:$0xff]
          %v394 = vld [vmem:[%s264 + $0xf0] sm:$0xff]
          %v395 = vld [vmem:[%s264 + $0xf8] sm:$0xff]
          %v396 = vpack.c.bf16 %v365, %v364
          %v397 = vpack.c.bf16 %v367, %v366
          %v398 = vpack.c.bf16 %v369, %v368
          %v399 = vpack.c.bf16 %v371, %v370
          %v400 = vpack.c.bf16 %v373, %v372
          %v401 = vpack.c.bf16 %v375, %v374
          %v402 = vpack.c.bf16 %v377, %v376
          %v403 = vpack.c.bf16 %v379, %v378
          %v404 = vpack.c.bf16 %v381, %v380
          %v405 = vpack.c.bf16 %v383, %v382
          %v406 = vpack.c.bf16 %v385, %v384
          %v407 = vpack.c.bf16 %v387, %v386
          %v408 = vpack.c.bf16 %v389, %v388
          %v409 = vpack.c.bf16 %v391, %v390
          %v410 = vpack.c.bf16 %v393, %v392
          %v411 = vpack.c.bf16 %v395, %v394
          %v428 = vunpack.c.l.b16 %v396
          %v429 = vunpack.c.h.b16 %v396
          %v430 = vunpack.c.l.b16 %v397
          %v431 = vunpack.c.h.b16 %v397
          %v432 = vunpack.c.l.b16 %v398
          %v433 = vunpack.c.h.b16 %v398
          %v434 = vunpack.c.l.b16 %v399
          %v435 = vunpack.c.h.b16 %v399
          %v436 = vunpack.c.l.b16 %v400
          %v437 = vunpack.c.h.b16 %v400
          %v438 = vunpack.c.l.b16 %v401
          %v439 = vunpack.c.h.b16 %v401
          %v440 = vunpack.c.l.b16 %v402
          %v441 = vunpack.c.h.b16 %v402
          %v442 = vunpack.c.l.b16 %v403
          %v443 = vunpack.c.h.b16 %v403
          %v444 = vunpack.c.l.b16 %v404
          %v445 = vunpack.c.h.b16 %v404
          %v446 = vunpack.c.l.b16 %v405
          %v447 = vunpack.c.h.b16 %v405
          %v448 = vunpack.c.l.b16 %v406
          %v449 = vunpack.c.h.b16 %v406
          %v450 = vunpack.c.l.b16 %v407
          %v451 = vunpack.c.h.b16 %v407
          %v452 = vunpack.c.l.b16 %v408
          %v453 = vunpack.c.h.b16 %v408
          %v454 = vunpack.c.l.b16 %v409
          %v455 = vunpack.c.h.b16 %v409
          %v456 = vunpack.c.l.b16 %v410
          %v457 = vunpack.c.h.b16 %v410
          %v458 = vunpack.c.l.b16 %v411
          %v459 = vunpack.c.h.b16 %v411
          %v460 = vpack.c.b16 %v428, %v428
          %v461 = vpack.c.b16 %v429, %v429
          %v462 = vpack.c.b16 %v430, %v430
          %v463 = vpack.c.b16 %v431, %v431
          %v464 = vpack.c.b16 %v432, %v432
          %v465 = vpack.c.b16 %v433, %v433
          %v466 = vpack.c.b16 %v434, %v434
          %v467 = vpack.c.b16 %v435, %v435
          %v468 = vpack.c.b16 %v436, %v436
          %v469 = vpack.c.b16 %v437, %v437
          %v470 = vpack.c.b16 %v438, %v438
          %v471 = vpack.c.b16 %v439, %v439
          %v472 = vpack.c.b16 %v440, %v440
          %v473 = vpack.c.b16 %v441, %v441
          %v474 = vpack.c.b16 %v442, %v442
          %v475 = vpack.c.b16 %v443, %v443
          %v476 = vpack.c.b16 %v444, %v444
          %v477 = vpack.c.b16 %v445, %v445
          %v478 = vpack.c.b16 %v446, %v446
          %v479 = vpack.c.b16 %v447, %v447
          %v480 = vpack.c.b16 %v448, %v448
          %v481 = vpack.c.b16 %v449, %v449
          %v482 = vpack.c.b16 %v450, %v450
          %v483 = vpack.c.b16 %v451, %v451
          %v484 = vpack.c.b16 %v452, %v452
          %v485 = vpack.c.b16 %v453, %v453
          %v486 = vpack.c.b16 %v454, %v454
          %v487 = vpack.c.b16 %v455, %v455
          %v488 = vpack.c.b16 %v456, %v456
          %v489 = vpack.c.b16 %v457, %v457
          %v490 = vpack.c.b16 %v458, %v458
          %v491 = vpack.c.b16 %v459, %v459
          %vm492 = vsmask.f32 256
          %vm493 = vsmask.f32 4368
          %vm494 = vmor %vm492, %vm493
          %v496 = vshrl.u32 %v460, 16
          %v498 = vrot.slane %v496, 7
          %v499 = vshll.u32 %v460, 16
          %v501 = vor.u32 %v498, %v499
          %v502 = vrot.slane %v498, 4
          %v504 = vshrl.u32 %v461, 16
          %v506 = vrot.slane %v504, 7
          %v507 = vshll.u32 %v461, 16
          %v509 = vor.u32 %v506, %v507
          %v510 = vsel %vm494, %v502, %v509
          %v511 = vrot.slane %v506, 4
          %v513 = vshrl.u32 %v462, 16
          %v515 = vrot.slane %v513, 7
          %v516 = vshll.u32 %v462, 16
          %v518 = vor.u32 %v515, %v516
          %v519 = vrot.slane %v515, 4
          %v521 = vshrl.u32 %v463, 16
          %v523 = vrot.slane %v521, 7
          %v524 = vshll.u32 %v463, 16
          %v526 = vor.u32 %v523, %v524
          %v527 = vsel %vm494, %v519, %v526
          %v528 = vrot.slane %v523, 4
          %v530 = vshrl.u32 %v464, 16
          %v532 = vrot.slane %v530, 7
          %v533 = vshll.u32 %v464, 16
          %v535 = vor.u32 %v532, %v533
          %v536 = vrot.slane %v532, 4
          %v538 = vshrl.u32 %v465, 16
          %v540 = vrot.slane %v538, 7
          %v541 = vshll.u32 %v465, 16
          %v543 = vor.u32 %v540, %v541
          %v544 = vsel %vm494, %v536, %v543
          %v545 = vrot.slane %v540, 4
          %v547 = vshrl.u32 %v466, 16
          %v549 = vrot.slane %v547, 7
          %v550 = vshll.u32 %v466, 16
          %v552 = vor.u32 %v549, %v550
          %v553 = vrot.slane %v549, 4
          %v555 = vshrl.u32 %v467, 16
          %v557 = vrot.slane %v555, 7
          %v558 = vshll.u32 %v467, 16
          %v560 = vor.u32 %v557, %v558
          %v561 = vsel %vm494, %v553, %v560
          %v562 = vrot.slane %v557, 4
          %v564 = vshrl.u32 %v468, 16
          %v566 = vrot.slane %v564, 7
          %v567 = vshll.u32 %v468, 16
          %v569 = vor.u32 %v566, %v567
          %v570 = vrot.slane %v566, 4
          %v572 = vshrl.u32 %v469, 16
          %v574 = vrot.slane %v572, 7
          %v575 = vshll.u32 %v469, 16
          %v577 = vor.u32 %v574, %v575
          %v578 = vsel %vm494, %v570, %v577
          %v579 = vrot.slane %v574, 4
          %v581 = vshrl.u32 %v470, 16
          %v583 = vrot.slane %v581, 7
          %v584 = vshll.u32 %v470, 16
          %v586 = vor.u32 %v583, %v584
          %v587 = vrot.slane %v583, 4
          %v589 = vshrl.u32 %v471, 16
          %v591 = vrot.slane %v589, 7
          %v592 = vshll.u32 %v471, 16
          %v594 = vor.u32 %v591, %v592
          %v595 = vsel %vm494, %v587, %v594
          %v596 = vrot.slane %v591, 4
          %v598 = vshrl.u32 %v472, 16
          %v600 = vrot.slane %v598, 7
          %v601 = vshll.u32 %v472, 16
          %v603 = vor.u32 %v600, %v601
          %v604 = vrot.slane %v600, 4
          %v606 = vshrl.u32 %v473, 16
          %v608 = vrot.slane %v606, 7
          %v609 = vshll.u32 %v473, 16
          %v611 = vor.u32 %v608, %v609
          %v612 = vsel %vm494, %v604, %v611
          %v613 = vrot.slane %v608, 4
          %v615 = vshrl.u32 %v474, 16
          %v617 = vrot.slane %v615, 7
          %v618 = vshll.u32 %v474, 16
          %v620 = vor.u32 %v617, %v618
          %v621 = vrot.slane %v617, 4
          %v623 = vshrl.u32 %v475, 16
          %v625 = vrot.slane %v623, 7
          %v626 = vshll.u32 %v475, 16
          %v628 = vor.u32 %v625, %v626
          %v629 = vsel %vm494, %v621, %v628
          %v630 = vrot.slane %v625, 4
          %v632 = vshrl.u32 %v476, 16
          %v634 = vrot.slane %v632, 7
          %v635 = vshll.u32 %v476, 16
          %v637 = vor.u32 %v634, %v635
          %v638 = vrot.slane %v634, 4
          %v640 = vshrl.u32 %v477, 16
          %v642 = vrot.slane %v640, 7
          %v643 = vshll.u32 %v477, 16
          %v645 = vor.u32 %v642, %v643
          %v646 = vsel %vm494, %v638, %v645
          %v647 = vrot.slane %v642, 4
          %v649 = vshrl.u32 %v478, 16
          %v651 = vrot.slane %v649, 7
          %v652 = vshll.u32 %v478, 16
          %v654 = vor.u32 %v651, %v652
          %v655 = vrot.slane %v651, 4
          %v657 = vshrl.u32 %v479, 16
          %v659 = vrot.slane %v657, 7
          %v660 = vshll.u32 %v479, 16
          %v662 = vor.u32 %v659, %v660
          %v663 = vsel %vm494, %v655, %v662
          %v664 = vrot.slane %v659, 4
          %v666 = vshrl.u32 %v480, 16
          %v668 = vrot.slane %v666, 7
          %v669 = vshll.u32 %v480, 16
          %v671 = vor.u32 %v668, %v669
          %v672 = vrot.slane %v668, 4
          %v674 = vshrl.u32 %v481, 16
          %v676 = vrot.slane %v674, 7
          %v677 = vshll.u32 %v481, 16
          %v679 = vor.u32 %v676, %v677
          %v680 = vsel %vm494, %v672, %v679
          %v681 = vrot.slane %v676, 4
          %v683 = vshrl.u32 %v482, 16
          %v685 = vrot.slane %v683, 7
          %v686 = vshll.u32 %v482, 16
          %v688 = vor.u32 %v685, %v686
          %v689 = vrot.slane %v685, 4
          %v691 = vshrl.u32 %v483, 16
          %v693 = vrot.slane %v691, 7
          %v694 = vshll.u32 %v483, 16
          %v696 = vor.u32 %v693, %v694
          %v697 = vsel %vm494, %v689, %v696
          %v698 = vrot.slane %v693, 4
          %v700 = vshrl.u32 %v484, 16
          %v702 = vrot.slane %v700, 7
          %v703 = vshll.u32 %v484, 16
          %v705 = vor.u32 %v702, %v703
          %v706 = vrot.slane %v702, 4
          %v708 = vshrl.u32 %v485, 16
          %v710 = vrot.slane %v708, 7
          %v711 = vshll.u32 %v485, 16
          %v713 = vor.u32 %v710, %v711
          %v714 = vsel %vm494, %v706, %v713
          %v715 = vrot.slane %v710, 4
          %v717 = vshrl.u32 %v486, 16
          %v719 = vrot.slane %v717, 7
          %v720 = vshll.u32 %v486, 16
          %v722 = vor.u32 %v719, %v720
          %v723 = vrot.slane %v719, 4
          %v725 = vshrl.u32 %v487, 16
          %v727 = vrot.slane %v725, 7
          %v728 = vshll.u32 %v487, 16
          %v730 = vor.u32 %v727, %v728
          %v731 = vsel %vm494, %v723, %v730
          %v732 = vrot.slane %v727, 4
          %v734 = vshrl.u32 %v488, 16
          %v736 = vrot.slane %v734, 7
          %v737 = vshll.u32 %v488, 16
          %v739 = vor.u32 %v736, %v737
          %v740 = vrot.slane %v736, 4
          %v742 = vshrl.u32 %v489, 16
          %v744 = vrot.slane %v742, 7
          %v745 = vshll.u32 %v489, 16
          %v747 = vor.u32 %v744, %v745
          %v748 = vsel %vm494, %v740, %v747
          %v749 = vrot.slane %v744, 4
          %v751 = vshrl.u32 %v490, 16
          %v753 = vrot.slane %v751, 7
          %v754 = vshll.u32 %v490, 16
          %v756 = vor.u32 %v753, %v754
          %v757 = vrot.slane %v753, 4
          %v759 = vshrl.u32 %v491, 16
          %v761 = vrot.slane %v759, 7
          %v762 = vshll.u32 %v491, 16
          %v764 = vor.u32 %v761, %v762
          %v765 = vsel %vm494, %v757, %v764
          %v766 = vrot.slane %v761, 4
          %s815 = scalar_lea.vmem [#allocation2], 24
          %vm816 = vcmask 519168
          %vm817 = vsmask.f32 7938
          %vm818 = vmand %vm816, %vm817
          %v819 = vld [vmem:[%s815] sm:$0xf]
          %v820 = vsel %vm818, %v501, %v819
          %821 = vst [vmem:[%s815] sm:$0xf] %v820
          %822 = vst.msk [vmem:[%s815 + $0x4] sm:$0xf] %vm272, %v510
          %vm823 = vcmask 516096
          %vm824 = vmand %vm823, %vm492
          %v825 = vld [vmem:[%s815 + $0x8] sm:$0x1]
          %v826 = vsel %vm824, %v511, %v825
          %827 = vst [vmem:[%s815 + $0x8] sm:$0x1] %v826
          %v828 = vld [vmem:[%s815 + $0xc] sm:$0xf]
          %v829 = vsel %vm818, %v518, %v828
          %830 = vst [vmem:[%s815 + $0xc] sm:$0xf] %v829
          %831 = vst.msk [vmem:[%s815 + $0x10] sm:$0xf] %vm272, %v527
          %v832 = vld [vmem:[%s815 + $0x14] sm:$0x1]
          %v833 = vsel %vm824, %v528, %v832
          %834 = vst [vmem:[%s815 + $0x14] sm:$0x1] %v833
          %v835 = vld [vmem:[%s815 + $0x18] sm:$0xf]
          %v836 = vsel %vm818, %v535, %v835
          %837 = vst [vmem:[%s815 + $0x18] sm:$0xf] %v836
          %838 = vst.msk [vmem:[%s815 + $0x1c] sm:$0xf] %vm272, %v544
          %v839 = vld [vmem:[%s815 + $0x20] sm:$0x1]
          %v840 = vsel %vm824, %v545, %v839
          %841 = vst [vmem:[%s815 + $0x20] sm:$0x1] %v840
          %v842 = vld [vmem:[%s815 + $0x24] sm:$0xf]
          %v843 = vsel %vm818, %v552, %v842
          %844 = vst [vmem:[%s815 + $0x24] sm:$0xf] %v843
          %845 = vst.msk [vmem:[%s815 + $0x28] sm:$0xf] %vm272, %v561
          %v846 = vld [vmem:[%s815 + $0x2c] sm:$0x1]
          %v847 = vsel %vm824, %v562, %v846
          %848 = vst [vmem:[%s815 + $0x2c] sm:$0x1] %v847
          %v849 = vld [vmem:[%s815 + $0x30] sm:$0xf]
          %v850 = vsel %vm818, %v569, %v849
          %851 = vst [vmem:[%s815 + $0x30] sm:$0xf] %v850
          %852 = vst.msk [vmem:[%s815 + $0x34] sm:$0xf] %vm272, %v578
          %v853 = vld [vmem:[%s815 + $0x38] sm:$0x1]
          %v854 = vsel %vm824, %v579, %v853
          %855 = vst [vmem:[%s815 + $0x38] sm:$0x1] %v854
          %v856 = vld [vmem:[%s815 + $0x3c] sm:$0xf]
          %v857 = vsel %vm818, %v586, %v856
          %858 = vst [vmem:[%s815 + $0x3c] sm:$0xf] %v857
          %859 = vst.msk [vmem:[%s815 + $0x40] sm:$0xf] %vm272, %v595
          %v860 = vld [vmem:[%s815 + $0x44] sm:$0x1]
          %v861 = vsel %vm824, %v596, %v860
          %862 = vst [vmem:[%s815 + $0x44] sm:$0x1] %v861
          %v863 = vld [vmem:[%s815 + $0x48] sm:$0xf]
          %v864 = vsel %vm818, %v603, %v863
          %865 = vst [vmem:[%s815 + $0x48] sm:$0xf] %v864
          %866 = vst.msk [vmem:[%s815 + $0x4c] sm:$0xf] %vm272, %v612
          %v867 = vld [vmem:[%s815 + $0x50] sm:$0x1]
          %v868 = vsel %vm824, %v613, %v867
          %869 = vst [vmem:[%s815 + $0x50] sm:$0x1] %v868
          %v870 = vld [vmem:[%s815 + $0x54] sm:$0xf]
          %v871 = vsel %vm818, %v620, %v870
          %872 = vst [vmem:[%s815 + $0x54] sm:$0xf] %v871
          %873 = vst.msk [vmem:[%s815 + $0x58] sm:$0xf] %vm272, %v629
          %v874 = vld [vmem:[%s815 + $0x5c] sm:$0x1]
          %v875 = vsel %vm824, %v630, %v874
          %876 = vst [vmem:[%s815 + $0x5c] sm:$0x1] %v875
          %v877 = vld [vmem:[%s815 + $0x60] sm:$0xf]
          %v878 = vsel %vm818, %v637, %v877
          %879 = vst [vmem:[%s815 + $0x60] sm:$0xf] %v878
          %880 = vst.msk [vmem:[%s815 + $0x64] sm:$0xf] %vm272, %v646
          %v881 = vld [vmem:[%s815 + $0x68] sm:$0x1]
          %v882 = vsel %vm824, %v647, %v881
          %883 = vst [vmem:[%s815 + $0x68] sm:$0x1] %v882
          %v884 = vld [vmem:[%s815 + $0x6c] sm:$0xf]
          %v885 = vsel %vm818, %v654, %v884
          %886 = vst [vmem:[%s815 + $0x6c] sm:$0xf] %v885
          %887 = vst.msk [vmem:[%s815 + $0x70] sm:$0xf] %vm272, %v663
          %v888 = vld [vmem:[%s815 + $0x74] sm:$0x1]
          %v889 = vsel %vm824, %v664, %v888
          %890 = vst [vmem:[%s815 + $0x74] sm:$0x1] %v889
          %v891 = vld [vmem:[%s815 + $0x78] sm:$0xf]
          %v892 = vsel %vm818, %v671, %v891
          %893 = vst [vmem:[%s815 + $0x78] sm:$0xf] %v892
          %894 = vst.msk [vmem:[%s815 + $0x7c] sm:$0xf] %vm272, %v680
          %v895 = vld [vmem:[%s815 + $0x80] sm:$0x1]
          %v896 = vsel %vm824, %v681, %v895
          %897 = vst [vmem:[%s815 + $0x80] sm:$0x1] %v896
          %v898 = vld [vmem:[%s815 + $0x84] sm:$0xf]
          %v899 = vsel %vm818, %v688, %v898
          %900 = vst [vmem:[%s815 + $0x84] sm:$0xf] %v899
          %901 = vst.msk [vmem:[%s815 + $0x88] sm:$0xf] %vm272, %v697
          %v902 = vld [vmem:[%s815 + $0x8c] sm:$0x1]
          %v903 = vsel %vm824, %v698, %v902
          %904 = vst [vmem:[%s815 + $0x8c] sm:$0x1] %v903
          %v905 = vld [vmem:[%s815 + $0x90] sm:$0xf]
          %v906 = vsel %vm818, %v705, %v905
          %907 = vst [vmem:[%s815 + $0x90] sm:$0xf] %v906
          %908 = vst.msk [vmem:[%s815 + $0x94] sm:$0xf] %vm272, %v714
          %v909 = vld [vmem:[%s815 + $0x98] sm:$0x1]
          %v910 = vsel %vm824, %v715, %v909
          %911 = vst [vmem:[%s815 + $0x98] sm:$0x1] %v910
          %v912 = vld [vmem:[%s815 + $0x9c] sm:$0xf]
          %v913 = vsel %vm818, %v722, %v912
          %914 = vst [vmem:[%s815 + $0x9c] sm:$0xf] %v913
          %915 = vst.msk [vmem:[%s815 + $0xa0] sm:$0xf] %vm272, %v731
          %v916 = vld [vmem:[%s815 + $0xa4] sm:$0x1]
          %v917 = vsel %vm824, %v732, %v916
          %918 = vst [vmem:[%s815 + $0xa4] sm:$0x1] %v917
          %v919 = vld [vmem:[%s815 + $0xa8] sm:$0xf]
          %v920 = vsel %vm818, %v739, %v919
          %921 = vst [vmem:[%s815 + $0xa8] sm:$0xf] %v920
          %922 = vst.msk [vmem:[%s815 + $0xac] sm:$0xf] %vm272, %v748
          %v923 = vld [vmem:[%s815 + $0xb0] sm:$0x1]
          %v924 = vsel %vm824, %v749, %v923
          %925 = vst [vmem:[%s815 + $0xb0] sm:$0x1] %v924
          %v926 = vld [vmem:[%s815 + $0xb4] sm:$0xf]
          %v927 = vsel %vm818, %v756, %v926
          %928 = vst [vmem:[%s815 + $0xb4] sm:$0xf] %v927
          %929 = vst.msk [vmem:[%s815 + $0xb8] sm:$0xf] %vm272, %v765
          %v930 = vld [vmem:[%s815 + $0xbc] sm:$0x1]
          %v931 = vsel %vm824, %v766, %v930
          %932 = vst [vmem:[%s815 + $0xbc] sm:$0x1] %v931
        $region48: #{tpu_custom_call.1} parent=43 // pred_fallthru
          _
        %s933 = smul.u32 %s267, 3
        %s934 = smul.addr %s933, 4
        %s935 = scalar_lea.vmem [#allocation2], %s934
        %v936 = vld [vmem:[%s935] sm:$0xf]
        %v937 = vld [vmem:[%s935 + $0x4] sm:$0xf]
        %v938 = vld [vmem:[%s935 + $0x8] sm:$0x1]
        %v939 = vld [vmem:[%s935 + $0xc] sm:$0xf]
        %v940 = vld [vmem:[%s935 + $0x10] sm:$0xf]
        %v941 = vld [vmem:[%s935 + $0x14] sm:$0x1]
        %v942 = vld [vmem:[%s935 + $0x18] sm:$0xf]
        %v943 = vld [vmem:[%s935 + $0x1c] sm:$0xf]
        %v944 = vld [vmem:[%s935 + $0x20] sm:$0x1]
        %v945 = vld [vmem:[%s935 + $0x24] sm:$0xf]
        %v946 = vld [vmem:[%s935 + $0x28] sm:$0xf]
        %v947 = vld [vmem:[%s935 + $0x2c] sm:$0x1]
        %v948 = vld [vmem:[%s935 + $0x30] sm:$0xf]
        %v949 = vld [vmem:[%s935 + $0x34] sm:$0xf]
        %v950 = vld [vmem:[%s935 + $0x38] sm:$0x1]
        %v951 = vld [vmem:[%s935 + $0x3c] sm:$0xf]
        %v952 = vld [vmem:[%s935 + $0x40] sm:$0xf]
        %v953 = vld [vmem:[%s935 + $0x44] sm:$0x1]
        %v954 = vld [vmem:[%s935 + $0x48] sm:$0xf]
        %v955 = vld [vmem:[%s935 + $0x4c] sm:$0xf]
        %v956 = vld [vmem:[%s935 + $0x50] sm:$0x1]
        %v957 = vld [vmem:[%s935 + $0x54] sm:$0xf]
        %v958 = vld [vmem:[%s935 + $0x58] sm:$0xf]
        %v959 = vld [vmem:[%s935 + $0x5c] sm:$0x1]
        %v960 = vld [vmem:[%s935 + $0x60] sm:$0xf]
        %v961 = vld [vmem:[%s935 + $0x64] sm:$0xf]
        %v962 = vld [vmem:[%s935 + $0x68] sm:$0x1]
        %v963 = vld [vmem:[%s935 + $0x6c] sm:$0xf]
        %v964 = vld [vmem:[%s935 + $0x70] sm:$0xf]
        %v965 = vld [vmem:[%s935 + $0x74] sm:$0x1]
        %vm966 = vsmask.f32 3328
        %vm967 = vsmask.f32 7440
        %vm968 = vmor %vm966, %vm967
        %v970 = vshrl.u32 %v936, 16
        %v972 = vrot.slane %v970, 4
        %v973 = vshll.u32 %v936, 16
        %v975 = vrot.slane %v973, 5
        %v976 = vor.u32 %v972, %v975
        %v977 = vrot.slane %v976, 4
        %v979 = vshll.u32 %v937, 16
        %v981 = vrot.slane %v979, 5
        %v982 = vsel %vm968, %v977, %v981
        %v983 = vshrl.u32 %v937, 16
        %v985 = vrot.slane %v983, 4
        %v986 = vor.u32 %v985, %v981
        %v987 = vrot.slane %v986, 4
        %v989 = vshll.u32 %v938, 16
        %v991 = vrot.slane %v989, 5
        %v992 = vsel %vm968, %v987, %v991
        %v994 = vshrl.u32 %v939, 16
        %v996 = vrot.slane %v994, 4
        %v997 = vshll.u32 %v939, 16
        %v999 = vrot.slane %v997, 5
        %v1000 = vor.u32 %v996, %v999
        %v1001 = vrot.slane %v1000, 4
        %v1003 = vshll.u32 %v940, 16
        %v1005 = vrot.slane %v1003, 5
        %v1006 = vsel %vm968, %v1001, %v1005
        %v1007 = vshrl.u32 %v940, 16
        %v1009 = vrot.slane %v1007, 4
        %v1010 = vor.u32 %v1009, %v1005
        %v1011 = vrot.slane %v1010, 4
        %v1013 = vshll.u32 %v941, 16
        %v1015 = vrot.slane %v1013, 5
        %v1016 = vsel %vm968, %v1011, %v1015
        %v1018 = vshrl.u32 %v942, 16
        %v1020 = vrot.slane %v1018, 4
        %v1021 = vshll.u32 %v942, 16
        %v1023 = vrot.slane %v1021, 5
        %v1024 = vor.u32 %v1020, %v1023
        %v1025 = vrot.slane %v1024, 4
        %v1027 = vshll.u32 %v943, 16
        %v1029 = vrot.slane %v1027, 5
        %v1030 = vsel %vm968, %v1025, %v1029
        %v1031 = vshrl.u32 %v943, 16
        %v1033 = vrot.slane %v1031, 4
        %v1034 = vor.u32 %v1033, %v1029
        %v1035 = vrot.slane %v1034, 4
        %v1037 = vshll.u32 %v944, 16
        %v1039 = vrot.slane %v1037, 5
        %v1040 = vsel %vm968, %v1035, %v1039
        %v1042 = vshrl.u32 %v945, 16
        %v1044 = vrot.slane %v1042, 4
        %v1045 = vshll.u32 %v945, 16
        %v1047 = vrot.slane %v1045, 5
        %v1048 = vor.u32 %v1044, %v1047
        %v1049 = vrot.slane %v1048, 4
        %v1051 = vshll.u32 %v946, 16
        %v1053 = vrot.slane %v1051, 5
        %v1054 = vsel %vm968, %v1049, %v1053
        %v1055 = vshrl.u32 %v946, 16
        %v1057 = vrot.slane %v1055, 4
        %v1058 = vor.u32 %v1057, %v1053
        %v1059 = vrot.slane %v1058, 4
        %v1061 = vshll.u32 %v947, 16
        %v1063 = vrot.slane %v1061, 5
        %v1064 = vsel %vm968, %v1059, %v1063
        %v1066 = vshrl.u32 %v948, 16
        %v1068 = vrot.slane %v1066, 4
        %v1069 = vshll.u32 %v948, 16
        %v1071 = vrot.slane %v1069, 5
        %v1072 = vor.u32 %v1068, %v1071
        %v1073 = vrot.slane %v1072, 4
        %v1075 = vshll.u32 %v949, 16
        %v1077 = vrot.slane %v1075, 5
        %v1078 = vsel %vm968, %v1073, %v1077
        %v1079 = vshrl.u32 %v949, 16
        %v1081 = vrot.slane %v1079, 4
        %v1082 = vor.u32 %v1081, %v1077
        %v1083 = vrot.slane %v1082, 4
        %v1085 = vshll.u32 %v950, 16
        %v1087 = vrot.slane %v1085, 5
        %v1088 = vsel %vm968, %v1083, %v1087
        %v1090 = vshrl.u32 %v951, 16
        %v1092 = vrot.slane %v1090, 4
        %v1093 = vshll.u32 %v951, 16
        %v1095 = vrot.slane %v1093, 5
        %v1096 = vor.u32 %v1092, %v1095
        %v1097 = vrot.slane %v1096, 4
        %v1099 = vshll.u32 %v952, 16
        %v1101 = vrot.slane %v1099, 5
        %v1102 = vsel %vm968, %v1097, %v1101
        %v1103 = vshrl.u32 %v952, 16
        %v1105 = vrot.slane %v1103, 4
        %v1106 = vor.u32 %v1105, %v1101
        %v1107 = vrot.slane %v1106, 4
        %v1109 = vshll.u32 %v953, 16
        %v1111 = vrot.slane %v1109, 5
        %v1112 = vsel %vm968, %v1107, %v1111
        %v1114 = vshrl.u32 %v954, 16
        %v1116 = vrot.slane %v1114, 4
        %v1117 = vshll.u32 %v954, 16
        %v1119 = vrot.slane %v1117, 5
        %v1120 = vor.u32 %v1116, %v1119
        %v1121 = vrot.slane %v1120, 4
        %v1123 = vshll.u32 %v955, 16
        %v1125 = vrot.slane %v1123, 5
        %v1126 = vsel %vm968, %v1121, %v1125
        %v1127 = vshrl.u32 %v955, 16
        %v1129 = vrot.slane %v1127, 4
        %v1130 = vor.u32 %v1129, %v1125
        %v1131 = vrot.slane %v1130, 4
        %v1133 = vshll.u32 %v956, 16
        %v1135 = vrot.slane %v1133, 5
        %v1136 = vsel %vm968, %v1131, %v1135
        %v1138 = vshrl.u32 %v957, 16
        %v1140 = vrot.slane %v1138, 4
        %v1141 = vshll.u32 %v957, 16
        %v1143 = vrot.slane %v1141, 5
        %v1144 = vor.u32 %v1140, %v1143
        %v1145 = vrot.slane %v1144, 4
        %v1147 = vshll.u32 %v958, 16
        %v1149 = vrot.slane %v1147, 5
        %v1150 = vsel %vm968, %v1145, %v1149
        %v1151 = vshrl.u32 %v958, 16
        %v1153 = vrot.slane %v1151, 4
        %v1154 = vor.u32 %v1153, %v1149
        %v1155 = vrot.slane %v1154, 4
        %v1157 = vshll.u32 %v959, 16
        %v1159 = vrot.slane %v1157, 5
        %v1160 = vsel %vm968, %v1155, %v1159
        %v1162 = vshrl.u32 %v960, 16
        %v1164 = vrot.slane %v1162, 4
        %v1165 = vshll.u32 %v960, 16
        %v1167 = vrot.slane %v1165, 5
        %v1168 = vor.u32 %v1164, %v1167
        %v1169 = vrot.slane %v1168, 4
        %v1171 = vshll.u32 %v961, 16
        %v1173 = vrot.slane %v1171, 5
        %v1174 = vsel %vm968, %v1169, %v1173
        %v1175 = vshrl.u32 %v961, 16
        %v1177 = vrot.slane %v1175, 4
        %v1178 = vor.u32 %v1177, %v1173
        %v1179 = vrot.slane %v1178, 4
        %v1181 = vshll.u32 %v962, 16
        %v1183 = vrot.slane %v1181, 5
        %v1184 = vsel %vm968, %v1179, %v1183
        %v1186 = vshrl.u32 %v963, 16
        %v1188 = vrot.slane %v1186, 4
        %v1189 = vshll.u32 %v963, 16
        %v1191 = vrot.slane %v1189, 5
        %v1192 = vor.u32 %v1188, %v1191
        %v1193 = vrot.slane %v1192, 4
        %v1195 = vshll.u32 %v964, 16
        %v1197 = vrot.slane %v1195, 5
        %v1198 = vsel %vm968, %v1193, %v1197
        %v1199 = vshrl.u32 %v964, 16
        %v1201 = vrot.slane %v1199, 4
        %v1202 = vor.u32 %v1201, %v1197
        %v1203 = vrot.slane %v1202, 4
        %v1205 = vshll.u32 %v965, 16
        %v1207 = vrot.slane %v1205, 5
        %v1208 = vsel %vm968, %v1203, %v1207
        %vm1239 = vcmask 1042432
        %vm1240 = vcmask 1046532
        %vm1241 = vmor %vm1239, %vm1240
        %v1242 = vrot.slane %v936, 5
        %v1243 = vrot.slane %v1242, 4
        %v1244 = vrot.slane %v937, 5
        %v1245 = vsel %vm1241, %v1243, %v1244
        %v1246 = vrot.slane %v1244, 4
        %v1247 = vrot.slane %v938, 5
        %v1248 = vsel %vm1241, %v1246, %v1247
        %v1249 = vrot.slane %v939, 5
        %v1250 = vrot.slane %v1249, 4
        %v1251 = vrot.slane %v940, 5
        %v1252 = vsel %vm1241, %v1250, %v1251
        %v1253 = vrot.slane %v1251, 4
        %v1254 = vrot.slane %v941, 5
        %v1255 = vsel %vm1241, %v1253, %v1254
        %v1256 = vrot.slane %v942, 5
        %v1257 = vrot.slane %v1256, 4
        %v1258 = vrot.slane %v943, 5
        %v1259 = vsel %vm1241, %v1257, %v1258
        %v1260 = vrot.slane %v1258, 4
        %v1261 = vrot.slane %v944, 5
        %v1262 = vsel %vm1241, %v1260, %v1261
        %v1263 = vrot.slane %v945, 5
        %v1264 = vrot.slane %v1263, 4
        %v1265 = vrot.slane %v946, 5
        %v1266 = vsel %vm1241, %v1264, %v1265
        %v1267 = vrot.slane %v1265, 4
        %v1268 = vrot.slane %v947, 5
        %v1269 = vsel %vm1241, %v1267, %v1268
        %v1270 = vrot.slane %v948, 5
        %v1271 = vrot.slane %v1270, 4
        %v1272 = vrot.slane %v949, 5
        %v1273 = vsel %vm1241, %v1271, %v1272
        %v1274 = vrot.slane %v1272, 4
        %v1275 = vrot.slane %v950, 5
        %v1276 = vsel %vm1241, %v1274, %v1275
        %v1277 = vrot.slane %v951, 5
        %v1278 = vrot.slane %v1277, 4
        %v1279 = vrot.slane %v952, 5
        %v1280 = vsel %vm1241, %v1278, %v1279
        %v1281 = vrot.slane %v1279, 4
        %v1282 = vrot.slane %v953, 5
        %v1283 = vsel %vm1241, %v1281, %v1282
        %v1284 = vrot.slane %v954, 5
        %v1285 = vrot.slane %v1284, 4
        %v1286 = vrot.slane %v955, 5
        %v1287 = vsel %vm1241, %v1285, %v1286
        %v1288 = vrot.slane %v1286, 4
        %v1289 = vrot.slane %v956, 5
        %v1290 = vsel %vm1241, %v1288, %v1289
        %v1291 = vrot.slane %v957, 5
        %v1292 = vrot.slane %v1291, 4
        %v1293 = vrot.slane %v958, 5
        %v1294 = vsel %vm1241, %v1292, %v1293
        %v1295 = vrot.slane %v1293, 4
        %v1296 = vrot.slane %v959, 5
        %v1297 = vsel %vm1241, %v1295, %v1296
        %v1298 = vrot.slane %v960, 5
        %v1299 = vrot.slane %v1298, 4
        %v1300 = vrot.slane %v961, 5
        %v1301 = vsel %vm1241, %v1299, %v1300
        %v1302 = vrot.slane %v1300, 4
        %v1303 = vrot.slane %v962, 5
        %v1304 = vsel %vm1241, %v1302, %v1303
        %v1305 = vrot.slane %v963, 5
        %v1306 = vrot.slane %v1305, 4
        %v1307 = vrot.slane %v964, 5
        %v1308 = vsel %vm1241, %v1306, %v1307
        %v1309 = vrot.slane %v1307, 4
        %v1310 = vrot.slane %v965, 5
        %v1311 = vsel %vm1241, %v1309, %v1310
        %v1312 = vunpack.c.l.b16 %v936
        %v1313 = vunpack.c.l.b16 %v937
        %v1314 = vunpack.c.l.b16 %v939
        %v1315 = vunpack.c.l.b16 %v940
        %v1316 = vunpack.c.l.b16 %v942
        %v1317 = vunpack.c.l.b16 %v943
        %v1318 = vunpack.c.l.b16 %v945
        %v1319 = vunpack.c.l.b16 %v946
        %v1320 = vunpack.c.l.b16 %v948
        %v1321 = vunpack.c.l.b16 %v949
        %v1322 = vunpack.c.l.b16 %v951
        %v1323 = vunpack.c.l.b16 %v952
        %v1324 = vunpack.c.l.b16 %v954
        %v1325 = vunpack.c.l.b16 %v955
        %v1326 = vunpack.c.l.b16 %v957
        %v1327 = vunpack.c.l.b16 %v958
        %v1328 = vunpack.c.l.b16 %v960
        %v1329 = vunpack.c.l.b16 %v961
        %v1330 = vunpack.c.l.b16 %v963
        %v1331 = vunpack.c.l.b16 %v964
        %v1332 = vpack.c.b16 %v1313, %v1312
        %v1333 = vpack.c.b16 %v1315, %v1314
        %v1334 = vpack.c.b16 %v1317, %v1316
        %v1335 = vpack.c.b16 %v1319, %v1318
        %v1336 = vpack.c.b16 %v1321, %v1320
        %v1337 = vpack.c.b16 %v1323, %v1322
        %v1338 = vpack.c.b16 %v1325, %v1324
        %v1339 = vpack.c.b16 %v1327, %v1326
        %v1340 = vpack.c.b16 %v1329, %v1328
        %v1341 = vpack.c.b16 %v1331, %v1330
        %v1342 = vunpack.c.l.b16 %v982
        %v1343 = vunpack.c.l.b16 %v992
        %v1344 = vunpack.c.l.b16 %v1006
        %v1345 = vunpack.c.l.b16 %v1016
        %v1346 = vunpack.c.l.b16 %v1030
        %v1347 = vunpack.c.l.b16 %v1040
        %v1348 = vunpack.c.l.b16 %v1054
        %v1349 = vunpack.c.l.b16 %v1064
        %v1350 = vunpack.c.l.b16 %v1078
        %v1351 = vunpack.c.l.b16 %v1088
        %v1352 = vunpack.c.l.b16 %v1102
        %v1353 = vunpack.c.l.b16 %v1112
        %v1354 = vunpack.c.l.b16 %v1126
        %v1355 = vunpack.c.l.b16 %v1136
        %v1356 = vunpack.c.l.b16 %v1150
        %v1357 = vunpack.c.l.b16 %v1160
        %v1358 = vunpack.c.l.b16 %v1174
        %v1359 = vunpack.c.l.b16 %v1184
        %v1360 = vunpack.c.l.b16 %v1198
        %v1361 = vunpack.c.l.b16 %v1208
        %v1362 = vpack.c.b16 %v1343, %v1342
        %v1363 = vpack.c.b16 %v1345, %v1344
        %v1364 = vpack.c.b16 %v1347, %v1346
        %v1365 = vpack.c.b16 %v1349, %v1348
        %v1366 = vpack.c.b16 %v1351, %v1350
        %v1367 = vpack.c.b16 %v1353, %v1352
        %v1368 = vpack.c.b16 %v1355, %v1354
        %v1369 = vpack.c.b16 %v1357, %v1356
        %v1370 = vpack.c.b16 %v1359, %v1358
        %v1371 = vpack.c.b16 %v1361, %v1360
        %1372 = vrot.lane.b32.xlu0 %v1362, 64
        %v1373 = vpop.permute.xlu0 %1372
        %1374 = vrot.lane.b32.xlu0 %v1363, 64
        %v1375 = vpop.permute.xlu0 %1374
        %1376 = vrot.lane.b32.xlu0 %v1364, 64
        %v1377 = vpop.permute.xlu0 %1376
        %1378 = vrot.lane.b32.xlu0 %v1365, 64
        %v1379 = vpop.permute.xlu0 %1378
        %1380 = vrot.lane.b32.xlu0 %v1366, 64
        %v1381 = vpop.permute.xlu0 %1380
        %1382 = vrot.lane.b32.xlu0 %v1367, 64
        %v1383 = vpop.permute.xlu0 %1382
        %1384 = vrot.lane.b32.xlu0 %v1368, 64
        %v1385 = vpop.permute.xlu0 %1384
        %1386 = vrot.lane.b32.xlu0 %v1369, 64
        %v1387 = vpop.permute.xlu0 %1386
        %1388 = vrot.lane.b32.xlu0 %v1370, 64
        %v1389 = vpop.permute.xlu0 %1388
        %1390 = vrot.lane.b32.xlu0 %v1371, 64
        %v1391 = vpop.permute.xlu0 %1390
        %v1392 = vunpack.c.l.b16 %v1245
        %v1393 = vunpack.c.l.b16 %v1248
        %v1394 = vunpack.c.l.b16 %v1252
        %v1395 = vunpack.c.l.b16 %v1255
        %v1396 = vunpack.c.l.b16 %v1259
        %v1397 = vunpack.c.l.b16 %v1262
        %v1398 = vunpack.c.l.b16 %v1266
        %v1399 = vunpack.c.l.b16 %v1269
        %v1400 = vunpack.c.l.b16 %v1273
        %v1401 = vunpack.c.l.b16 %v1276
        %v1402 = vunpack.c.l.b16 %v1280
        %v1403 = vunpack.c.l.b16 %v1283
        %v1404 = vunpack.c.l.b16 %v1287
        %v1405 = vunpack.c.l.b16 %v1290
        %v1406 = vunpack.c.l.b16 %v1294
        %v1407 = vunpack.c.l.b16 %v1297
        %v1408 = vunpack.c.l.b16 %v1301
        %v1409 = vunpack.c.l.b16 %v1304
        %v1410 = vunpack.c.l.b16 %v1308
        %v1411 = vunpack.c.l.b16 %v1311
        %v1412 = vpack.c.b16 %v1393, %v1392
        %v1413 = vpack.c.b16 %v1395, %v1394
        %v1414 = vpack.c.b16 %v1397, %v1396
        %v1415 = vpack.c.b16 %v1399, %v1398
        %v1416 = vpack.c.b16 %v1401, %v1400
        %v1417 = vpack.c.b16 %v1403, %v1402
        %v1418 = vpack.c.b16 %v1405, %v1404
        %v1419 = vpack.c.b16 %v1407, %v1406
        %v1420 = vpack.c.b16 %v1409, %v1408
        %v1421 = vpack.c.b16 %v1411, %v1410
        %vm1422 = vcmask 523264
        %v1425 = vsel %vm1422, %v1332, %v1373
        %v1429 = vsel %vm1422, %v1333, %v1375
        %v1433 = vsel %vm1422, %v1334, %v1377
        %v1437 = vsel %vm1422, %v1335, %v1379
        %v1441 = vsel %vm1422, %v1336, %v1381
        %v1445 = vsel %vm1422, %v1337, %v1383
        %v1449 = vsel %vm1422, %v1338, %v1385
        %v1453 = vsel %vm1422, %v1339, %v1387
        %v1457 = vsel %vm1422, %v1340, %v1389
        %v1461 = vsel %vm1422, %v1341, %v1391
        %v1463 = vld [vmem:[%s1] sm:$0xf]
        %v1464 = vld [vmem:[%s1 + $0x4] sm:$0xf]
        %v1465 = vld [vmem:[%s1 + $0x8] sm:$0xf]
        %v1466 = vld [vmem:[%s1 + $0xc] sm:$0xf]
        %v1467 = vld [vmem:[%s1 + $0x10] sm:$0xf]
        %v1468 = vld [vmem:[%s1 + $0x14] sm:$0xf]
        %v1469 = vld [vmem:[%s1 + $0x18] sm:$0xf]
        %v1470 = vld [vmem:[%s1 + $0x1c] sm:$0xf]
        %v1471 = vld [vmem:[%s1 + $0x20] sm:$0xf]
        %v1472 = vld [vmem:[%s1 + $0x24] sm:$0xf]
        %v1473 = vld [vmem:[%s1 + $0x28] sm:$0xf]
        %v1474 = vld [vmem:[%s1 + $0x2c] sm:$0xf]
        %v1475 = vld [vmem:[%s1 + $0x30] sm:$0xf]
        %v1476 = vld [vmem:[%s1 + $0x34] sm:$0xf]
        %v1477 = vld [vmem:[%s1 + $0x38] sm:$0xf]
        %v1478 = vld [vmem:[%s1 + $0x3c] sm:$0xf]
        %v1479 = vld [vmem:[%s1 + $0x40] sm:$0xf]
        %v1480 = vld [vmem:[%s1 + $0x44] sm:$0xf]
        %v1481 = vld [vmem:[%s1 + $0x48] sm:$0xf]
        %v1482 = vld [vmem:[%s1 + $0x4c] sm:$0xf]
        %v1483 = vld [vmem:[%s1 + $0x50] sm:$0xf]
        %v1484 = vld [vmem:[%s1 + $0x54] sm:$0xf]
        %v1485 = vld [vmem:[%s1 + $0x58] sm:$0xf]
        %v1486 = vld [vmem:[%s1 + $0x5c] sm:$0xf]
        %s1487 = sadd.s32 %s267, 1
        %s1488 = smul.u32 %s1487, 3
        %s1489 = smul.addr %s1488, 4
        %s1490 = scalar_lea.vmem [#allocation2], %s1489
        %v1491 = vld [vmem:[%s1490] sm:$0xf]
        %v1492 = vld [vmem:[%s1490 + $0x4] sm:$0xf]
        %v1493 = vld [vmem:[%s1490 + $0x8] sm:$0x1]
        %v1494 = vld [vmem:[%s1490 + $0xc] sm:$0xf]
        %v1495 = vld [vmem:[%s1490 + $0x10] sm:$0xf]
        %v1496 = vld [vmem:[%s1490 + $0x14] sm:$0x1]
        %v1497 = vld [vmem:[%s1490 + $0x18] sm:$0xf]
        %v1498 = vld [vmem:[%s1490 + $0x1c] sm:$0xf]
        %v1499 = vld [vmem:[%s1490 + $0x20] sm:$0x1]
        %v1500 = vld [vmem:[%s1490 + $0x24] sm:$0xf]
        %v1501 = vld [vmem:[%s1490 + $0x28] sm:$0xf]
        %v1502 = vld [vmem:[%s1490 + $0x2c] sm:$0x1]
        %v1503 = vld [vmem:[%s1490 + $0x30] sm:$0xf]
        %v1504 = vld [vmem:[%s1490 + $0x34] sm:$0xf]
        %v1505 = vld [vmem:[%s1490 + $0x38] sm:$0x1]
        %v1506 = vld [vmem:[%s1490 + $0x3c] sm:$0xf]
        %v1507 = vld [vmem:[%s1490 + $0x40] sm:$0xf]
        %v1508 = vld [vmem:[%s1490 + $0x44] sm:$0x1]
        %v1509 = vld [vmem:[%s1490 + $0x48] sm:$0xf]
        %v1510 = vld [vmem:[%s1490 + $0x4c] sm:$0xf]
        %v1511 = vld [vmem:[%s1490 + $0x50] sm:$0x1]
        %v1512 = vld [vmem:[%s1490 + $0x54] sm:$0xf]
        %v1513 = vld [vmem:[%s1490 + $0x58] sm:$0xf]
        %v1514 = vld [vmem:[%s1490 + $0x5c] sm:$0x1]
        %v1515 = vld [vmem:[%s1490 + $0x60] sm:$0xf]
        %v1516 = vld [vmem:[%s1490 + $0x64] sm:$0xf]
        %v1517 = vld [vmem:[%s1490 + $0x68] sm:$0x1]
        %v1518 = vld [vmem:[%s1490 + $0x6c] sm:$0xf]
        %v1519 = vld [vmem:[%s1490 + $0x70] sm:$0xf]
        %v1520 = vld [vmem:[%s1490 + $0x74] sm:$0x1]
        %v1522 = vshrl.u32 %v1491, 16
        %v1524 = vrot.slane %v1522, 4
        %v1525 = vshll.u32 %v1491, 16
        %v1527 = vrot.slane %v1525, 5
        %v1528 = vor.u32 %v1524, %v1527
        %v1529 = vrot.slane %v1528, 4
        %v1531 = vshll.u32 %v1492, 16
        %v1533 = vrot.slane %v1531, 5
        %v1534 = vsel %vm968, %v1529, %v1533
        %v1535 = vshrl.u32 %v1492, 16
        %v1537 = vrot.slane %v1535, 4
        %v1538 = vor.u32 %v1537, %v1533
        %v1539 = vrot.slane %v1538, 4
        %v1541 = vshll.u32 %v1493, 16
        %v1543 = vrot.slane %v1541, 5
        %v1544 = vsel %vm968, %v1539, %v1543
        %v1546 = vshrl.u32 %v1494, 16
        %v1548 = vrot.slane %v1546, 4
        %v1549 = vshll.u32 %v1494, 16
        %v1551 = vrot.slane %v1549, 5
        %v1552 = vor.u32 %v1548, %v1551
        %v1553 = vrot.slane %v1552, 4
        %v1555 = vshll.u32 %v1495, 16
        %v1557 = vrot.slane %v1555, 5
        %v1558 = vsel %vm968, %v1553, %v1557
        %v1559 = vshrl.u32 %v1495, 16
        %v1561 = vrot.slane %v1559, 4
        %v1562 = vor.u32 %v1561, %v1557
        %v1563 = vrot.slane %v1562, 4
        %v1565 = vshll.u32 %v1496, 16
        %v1567 = vrot.slane %v1565, 5
        %v1568 = vsel %vm968, %v1563, %v1567
        %v1570 = vshrl.u32 %v1497, 16
        %v1572 = vrot.slane %v1570, 4
        %v1573 = vshll.u32 %v1497, 16
        %v1575 = vrot.slane %v1573, 5
        %v1576 = vor.u32 %v1572, %v1575
        %v1577 = vrot.slane %v1576, 4
        %v1579 = vshll.u32 %v1498, 16
        %v1581 = vrot.slane %v1579, 5
        %v1582 = vsel %vm968, %v1577, %v1581
        %v1583 = vshrl.u32 %v1498, 16
        %v1585 = vrot.slane %v1583, 4
        %v1586 = vor.u32 %v1585, %v1581
        %v1587 = vrot.slane %v1586, 4
        %v1589 = vshll.u32 %v1499, 16
        %v1591 = vrot.slane %v1589, 5
        %v1592 = vsel %vm968, %v1587, %v1591
        %v1594 = vshrl.u32 %v1500, 16
        %v1596 = vrot.slane %v1594, 4
        %v1597 = vshll.u32 %v1500, 16
        %v1599 = vrot.slane %v1597, 5
        %v1600 = vor.u32 %v1596, %v1599
        %v1601 = vrot.slane %v1600, 4
        %v1603 = vshll.u32 %v1501, 16
        %v1605 = vrot.slane %v1603, 5
        %v1606 = vsel %vm968, %v1601, %v1605
        %v1607 = vshrl.u32 %v1501, 16
        %v1609 = vrot.slane %v1607, 4
        %v1610 = vor.u32 %v1609, %v1605
        %v1611 = vrot.slane %v1610, 4
        %v1613 = vshll.u32 %v1502, 16
        %v1615 = vrot.slane %v1613, 5
        %v1616 = vsel %vm968, %v1611, %v1615
        %v1618 = vshrl.u32 %v1503, 16
        %v1620 = vrot.slane %v1618, 4
        %v1621 = vshll.u32 %v1503, 16
        %v1623 = vrot.slane %v1621, 5
        %v1624 = vor.u32 %v1620, %v1623
        %v1625 = vrot.slane %v1624, 4
        %v1627 = vshll.u32 %v1504, 16
        %v1629 = vrot.slane %v1627, 5
        %v1630 = vsel %vm968, %v1625, %v1629
        %v1631 = vshrl.u32 %v1504, 16
        %v1633 = vrot.slane %v1631, 4
        %v1634 = vor.u32 %v1633, %v1629
        %v1635 = vrot.slane %v1634, 4
        %v1637 = vshll.u32 %v1505, 16
        %v1639 = vrot.slane %v1637, 5
        %v1640 = vsel %vm968, %v1635, %v1639
        %v1642 = vshrl.u32 %v1506, 16
        %v1644 = vrot.slane %v1642, 4
        %v1645 = vshll.u32 %v1506, 16
        %v1647 = vrot.slane %v1645, 5
        %v1648 = vor.u32 %v1644, %v1647
        %v1649 = vrot.slane %v1648, 4
        %v1651 = vshll.u32 %v1507, 16
        %v1653 = vrot.slane %v1651, 5
        %v1654 = vsel %vm968, %v1649, %v1653
        %v1655 = vshrl.u32 %v1507, 16
        %v1657 = vrot.slane %v1655, 4
        %v1658 = vor.u32 %v1657, %v1653
        %v1659 = vrot.slane %v1658, 4
        %v1661 = vshll.u32 %v1508, 16
        %v1663 = vrot.slane %v1661, 5
        %v1664 = vsel %vm968, %v1659, %v1663
        %v1666 = vshrl.u32 %v1509, 16
        %v1668 = vrot.slane %v1666, 4
        %v1669 = vshll.u32 %v1509, 16
        %v1671 = vrot.slane %v1669, 5
        %v1672 = vor.u32 %v1668, %v1671
        %v1673 = vrot.slane %v1672, 4
        %v1675 = vshll.u32 %v1510, 16
        %v1677 = vrot.slane %v1675, 5
        %v1678 = vsel %vm968, %v1673, %v1677
        %v1679 = vshrl.u32 %v1510, 16
        %v1681 = vrot.slane %v1679, 4
        %v1682 = vor.u32 %v1681, %v1677
        %v1683 = vrot.slane %v1682, 4
        %v1685 = vshll.u32 %v1511, 16
        %v1687 = vrot.slane %v1685, 5
        %v1688 = vsel %vm968, %v1683, %v1687
        %v1690 = vshrl.u32 %v1512, 16
        %v1692 = vrot.slane %v1690, 4
        %v1693 = vshll.u32 %v1512, 16
        %v1695 = vrot.slane %v1693, 5
        %v1696 = vor.u32 %v1692, %v1695
        %v1697 = vrot.slane %v1696, 4
        %v1699 = vshll.u32 %v1513, 16
        %v1701 = vrot.slane %v1699, 5
        %v1702 = vsel %vm968, %v1697, %v1701
        %v1703 = vshrl.u32 %v1513, 16
        %v1705 = vrot.slane %v1703, 4
        %v1706 = vor.u32 %v1705, %v1701
        %v1707 = vrot.slane %v1706, 4
        %v1709 = vshll.u32 %v1514, 16
        %v1711 = vrot.slane %v1709, 5
        %v1712 = vsel %vm968, %v1707, %v1711
        %v1714 = vshrl.u32 %v1515, 16
        %v1716 = vrot.slane %v1714, 4
        %v1717 = vshll.u32 %v1515, 16
        %v1719 = vrot.slane %v1717, 5
        %v1720 = vor.u32 %v1716, %v1719
        %v1721 = vrot.slane %v1720, 4
        %v1723 = vshll.u32 %v1516, 16
        %v1725 = vrot.slane %v1723, 5
        %v1726 = vsel %vm968, %v1721, %v1725
        %v1727 = vshrl.u32 %v1516, 16
        %v1729 = vrot.slane %v1727, 4
        %v1730 = vor.u32 %v1729, %v1725
        %v1731 = vrot.slane %v1730, 4
        %v1733 = vshll.u32 %v1517, 16
        %v1735 = vrot.slane %v1733, 5
        %v1736 = vsel %vm968, %v1731, %v1735
        %v1738 = vshrl.u32 %v1518, 16
        %v1740 = vrot.slane %v1738, 4
        %v1741 = vshll.u32 %v1518, 16
        %v1743 = vrot.slane %v1741, 5
        %v1744 = vor.u32 %v1740, %v1743
        %v1745 = vrot.slane %v1744, 4
        %v1747 = vshll.u32 %v1519, 16
        %v1749 = vrot.slane %v1747, 5
        %v1750 = vsel %vm968, %v1745, %v1749
        %v1751 = vshrl.u32 %v1519, 16
        %v1753 = vrot.slane %v1751, 4
        %v1754 = vor.u32 %v1753, %v1749
        %v1755 = vrot.slane %v1754, 4
        %v1757 = vshll.u32 %v1520, 16
        %v1759 = vrot.slane %v1757, 5
        %v1760 = vsel %vm968, %v1755, %v1759
        %v1791 = vrot.slane %v1491, 5
        %v1792 = vrot.slane %v1791, 4
        %v1793 = vrot.slane %v1492, 5
        %v1794 = vsel %vm1241, %v1792, %v1793
        %v1795 = vrot.slane %v1793, 4
        %v1796 = vrot.slane %v1493, 5
        %v1797 = vsel %vm1241, %v1795, %v1796
        %v1798 = vrot.slane %v1494, 5
        %v1799 = vrot.slane %v1798, 4
        %v1800 = vrot.slane %v1495, 5
        %v1801 = vsel %vm1241, %v1799, %v1800
        %v1802 = vrot.slane %v1800, 4
        %v1803 = vrot.slane %v1496, 5
        %v1804 = vsel %vm1241, %v1802, %v1803
        %v1805 = vrot.slane %v1497, 5
        %v1806 = vrot.slane %v1805, 4
        %v1807 = vrot.slane %v1498, 5
        %v1808 = vsel %vm1241, %v1806, %v1807
        %v1809 = vrot.slane %v1807, 4
        %v1810 = vrot.slane %v1499, 5
        %v1811 = vsel %vm1241, %v1809, %v1810
        %v1812 = vrot.slane %v1500, 5
        %v1813 = vrot.slane %v1812, 4
        %v1814 = vrot.slane %v1501, 5
        %v1815 = vsel %vm1241, %v1813, %v1814
        %v1816 = vrot.slane %v1814, 4
        %v1817 = vrot.slane %v1502, 5
        %v1818 = vsel %vm1241, %v1816, %v1817
        %v1819 = vrot.slane %v1503, 5
        %v1820 = vrot.slane %v1819, 4
        %v1821 = vrot.slane %v1504, 5
        %v1822 = vsel %vm1241, %v1820, %v1821
        %v1823 = vrot.slane %v1821, 4
        %v1824 = vrot.slane %v1505, 5
        %v1825 = vsel %vm1241, %v1823, %v1824
        %v1826 = vrot.slane %v1506, 5
        %v1827 = vrot.slane %v1826, 4
        %v1828 = vrot.slane %v1507, 5
        %v1829 = vsel %vm1241, %v1827, %v1828
        %v1830 = vrot.slane %v1828, 4
        %v1831 = vrot.slane %v1508, 5
        %v1832 = vsel %vm1241, %v1830, %v1831
        %v1833 = vrot.slane %v1509, 5
        %v1834 = vrot.slane %v1833, 4
        %v1835 = vrot.slane %v1510, 5
        %v1836 = vsel %vm1241, %v1834, %v1835
        %v1837 = vrot.slane %v1835, 4
        %v1838 = vrot.slane %v1511, 5
        %v1839 = vsel %vm1241, %v1837, %v1838
        %v1840 = vrot.slane %v1512, 5
        %v1841 = vrot.slane %v1840, 4
        %v1842 = vrot.slane %v1513, 5
        %v1843 = vsel %vm1241, %v1841, %v1842
        %v1844 = vrot.slane %v1842, 4
        %v1845 = vrot.slane %v1514, 5
        %v1846 = vsel %vm1241, %v1844, %v1845
        %v1847 = vrot.slane %v1515, 5
        %v1848 = vrot.slane %v1847, 4
        %v1849 = vrot.slane %v1516, 5
        %v1850 = vsel %vm1241, %v1848, %v1849
        %v1851 = vrot.slane %v1849, 4
        %v1852 = vrot.slane %v1517, 5
        %v1853 = vsel %vm1241, %v1851, %v1852
        %v1854 = vrot.slane %v1518, 5
        %v1855 = vrot.slane %v1854, 4
        %v1856 = vrot.slane %v1519, 5
        %v1857 = vsel %vm1241, %v1855, %v1856
        %v1858 = vrot.slane %v1856, 4
        %v1859 = vrot.slane %v1520, 5
        %v1860 = vsel %vm1241, %v1858, %v1859
        %v1861 = vunpack.c.l.b16 %v1491
        %v1862 = vunpack.c.l.b16 %v1492
        %v1863 = vunpack.c.l.b16 %v1494
        %v1864 = vunpack.c.l.b16 %v1495
        %v1865 = vunpack.c.l.b16 %v1497
        %v1866 = vunpack.c.l.b16 %v1498
        %v1867 = vunpack.c.l.b16 %v1500
        %v1868 = vunpack.c.l.b16 %v1501
        %v1869 = vunpack.c.l.b16 %v1503
        %v1870 = vunpack.c.l.b16 %v1504
        %v1871 = vunpack.c.l.b16 %v1506
        %v1872 = vunpack.c.l.b16 %v1507
        %v1873 = vunpack.c.l.b16 %v1509
        %v1874 = vunpack.c.l.b16 %v1510
        %v1875 = vunpack.c.l.b16 %v1512
        %v1876 = vunpack.c.l.b16 %v1513
        %v1877 = vunpack.c.l.b16 %v1515
        %v1878 = vunpack.c.l.b16 %v1516
        %v1879 = vunpack.c.l.b16 %v1518
        %v1880 = vunpack.c.l.b16 %v1519
        %v1881 = vpack.c.b16 %v1862, %v1861
        %v1882 = vpack.c.b16 %v1864, %v1863
        %v1883 = vpack.c.b16 %v1866, %v1865
        %v1884 = vpack.c.b16 %v1868, %v1867
        %v1885 = vpack.c.b16 %v1870, %v1869
        %v1886 = vpack.c.b16 %v1872, %v1871
        %v1887 = vpack.c.b16 %v1874, %v1873
        %v1888 = vpack.c.b16 %v1876, %v1875
        %v1889 = vpack.c.b16 %v1878, %v1877
        %v1890 = vpack.c.b16 %v1880, %v1879
        %v1891 = vunpack.c.l.b16 %v1534
        %v1892 = vunpack.c.l.b16 %v1544
        %v1893 = vunpack.c.l.b16 %v1558
        %v1894 = vunpack.c.l.b16 %v1568
        %v1895 = vunpack.c.l.b16 %v1582
        %v1896 = vunpack.c.l.b16 %v1592
        %v1897 = vunpack.c.l.b16 %v1606
        %v1898 = vunpack.c.l.b16 %v1616
        %v1899 = vunpack.c.l.b16 %v1630
        %v1900 = vunpack.c.l.b16 %v1640
        %v1901 = vunpack.c.l.b16 %v1654
        %v1902 = vunpack.c.l.b16 %v1664
        %v1903 = vunpack.c.l.b16 %v1678
        %v1904 = vunpack.c.l.b16 %v1688
        %v1905 = vunpack.c.l.b16 %v1702
        %v1906 = vunpack.c.l.b16 %v1712
        %v1907 = vunpack.c.l.b16 %v1726
        %v1908 = vunpack.c.l.b16 %v1736
        %v1909 = vunpack.c.l.b16 %v1750
        %v1910 = vunpack.c.l.b16 %v1760
        %v1911 = vpack.c.b16 %v1892, %v1891
        %v1912 = vpack.c.b16 %v1894, %v1893
        %v1913 = vpack.c.b16 %v1896, %v1895
        %v1914 = vpack.c.b16 %v1898, %v1897
        %v1915 = vpack.c.b16 %v1900, %v1899
        %v1916 = vpack.c.b16 %v1902, %v1901
        %v1917 = vpack.c.b16 %v1904, %v1903
        %v1918 = vpack.c.b16 %v1906, %v1905
        %v1919 = vpack.c.b16 %v1908, %v1907
        %v1920 = vpack.c.b16 %v1910, %v1909
        %1921 = vrot.lane.b32.xlu0 %v1911, 64
        %v1922 = vpop.permute.xlu0 %1921
        %1923 = vrot.lane.b32.xlu0 %v1912, 64
        %v1924 = vpop.permute.xlu0 %1923
        %1925 = vrot.lane.b32.xlu0 %v1913, 64
        %v1926 = vpop.permute.xlu0 %1925
        %1927 = vrot.lane.b32.xlu0 %v1914, 64
        %v1928 = vpop.permute.xlu0 %1927
        %1929 = vrot.lane.b32.xlu0 %v1915, 64
        %v1930 = vpop.permute.xlu0 %1929
        %1931 = vrot.lane.b32.xlu0 %v1916, 64
        %v1932 = vpop.permute.xlu0 %1931
        %1933 = vrot.lane.b32.xlu0 %v1917, 64
        %v1934 = vpop.permute.xlu0 %1933
        %1935 = vrot.lane.b32.xlu0 %v1918, 64
        %v1936 = vpop.permute.xlu0 %1935
        %1937 = vrot.lane.b32.xlu0 %v1919, 64
        %v1938 = vpop.permute.xlu0 %1937
        %1939 = vrot.lane.b32.xlu0 %v1920, 64
        %v1940 = vpop.permute.xlu0 %1939
        %v1941 = vunpack.c.l.b16 %v1794
        %v1942 = vunpack.c.l.b16 %v1797
        %v1943 = vunpack.c.l.b16 %v1801
        %v1944 = vunpack.c.l.b16 %v1804
        %v1945 = vunpack.c.l.b16 %v1808
        %v1946 = vunpack.c.l.b16 %v1811
        %v1947 = vunpack.c.l.b16 %v1815
        %v1948 = vunpack.c.l.b16 %v1818
        %v1949 = vunpack.c.l.b16 %v1822
        %v1950 = vunpack.c.l.b16 %v1825
        %v1951 = vunpack.c.l.b16 %v1829
        %v1952 = vunpack.c.l.b16 %v1832
        %v1953 = vunpack.c.l.b16 %v1836
        %v1954 = vunpack.c.l.b16 %v1839
        %v1955 = vunpack.c.l.b16 %v1843
        %v1956 = vunpack.c.l.b16 %v1846
        %v1957 = vunpack.c.l.b16 %v1850
        %v1958 = vunpack.c.l.b16 %v1853
        %v1959 = vunpack.c.l.b16 %v1857
        %v1960 = vunpack.c.l.b16 %v1860
        %v1961 = vpack.c.b16 %v1942, %v1941
        %v1962 = vpack.c.b16 %v1944, %v1943
        %v1963 = vpack.c.b16 %v1946, %v1945
        %v1964 = vpack.c.b16 %v1948, %v1947
        %v1965 = vpack.c.b16 %v1950, %v1949
        %v1966 = vpack.c.b16 %v1952, %v1951
        %v1967 = vpack.c.b16 %v1954, %v1953
        %v1968 = vpack.c.b16 %v1956, %v1955
        %v1969 = vpack.c.b16 %v1958, %v1957
        %v1970 = vpack.c.b16 %v1960, %v1959
        %v1973 = vsel %vm1422, %v1881, %v1922
        %v1977 = vsel %vm1422, %v1882, %v1924
        %v1981 = vsel %vm1422, %v1883, %v1926
        %v1985 = vsel %vm1422, %v1884, %v1928
        %v1989 = vsel %vm1422, %v1885, %v1930
        %v1993 = vsel %vm1422, %v1886, %v1932
        %v1997 = vsel %vm1422, %v1887, %v1934
        %v2001 = vsel %vm1422, %v1888, %v1936
        %v2005 = vsel %vm1422, %v1889, %v1938
        %v2009 = vsel %vm1422, %v1890, %v1940
        %s2011 = scalar_lea.vmem %s1, 96
        %v2012 = vld [vmem:[%s2011] sm:$0xf]
        %v2013 = vld [vmem:[%s2011 + $0x4] sm:$0xf]
        %v2014 = vld [vmem:[%s2011 + $0x8] sm:$0xf]
        %v2015 = vld [vmem:[%s2011 + $0xc] sm:$0xf]
        %v2016 = vld [vmem:[%s2011 + $0x10] sm:$0xf]
        %v2017 = vld [vmem:[%s2011 + $0x14] sm:$0xf]
        %v2018 = vld [vmem:[%s2011 + $0x18] sm:$0xf]
        %v2019 = vld [vmem:[%s2011 + $0x1c] sm:$0xf]
        %v2020 = vld [vmem:[%s2011 + $0x20] sm:$0xf]
        %v2021 = vld [vmem:[%s2011 + $0x24] sm:$0xf]
        %v2022 = vld [vmem:[%s2011 + $0x28] sm:$0xf]
        %v2023 = vld [vmem:[%s2011 + $0x2c] sm:$0xf]
        %v2024 = vld [vmem:[%s2011 + $0x30] sm:$0xf]
        %v2025 = vld [vmem:[%s2011 + $0x34] sm:$0xf]
        %v2026 = vld [vmem:[%s2011 + $0x38] sm:$0xf]
        %v2027 = vld [vmem:[%s2011 + $0x3c] sm:$0xf]
        %v2028 = vld [vmem:[%s2011 + $0x40] sm:$0xf]
        %v2029 = vld [vmem:[%s2011 + $0x44] sm:$0xf]
        %v2030 = vld [vmem:[%s2011 + $0x48] sm:$0xf]
        %v2031 = vld [vmem:[%s2011 + $0x4c] sm:$0xf]
        %v2032 = vld [vmem:[%s2011 + $0x50] sm:$0xf]
        %v2033 = vld [vmem:[%s2011 + $0x54] sm:$0xf]
        %v2034 = vld [vmem:[%s2011 + $0x58] sm:$0xf]
        %v2035 = vld [vmem:[%s2011 + $0x5c] sm:$0xf]
        %v2060 = vunpack.c.l.b16 %v2012
        %v2061 = vunpack.c.l.b16 %v2013
        %v2062 = vunpack.c.l.b16 %v2014
        %v2063 = vunpack.c.l.b16 %v2015
        %v2064 = vunpack.c.l.b16 %v2016
        %v2065 = vunpack.c.l.b16 %v2017
        %v2066 = vunpack.c.l.b16 %v2018
        %v2067 = vunpack.c.l.b16 %v2019
        %v2068 = vunpack.c.l.b16 %v2020
        %v2069 = vunpack.c.l.b16 %v2021
        %v2070 = vunpack.c.l.b16 %v2022
        %v2071 = vunpack.c.l.b16 %v2023
        %v2072 = vunpack.c.l.b16 %v2024
        %v2073 = vunpack.c.l.b16 %v2025
        %v2074 = vunpack.c.l.b16 %v2026
        %v2075 = vunpack.c.l.b16 %v2027
        %v2076 = vunpack.c.l.b16 %v2028
        %v2077 = vunpack.c.l.b16 %v2029
        %v2078 = vunpack.c.l.b16 %v2030
        %v2079 = vunpack.c.l.b16 %v2031
        %v2080 = vunpack.c.l.b16 %v2032
        %v2081 = vunpack.c.l.b16 %v2033
        %v2082 = vunpack.c.l.b16 %v2034
        %v2083 = vunpack.c.l.b16 %v2035
        %v2084 = vpack.c.b16 %v2061, %v2060
        %v2085 = vpack.c.b16 %v2063, %v2062
        %v2086 = vpack.c.b16 %v2065, %v2064
        %v2087 = vpack.c.b16 %v2067, %v2066
        %v2088 = vpack.c.b16 %v2069, %v2068
        %v2089 = vpack.c.b16 %v2071, %v2070
        %v2090 = vpack.c.b16 %v2073, %v2072
        %v2091 = vpack.c.b16 %v2075, %v2074
        %v2092 = vpack.c.b16 %v2077, %v2076
        %v2093 = vpack.c.b16 %v2079, %v2078
        %v2094 = vpack.c.b16 %v2081, %v2080
        %v2095 = vpack.c.b16 %v2083, %v2082
        %v2109 = vsel %vm1422, %v1961, 0
        %v2112 = vsel %vm1422, %v1962, 0
        %v2115 = vsel %vm1422, %v1963, 0
        %v2118 = vsel %vm1422, %v1964, 0
        %v2121 = vsel %vm1422, %v1965, 0
        %v2124 = vsel %vm1422, %v1966, 0
        %v2127 = vsel %vm1422, %v1967, 0
        %v2130 = vsel %vm1422, %v1968, 0
        %v2133 = vsel %vm1422, %v1969, 0
        %v2136 = vsel %vm1422, %v1970, 0
        %2138 = vmatprep.subr.bf16.mxu0 0
        %2139 = vmatpush1.bf16.msra.mxu0 %v2091
        %2140 = vmatprep.subr.bf16.mxu0 0
        %2141 = vmatpush1.bf16.msra.mxu0 %v2090
        %2142 = vmatprep.subr.bf16.mxu0 0
        %2143 = vmatpush1.bf16.msra.mxu0 %v2089
        %2144 = vmatprep.subr.bf16.mxu0 0
        %2145 = vmatpush1.bf16.msra.mxu0 %v2088
        %2146 = vmatprep.subr.bf16.mxu0 0
        %2147 = vmatpush1.bf16.msra.mxu0 %v2087
        %2148 = vmatprep.subr.bf16.mxu0 0
        %2149 = vmatpush1.bf16.msra.mxu0 %v2086
        %2150 = vmatprep.subr.bf16.mxu0 0
        %2151 = vmatpush1.bf16.msra.mxu0 %v2085
        %2152 = vmatprep.subr.bf16.mxu0 0
        %2153 = vmatpush1.bf16.msra.mxu0 %v2084
        %2154 = vmatprep.subr.bf16.mxu0 0
        %2155 = vmatpush2.bf16.msra.mxu0 0
        %2156 = vmatprep.subr.bf16.mxu0 0
        %2157 = vmatpush2.bf16.msra.mxu0 0
        %2158 = vmatprep.subr.bf16.mxu0 0
        %2159 = vmatpush2.bf16.msra.mxu0 0
        %2160 = vmatprep.subr.bf16.mxu0 0
        %2161 = vmatpush2.bf16.msra.mxu0 0
        %2162 = vmatprep.subr.bf16.mxu0 0
        %2163 = vmatpush2.bf16.msra.mxu0 %v2095
        %2164 = vmatprep.subr.bf16.mxu0 0
        %2165 = vmatpush2.bf16.msra.mxu0 %v2094
        %2166 = vmatprep.subr.bf16.mxu0 0
        %2167 = vmatpush2.bf16.msra.mxu0 %v2093
        %2168 = vmatprep.subr.bf16.mxu0 0
        %2169 = vmatpush2.bf16.msra.mxu0 %v2092
        %2170 = vmatprep.mubr.bf16.mxu0 %v2109
        %2171 = vmatmul.mubr.bf16.gmra.mxu0 %v1973
        %v2172 = vpop.f32.mrf.mxu0
        %v2173 = vadd.f32 0.0, %v2172
        %v2174 = vpop.f32.mrf.mxu0
        %v2175 = vpop.f32.mrf.mxu0
        %v2176 = vadd.f32 0.0, %v2175
        %v2177 = vpop.f32.mrf.mxu0
        %2178 = vmatprep.mubr.bf16.mxu0 %v2112
        %2179 = vmatmul.mubr.bf16.gmra.mxu0 %v1977
        %v2180 = vpop.f32.mrf.mxu0
        %v2181 = vadd.f32 0.0, %v2180
        %v2182 = vpop.f32.mrf.mxu0
        %v2183 = vpop.f32.mrf.mxu0
        %v2184 = vadd.f32 0.0, %v2183
        %v2185 = vpop.f32.mrf.mxu0
        %2186 = vmatprep.mubr.bf16.mxu0 %v2115
        %2187 = vmatmul.mubr.bf16.gmra.mxu0 %v1981
        %v2188 = vpop.f32.mrf.mxu0
        %v2189 = vadd.f32 0.0, %v2188
        %v2190 = vpop.f32.mrf.mxu0
        %v2191 = vpop.f32.mrf.mxu0
        %v2192 = vadd.f32 0.0, %v2191
        %v2193 = vpop.f32.mrf.mxu0
        %2194 = vmatprep.mubr.bf16.mxu0 %v2118
        %2195 = vmatmul.mubr.bf16.gmra.mxu0 %v1985
        %v2196 = vpop.f32.mrf.mxu0
        %v2197 = vadd.f32 0.0, %v2196
        %v2198 = vpop.f32.mrf.mxu0
        %v2199 = vpop.f32.mrf.mxu0
        %v2200 = vadd.f32 0.0, %v2199
        %v2201 = vpop.f32.mrf.mxu0
        %2202 = vmatprep.mubr.bf16.mxu0 %v2121
        %2203 = vmatmul.mubr.bf16.gmra.mxu0 %v1989
        %v2204 = vpop.f32.mrf.mxu0
        %v2205 = vadd.f32 0.0, %v2204
        %v2206 = vpop.f32.mrf.mxu0
        %v2207 = vpop.f32.mrf.mxu0
        %v2208 = vadd.f32 0.0, %v2207
        %v2209 = vpop.f32.mrf.mxu0
        %2210 = vmatprep.mubr.bf16.mxu0 %v2124
        %2211 = vmatmul.mubr.bf16.gmra.mxu0 %v1993
        %v2212 = vpop.f32.mrf.mxu0
        %v2213 = vadd.f32 0.0, %v2212
        %v2214 = vpop.f32.mrf.mxu0
        %v2215 = vpop.f32.mrf.mxu0
        %v2216 = vadd.f32 0.0, %v2215
        %v2217 = vpop.f32.mrf.mxu0
        %2218 = vmatprep.mubr.bf16.mxu0 %v2127
        %2219 = vmatmul.mubr.bf16.gmra.mxu0 %v1997
        %v2220 = vpop.f32.mrf.mxu0
        %v2221 = vadd.f32 0.0, %v2220
        %v2222 = vpop.f32.mrf.mxu0
        %v2223 = vpop.f32.mrf.mxu0
        %v2224 = vadd.f32 0.0, %v2223
        %v2225 = vpop.f32.mrf.mxu0
        %2226 = vmatprep.mubr.bf16.mxu0 %v2130
        %2227 = vmatmul.mubr.bf16.gmra.mxu0 %v2001
        %v2228 = vpop.f32.mrf.mxu0
        %v2229 = vadd.f32 0.0, %v2228
        %v2230 = vpop.f32.mrf.mxu0
        %v2231 = vpop.f32.mrf.mxu0
        %v2232 = vadd.f32 0.0, %v2231
        %v2233 = vpop.f32.mrf.mxu0
        %2234 = vmatprep.mubr.bf16.mxu0 %v2133
        %2235 = vmatmul.mubr.bf16.gmra.mxu0 %v2005
        %v2236 = vpop.f32.mrf.mxu0
        %v2237 = vadd.f32 0.0, %v2236
        %v2238 = vpop.f32.mrf.mxu0
        %v2239 = vpop.f32.mrf.mxu0
        %v2240 = vadd.f32 0.0, %v2239
        %v2241 = vpop.f32.mrf.mxu0
        %2242 = vmatprep.mubr.bf16.mxu0 %v2136
        %2243 = vmatmul.mubr.bf16.gmra.mxu0 %v2009
        %v2244 = vpop.f32.mrf.mxu0
        %v2245 = vadd.f32 0.0, %v2244
        %v2246 = vpop.f32.mrf.mxu0
        %v2247 = vpop.f32.mrf.mxu0
        %v2248 = vadd.f32 0.0, %v2247
        %v2249 = vpop.f32.mrf.mxu0
        %2250 = vdwg.mxu0
        %v2275 = vunpack.c.l.b16 %v1463
        %v2276 = vunpack.c.l.b16 %v1464
        %v2277 = vunpack.c.l.b16 %v1465
        %v2278 = vunpack.c.l.b16 %v1466
        %v2279 = vunpack.c.l.b16 %v1467
        %v2280 = vunpack.c.l.b16 %v1468
        %v2281 = vunpack.c.l.b16 %v1469
        %v2282 = vunpack.c.l.b16 %v1470
        %v2283 = vunpack.c.l.b16 %v1471
        %v2284 = vunpack.c.l.b16 %v1472
        %v2285 = vunpack.c.l.b16 %v1473
        %v2286 = vunpack.c.l.b16 %v1474
        %v2287 = vunpack.c.l.b16 %v1475
        %v2288 = vunpack.c.l.b16 %v1476
        %v2289 = vunpack.c.l.b16 %v1477
        %v2290 = vunpack.c.l.b16 %v1478
        %v2291 = vunpack.c.l.b16 %v1479
        %v2292 = vunpack.c.l.b16 %v1480
        %v2293 = vunpack.c.l.b16 %v1481
        %v2294 = vunpack.c.l.b16 %v1482
        %v2295 = vunpack.c.l.b16 %v1483
        %v2296 = vunpack.c.l.b16 %v1484
        %v2297 = vunpack.c.l.b16 %v1485
        %v2298 = vunpack.c.l.b16 %v1486
        %v2299 = vpack.c.b16 %v2276, %v2275
        %v2300 = vpack.c.b16 %v2278, %v2277
        %v2301 = vpack.c.b16 %v2280, %v2279
        %v2302 = vpack.c.b16 %v2282, %v2281
        %v2303 = vpack.c.b16 %v2284, %v2283
        %v2304 = vpack.c.b16 %v2286, %v2285
        %v2305 = vpack.c.b16 %v2288, %v2287
        %v2306 = vpack.c.b16 %v2290, %v2289
        %v2307 = vpack.c.b16 %v2292, %v2291
        %v2308 = vpack.c.b16 %v2294, %v2293
        %v2309 = vpack.c.b16 %v2296, %v2295
        %v2310 = vpack.c.b16 %v2298, %v2297
        %v2324 = vsel %vm1422, %v1412, 0
        %v2327 = vsel %vm1422, %v1413, 0
        %v2330 = vsel %vm1422, %v1414, 0
        %v2333 = vsel %vm1422, %v1415, 0
        %v2336 = vsel %vm1422, %v1416, 0
        %v2339 = vsel %vm1422, %v1417, 0
        %v2342 = vsel %vm1422, %v1418, 0
        %v2345 = vsel %vm1422, %v1419, 0
        %v2348 = vsel %vm1422, %v1420, 0
        %v2351 = vsel %vm1422, %v1421, 0
        %2353 = vmatprep.subr.bf16.mxu0 0
        %2354 = vmatpush1.bf16.msra.mxu0 %v2306
        %2355 = vmatprep.subr.bf16.mxu0 0
        %2356 = vmatpush1.bf16.msra.mxu0 %v2305
        %2357 = vmatprep.subr.bf16.mxu0 0
        %2358 = vmatpush1.bf16.msra.mxu0 %v2304
        %2359 = vmatprep.subr.bf16.mxu0 0
        %2360 = vmatpush1.bf16.msra.mxu0 %v2303
        %2361 = vmatprep.subr.bf16.mxu0 0
        %2362 = vmatpush1.bf16.msra.mxu0 %v2302
        %2363 = vmatprep.subr.bf16.mxu0 0
        %2364 = vmatpush1.bf16.msra.mxu0 %v2301
        %2365 = vmatprep.subr.bf16.mxu0 0
        %2366 = vmatpush1.bf16.msra.mxu0 %v2300
        %2367 = vmatprep.subr.bf16.mxu0 0
        %2368 = vmatpush1.bf16.msra.mxu0 %v2299
        %2369 = vmatprep.subr.bf16.mxu0 0
        %2370 = vmatpush2.bf16.msra.mxu0 0
        %2371 = vmatprep.subr.bf16.mxu0 0
        %2372 = vmatpush2.bf16.msra.mxu0 0
        %2373 = vmatprep.subr.bf16.mxu0 0
        %2374 = vmatpush2.bf16.msra.mxu0 0
        %2375 = vmatprep.subr.bf16.mxu0 0
        %2376 = vmatpush2.bf16.msra.mxu0 0
        %2377 = vmatprep.subr.bf16.mxu0 0
        %2378 = vmatpush2.bf16.msra.mxu0 %v2310
        %2379 = vmatprep.subr.bf16.mxu0 0
        %2380 = vmatpush2.bf16.msra.mxu0 %v2309
        %2381 = vmatprep.subr.bf16.mxu0 0
        %2382 = vmatpush2.bf16.msra.mxu0 %v2308
        %2383 = vmatprep.subr.bf16.mxu0 0
        %2384 = vmatpush2.bf16.msra.mxu0 %v2307
        %2385 = vmatprep.mubr.bf16.mxu0 %v2324
        %2386 = vmatmul.mubr.bf16.gmra.mxu0 %v1425
        %v2387 = vpop.f32.mrf.mxu0
        %v2388 = vadd.f32 %v2173, %v2387
        %v2389 = vpop.f32.mrf.mxu0
        %v2390 = vpop.f32.mrf.mxu0
        %v2391 = vadd.f32 %v2176, %v2390
        %v2392 = vpop.f32.mrf.mxu0
        %2393 = vmatprep.mubr.bf16.mxu0 %v2327
        %2394 = vmatmul.mubr.bf16.gmra.mxu0 %v1429
        %v2395 = vpop.f32.mrf.mxu0
        %v2396 = vadd.f32 %v2181, %v2395
        %v2397 = vpop.f32.mrf.mxu0
        %v2398 = vpop.f32.mrf.mxu0
        %v2399 = vadd.f32 %v2184, %v2398
        %v2400 = vpop.f32.mrf.mxu0
        %2401 = vmatprep.mubr.bf16.mxu0 %v2330
        %2402 = vmatmul.mubr.bf16.gmra.mxu0 %v1433
        %v2403 = vpop.f32.mrf.mxu0
        %v2404 = vadd.f32 %v2189, %v2403
        %v2405 = vpop.f32.mrf.mxu0
        %v2406 = vpop.f32.mrf.mxu0
        %v2407 = vadd.f32 %v2192, %v2406
        %v2408 = vpop.f32.mrf.mxu0
        %2409 = vmatprep.mubr.bf16.mxu0 %v2333
        %2410 = vmatmul.mubr.bf16.gmra.mxu0 %v1437
        %v2411 = vpop.f32.mrf.mxu0
        %v2412 = vadd.f32 %v2197, %v2411
        %v2413 = vpop.f32.mrf.mxu0
        %v2414 = vpop.f32.mrf.mxu0
        %v2415 = vadd.f32 %v2200, %v2414
        %v2416 = vpop.f32.mrf.mxu0
        %2417 = vmatprep.mubr.bf16.mxu0 %v2336
        %2418 = vmatmul.mubr.bf16.gmra.mxu0 %v1441
        %v2419 = vpop.f32.mrf.mxu0
        %v2420 = vadd.f32 %v2205, %v2419
        %v2421 = vpop.f32.mrf.mxu0
        %v2422 = vpop.f32.mrf.mxu0
        %v2423 = vadd.f32 %v2208, %v2422
        %v2424 = vpop.f32.mrf.mxu0
        %2425 = vmatprep.mubr.bf16.mxu0 %v2339
        %2426 = vmatmul.mubr.bf16.gmra.mxu0 %v1445
        %v2427 = vpop.f32.mrf.mxu0
        %v2428 = vadd.f32 %v2213, %v2427
        %v2429 = vpop.f32.mrf.mxu0
        %v2430 = vpop.f32.mrf.mxu0
        %v2431 = vadd.f32 %v2216, %v2430
        %v2432 = vpop.f32.mrf.mxu0
        %2433 = vmatprep.mubr.bf16.mxu0 %v2342
        %2434 = vmatmul.mubr.bf16.gmra.mxu0 %v1449
        %v2435 = vpop.f32.mrf.mxu0
        %v2436 = vadd.f32 %v2221, %v2435
        %v2437 = vpop.f32.mrf.mxu0
        %v2438 = vpop.f32.mrf.mxu0
        %v2439 = vadd.f32 %v2224, %v2438
        %v2440 = vpop.f32.mrf.mxu0
        %2441 = vmatprep.mubr.bf16.mxu0 %v2345
        %2442 = vmatmul.mubr.bf16.gmra.mxu0 %v1453
        %v2443 = vpop.f32.mrf.mxu0
        %v2444 = vadd.f32 %v2229, %v2443
        %v2445 = vpop.f32.mrf.mxu0
        %v2446 = vpop.f32.mrf.mxu0
        %v2447 = vadd.f32 %v2232, %v2446
        %v2448 = vpop.f32.mrf.mxu0
        %2449 = vmatprep.mubr.bf16.mxu0 %v2348
        %2450 = vmatmul.mubr.bf16.gmra.mxu0 %v1457
        %v2451 = vpop.f32.mrf.mxu0
        %v2452 = vadd.f32 %v2237, %v2451
        %v2453 = vpop.f32.mrf.mxu0
        %v2454 = vpop.f32.mrf.mxu0
        %v2455 = vadd.f32 %v2240, %v2454
        %v2456 = vpop.f32.mrf.mxu0
        %2457 = vmatprep.mubr.bf16.mxu0 %v2351
        %2458 = vmatmul.mubr.bf16.gmra.mxu0 %v1461
        %v2459 = vpop.f32.mrf.mxu0
        %v2460 = vadd.f32 %v2245, %v2459
        %v2461 = vpop.f32.mrf.mxu0
        %v2462 = vpop.f32.mrf.mxu0
        %v2463 = vadd.f32 %v2248, %v2462
        %v2464 = vpop.f32.mrf.mxu0
        %2465 = vdwg.mxu0
        %s2466 = sadd.s32 %s267, 2
        %s2467 = smul.u32 %s2466, 3
        %s2468 = smul.addr %s2467, 4
        %s2469 = scalar_lea.vmem [#allocation2], %s2468
        %v2470 = vld [vmem:[%s2469] sm:$0xf]
        %v2471 = vld [vmem:[%s2469 + $0x4] sm:$0xf]
        %v2472 = vld [vmem:[%s2469 + $0x8] sm:$0x1]
        %v2473 = vld [vmem:[%s2469 + $0xc] sm:$0xf]
        %v2474 = vld [vmem:[%s2469 + $0x10] sm:$0xf]
        %v2475 = vld [vmem:[%s2469 + $0x14] sm:$0x1]
        %v2476 = vld [vmem:[%s2469 + $0x18] sm:$0xf]
        %v2477 = vld [vmem:[%s2469 + $0x1c] sm:$0xf]
        %v2478 = vld [vmem:[%s2469 + $0x20] sm:$0x1]
        %v2479 = vld [vmem:[%s2469 + $0x24] sm:$0xf]
        %v2480 = vld [vmem:[%s2469 + $0x28] sm:$0xf]
        %v2481 = vld [vmem:[%s2469 + $0x2c] sm:$0x1]
        %v2482 = vld [vmem:[%s2469 + $0x30] sm:$0xf]
        %v2483 = vld [vmem:[%s2469 + $0x34] sm:$0xf]
        %v2484 = vld [vmem:[%s2469 + $0x38] sm:$0x1]
        %v2485 = vld [vmem:[%s2469 + $0x3c] sm:$0xf]
        %v2486 = vld [vmem:[%s2469 + $0x40] sm:$0xf]
        %v2487 = vld [vmem:[%s2469 + $0x44] sm:$0x1]
        %v2488 = vld [vmem:[%s2469 + $0x48] sm:$0xf]
        %v2489 = vld [vmem:[%s2469 + $0x4c] sm:$0xf]
        %v2490 = vld [vmem:[%s2469 + $0x50] sm:$0x1]
        %v2491 = vld [vmem:[%s2469 + $0x54] sm:$0xf]
        %v2492 = vld [vmem:[%s2469 + $0x58] sm:$0xf]
        %v2493 = vld [vmem:[%s2469 + $0x5c] sm:$0x1]
        %v2494 = vld [vmem:[%s2469 + $0x60] sm:$0xf]
        %v2495 = vld [vmem:[%s2469 + $0x64] sm:$0xf]
        %v2496 = vld [vmem:[%s2469 + $0x68] sm:$0x1]
        %v2497 = vld [vmem:[%s2469 + $0x6c] sm:$0xf]
        %v2498 = vld [vmem:[%s2469 + $0x70] sm:$0xf]
        %v2499 = vld [vmem:[%s2469 + $0x74] sm:$0x1]
        %v2501 = vshrl.u32 %v2470, 16
        %v2503 = vrot.slane %v2501, 4
        %v2504 = vshll.u32 %v2470, 16
        %v2506 = vrot.slane %v2504, 5
        %v2507 = vor.u32 %v2503, %v2506
        %v2508 = vrot.slane %v2507, 4
        %v2510 = vshll.u32 %v2471, 16
        %v2512 = vrot.slane %v2510, 5
        %v2513 = vsel %vm968, %v2508, %v2512
        %v2514 = vshrl.u32 %v2471, 16
        %v2516 = vrot.slane %v2514, 4
        %v2517 = vor.u32 %v2516, %v2512
        %v2518 = vrot.slane %v2517, 4
        %v2520 = vshll.u32 %v2472, 16
        %v2522 = vrot.slane %v2520, 5
        %v2523 = vsel %vm968, %v2518, %v2522
        %v2525 = vshrl.u32 %v2473, 16
        %v2527 = vrot.slane %v2525, 4
        %v2528 = vshll.u32 %v2473, 16
        %v2530 = vrot.slane %v2528, 5
        %v2531 = vor.u32 %v2527, %v2530
        %v2532 = vrot.slane %v2531, 4
        %v2534 = vshll.u32 %v2474, 16
        %v2536 = vrot.slane %v2534, 5
        %v2537 = vsel %vm968, %v2532, %v2536
        %v2538 = vshrl.u32 %v2474, 16
        %v2540 = vrot.slane %v2538, 4
        %v2541 = vor.u32 %v2540, %v2536
        %v2542 = vrot.slane %v2541, 4
        %v2544 = vshll.u32 %v2475, 16
        %v2546 = vrot.slane %v2544, 5
        %v2547 = vsel %vm968, %v2542, %v2546
        %v2549 = vshrl.u32 %v2476, 16
        %v2551 = vrot.slane %v2549, 4
        %v2552 = vshll.u32 %v2476, 16
        %v2554 = vrot.slane %v2552, 5
        %v2555 = vor.u32 %v2551, %v2554
        %v2556 = vrot.slane %v2555, 4
        %v2558 = vshll.u32 %v2477, 16
        %v2560 = vrot.slane %v2558, 5
        %v2561 = vsel %vm968, %v2556, %v2560
        %v2562 = vshrl.u32 %v2477, 16
        %v2564 = vrot.slane %v2562, 4
        %v2565 = vor.u32 %v2564, %v2560
        %v2566 = vrot.slane %v2565, 4
        %v2568 = vshll.u32 %v2478, 16
        %v2570 = vrot.slane %v2568, 5
        %v2571 = vsel %vm968, %v2566, %v2570
        %v2573 = vshrl.u32 %v2479, 16
        %v2575 = vrot.slane %v2573, 4
        %v2576 = vshll.u32 %v2479, 16
        %v2578 = vrot.slane %v2576, 5
        %v2579 = vor.u32 %v2575, %v2578
        %v2580 = vrot.slane %v2579, 4
        %v2582 = vshll.u32 %v2480, 16
        %v2584 = vrot.slane %v2582, 5
        %v2585 = vsel %vm968, %v2580, %v2584
        %v2586 = vshrl.u32 %v2480, 16
        %v2588 = vrot.slane %v2586, 4
        %v2589 = vor.u32 %v2588, %v2584
        %v2590 = vrot.slane %v2589, 4
        %v2592 = vshll.u32 %v2481, 16
        %v2594 = vrot.slane %v2592, 5
        %v2595 = vsel %vm968, %v2590, %v2594
        %v2597 = vshrl.u32 %v2482, 16
        %v2599 = vrot.slane %v2597, 4
        %v2600 = vshll.u32 %v2482, 16
        %v2602 = vrot.slane %v2600, 5
        %v2603 = vor.u32 %v2599, %v2602
        %v2604 = vrot.slane %v2603, 4
        %v2606 = vshll.u32 %v2483, 16
        %v2608 = vrot.slane %v2606, 5
        %v2609 = vsel %vm968, %v2604, %v2608
        %v2610 = vshrl.u32 %v2483, 16
        %v2612 = vrot.slane %v2610, 4
        %v2613 = vor.u32 %v2612, %v2608
        %v2614 = vrot.slane %v2613, 4
        %v2616 = vshll.u32 %v2484, 16
        %v2618 = vrot.slane %v2616, 5
        %v2619 = vsel %vm968, %v2614, %v2618
        %v2621 = vshrl.u32 %v2485, 16
        %v2623 = vrot.slane %v2621, 4
        %v2624 = vshll.u32 %v2485, 16
        %v2626 = vrot.slane %v2624, 5
        %v2627 = vor.u32 %v2623, %v2626
        %v2628 = vrot.slane %v2627, 4
        %v2630 = vshll.u32 %v2486, 16
        %v2632 = vrot.slane %v2630, 5
        %v2633 = vsel %vm968, %v2628, %v2632
        %v2634 = vshrl.u32 %v2486, 16
        %v2636 = vrot.slane %v2634, 4
        %v2637 = vor.u32 %v2636, %v2632
        %v2638 = vrot.slane %v2637, 4
        %v2640 = vshll.u32 %v2487, 16
        %v2642 = vrot.slane %v2640, 5
        %v2643 = vsel %vm968, %v2638, %v2642
        %v2645 = vshrl.u32 %v2488, 16
        %v2647 = vrot.slane %v2645, 4
        %v2648 = vshll.u32 %v2488, 16
        %v2650 = vrot.slane %v2648, 5
        %v2651 = vor.u32 %v2647, %v2650
        %v2652 = vrot.slane %v2651, 4
        %v2654 = vshll.u32 %v2489, 16
        %v2656 = vrot.slane %v2654, 5
        %v2657 = vsel %vm968, %v2652, %v2656
        %v2658 = vshrl.u32 %v2489, 16
        %v2660 = vrot.slane %v2658, 4
        %v2661 = vor.u32 %v2660, %v2656
        %v2662 = vrot.slane %v2661, 4
        %v2664 = vshll.u32 %v2490, 16
        %v2666 = vrot.slane %v2664, 5
        %v2667 = vsel %vm968, %v2662, %v2666
        %v2669 = vshrl.u32 %v2491, 16
        %v2671 = vrot.slane %v2669, 4
        %v2672 = vshll.u32 %v2491, 16
        %v2674 = vrot.slane %v2672, 5
        %v2675 = vor.u32 %v2671, %v2674
        %v2676 = vrot.slane %v2675, 4
        %v2678 = vshll.u32 %v2492, 16
        %v2680 = vrot.slane %v2678, 5
        %v2681 = vsel %vm968, %v2676, %v2680
        %v2682 = vshrl.u32 %v2492, 16
        %v2684 = vrot.slane %v2682, 4
        %v2685 = vor.u32 %v2684, %v2680
        %v2686 = vrot.slane %v2685, 4
        %v2688 = vshll.u32 %v2493, 16
        %v2690 = vrot.slane %v2688, 5
        %v2691 = vsel %vm968, %v2686, %v2690
        %v2693 = vshrl.u32 %v2494, 16
        %v2695 = vrot.slane %v2693, 4
        %v2696 = vshll.u32 %v2494, 16
        %v2698 = vrot.slane %v2696, 5
        %v2699 = vor.u32 %v2695, %v2698
        %v2700 = vrot.slane %v2699, 4
        %v2702 = vshll.u32 %v2495, 16
        %v2704 = vrot.slane %v2702, 5
        %v2705 = vsel %vm968, %v2700, %v2704
        %v2706 = vshrl.u32 %v2495, 16
        %v2708 = vrot.slane %v2706, 4
        %v2709 = vor.u32 %v2708, %v2704
        %v2710 = vrot.slane %v2709, 4
        %v2712 = vshll.u32 %v2496, 16
        %v2714 = vrot.slane %v2712, 5
        %v2715 = vsel %vm968, %v2710, %v2714
        %v2717 = vshrl.u32 %v2497, 16
        %v2719 = vrot.slane %v2717, 4
        %v2720 = vshll.u32 %v2497, 16
        %v2722 = vrot.slane %v2720, 5
        %v2723 = vor.u32 %v2719, %v2722
        %v2724 = vrot.slane %v2723, 4
        %v2726 = vshll.u32 %v2498, 16
        %v2728 = vrot.slane %v2726, 5
        %v2729 = vsel %vm968, %v2724, %v2728
        %v2730 = vshrl.u32 %v2498, 16
        %v2732 = vrot.slane %v2730, 4
        %v2733 = vor.u32 %v2732, %v2728
        %v2734 = vrot.slane %v2733, 4
        %v2736 = vshll.u32 %v2499, 16
        %v2738 = vrot.slane %v2736, 5
        %v2739 = vsel %vm968, %v2734, %v2738
        %v2770 = vrot.slane %v2470, 5
        %v2771 = vrot.slane %v2770, 4
        %v2772 = vrot.slane %v2471, 5
        %v2773 = vsel %vm1241, %v2771, %v2772
        %v2774 = vrot.slane %v2772, 4
        %v2775 = vrot.slane %v2472, 5
        %v2776 = vsel %vm1241, %v2774, %v2775
        %v2777 = vrot.slane %v2473, 5
        %v2778 = vrot.slane %v2777, 4
        %v2779 = vrot.slane %v2474, 5
        %v2780 = vsel %vm1241, %v2778, %v2779
        %v2781 = vrot.slane %v2779, 4
        %v2782 = vrot.slane %v2475, 5
        %v2783 = vsel %vm1241, %v2781, %v2782
        %v2784 = vrot.slane %v2476, 5
        %v2785 = vrot.slane %v2784, 4
        %v2786 = vrot.slane %v2477, 5
        %v2787 = vsel %vm1241, %v2785, %v2786
        %v2788 = vrot.slane %v2786, 4
        %v2789 = vrot.slane %v2478, 5
        %v2790 = vsel %vm1241, %v2788, %v2789
        %v2791 = vrot.slane %v2479, 5
        %v2792 = vrot.slane %v2791, 4
        %v2793 = vrot.slane %v2480, 5
        %v2794 = vsel %vm1241, %v2792, %v2793
        %v2795 = vrot.slane %v2793, 4
        %v2796 = vrot.slane %v2481, 5
        %v2797 = vsel %vm1241, %v2795, %v2796
        %v2798 = vrot.slane %v2482, 5
        %v2799 = vrot.slane %v2798, 4
        %v2800 = vrot.slane %v2483, 5
        %v2801 = vsel %vm1241, %v2799, %v2800
        %v2802 = vrot.slane %v2800, 4
        %v2803 = vrot.slane %v2484, 5
        %v2804 = vsel %vm1241, %v2802, %v2803
        %v2805 = vrot.slane %v2485, 5
        %v2806 = vrot.slane %v2805, 4
        %v2807 = vrot.slane %v2486, 5
        %v2808 = vsel %vm1241, %v2806, %v2807
        %v2809 = vrot.slane %v2807, 4
        %v2810 = vrot.slane %v2487, 5
        %v2811 = vsel %vm1241, %v2809, %v2810
        %v2812 = vrot.slane %v2488, 5
        %v2813 = vrot.slane %v2812, 4
        %v2814 = vrot.slane %v2489, 5
        %v2815 = vsel %vm1241, %v2813, %v2814
        %v2816 = vrot.slane %v2814, 4
        %v2817 = vrot.slane %v2490, 5
        %v2818 = vsel %vm1241, %v2816, %v2817
        %v2819 = vrot.slane %v2491, 5
        %v2820 = vrot.slane %v2819, 4
        %v2821 = vrot.slane %v2492, 5
        %v2822 = vsel %vm1241, %v2820, %v2821
        %v2823 = vrot.slane %v2821, 4
        %v2824 = vrot.slane %v2493, 5
        %v2825 = vsel %vm1241, %v2823, %v2824
        %v2826 = vrot.slane %v2494, 5
        %v2827 = vrot.slane %v2826, 4
        %v2828 = vrot.slane %v2495, 5
        %v2829 = vsel %vm1241, %v2827, %v2828
        %v2830 = vrot.slane %v2828, 4
        %v2831 = vrot.slane %v2496, 5
        %v2832 = vsel %vm1241, %v2830, %v2831
        %v2833 = vrot.slane %v2497, 5
        %v2834 = vrot.slane %v2833, 4
        %v2835 = vrot.slane %v2498, 5
        %v2836 = vsel %vm1241, %v2834, %v2835
        %v2837 = vrot.slane %v2835, 4
        %v2838 = vrot.slane %v2499, 5
        %v2839 = vsel %vm1241, %v2837, %v2838
        %v2840 = vunpack.c.l.b16 %v2470
        %v2841 = vunpack.c.l.b16 %v2471
        %v2842 = vunpack.c.l.b16 %v2473
        %v2843 = vunpack.c.l.b16 %v2474
        %v2844 = vunpack.c.l.b16 %v2476
        %v2845 = vunpack.c.l.b16 %v2477
        %v2846 = vunpack.c.l.b16 %v2479
        %v2847 = vunpack.c.l.b16 %v2480
        %v2848 = vunpack.c.l.b16 %v2482
        %v2849 = vunpack.c.l.b16 %v2483
        %v2850 = vunpack.c.l.b16 %v2485
        %v2851 = vunpack.c.l.b16 %v2486
        %v2852 = vunpack.c.l.b16 %v2488
        %v2853 = vunpack.c.l.b16 %v2489
        %v2854 = vunpack.c.l.b16 %v2491
        %v2855 = vunpack.c.l.b16 %v2492
        %v2856 = vunpack.c.l.b16 %v2494
        %v2857 = vunpack.c.l.b16 %v2495
        %v2858 = vunpack.c.l.b16 %v2497
        %v2859 = vunpack.c.l.b16 %v2498
        %v2860 = vpack.c.b16 %v2841, %v2840
        %v2861 = vpack.c.b16 %v2843, %v2842
        %v2862 = vpack.c.b16 %v2845, %v2844
        %v2863 = vpack.c.b16 %v2847, %v2846
        %v2864 = vpack.c.b16 %v2849, %v2848
        %v2865 = vpack.c.b16 %v2851, %v2850
        %v2866 = vpack.c.b16 %v2853, %v2852
        %v2867 = vpack.c.b16 %v2855, %v2854
        %v2868 = vpack.c.b16 %v2857, %v2856
        %v2869 = vpack.c.b16 %v2859, %v2858
        %v2870 = vunpack.c.l.b16 %v2513
        %v2871 = vunpack.c.l.b16 %v2523
        %v2872 = vunpack.c.l.b16 %v2537
        %v2873 = vunpack.c.l.b16 %v2547
        %v2874 = vunpack.c.l.b16 %v2561
        %v2875 = vunpack.c.l.b16 %v2571
        %v2876 = vunpack.c.l.b16 %v2585
        %v2877 = vunpack.c.l.b16 %v2595
        %v2878 = vunpack.c.l.b16 %v2609
        %v2879 = vunpack.c.l.b16 %v2619
        %v2880 = vunpack.c.l.b16 %v2633
        %v2881 = vunpack.c.l.b16 %v2643
        %v2882 = vunpack.c.l.b16 %v2657
        %v2883 = vunpack.c.l.b16 %v2667
        %v2884 = vunpack.c.l.b16 %v2681
        %v2885 = vunpack.c.l.b16 %v2691
        %v2886 = vunpack.c.l.b16 %v2705
        %v2887 = vunpack.c.l.b16 %v2715
        %v2888 = vunpack.c.l.b16 %v2729
        %v2889 = vunpack.c.l.b16 %v2739
        %v2890 = vpack.c.b16 %v2871, %v2870
        %v2891 = vpack.c.b16 %v2873, %v2872
        %v2892 = vpack.c.b16 %v2875, %v2874
        %v2893 = vpack.c.b16 %v2877, %v2876
        %v2894 = vpack.c.b16 %v2879, %v2878
        %v2895 = vpack.c.b16 %v2881, %v2880
        %v2896 = vpack.c.b16 %v2883, %v2882
        %v2897 = vpack.c.b16 %v2885, %v2884
        %v2898 = vpack.c.b16 %v2887, %v2886
        %v2899 = vpack.c.b16 %v2889, %v2888
        %2900 = vrot.lane.b32.xlu0 %v2890, 64
        %v2901 = vpop.permute.xlu0 %2900
        %2902 = vrot.lane.b32.xlu0 %v2891, 64
        %v2903 = vpop.permute.xlu0 %2902
        %2904 = vrot.lane.b32.xlu0 %v2892, 64
        %v2905 = vpop.permute.xlu0 %2904
        %2906 = vrot.lane.b32.xlu0 %v2893, 64
        %v2907 = vpop.permute.xlu0 %2906
        %2908 = vrot.lane.b32.xlu0 %v2894, 64
        %v2909 = vpop.permute.xlu0 %2908
        %2910 = vrot.lane.b32.xlu0 %v2895, 64
        %v2911 = vpop.permute.xlu0 %2910
        %2912 = vrot.lane.b32.xlu0 %v2896, 64
        %v2913 = vpop.permute.xlu0 %2912
        %2914 = vrot.lane.b32.xlu0 %v2897, 64
        %v2915 = vpop.permute.xlu0 %2914
        %2916 = vrot.lane.b32.xlu0 %v2898, 64
        %v2917 = vpop.permute.xlu0 %2916
        %2918 = vrot.lane.b32.xlu0 %v2899, 64
        %v2919 = vpop.permute.xlu0 %2918
        %v2920 = vunpack.c.l.b16 %v2773
        %v2921 = vunpack.c.l.b16 %v2776
        %v2922 = vunpack.c.l.b16 %v2780
        %v2923 = vunpack.c.l.b16 %v2783
        %v2924 = vunpack.c.l.b16 %v2787
        %v2925 = vunpack.c.l.b16 %v2790
        %v2926 = vunpack.c.l.b16 %v2794
        %v2927 = vunpack.c.l.b16 %v2797
        %v2928 = vunpack.c.l.b16 %v2801
        %v2929 = vunpack.c.l.b16 %v2804
        %v2930 = vunpack.c.l.b16 %v2808
        %v2931 = vunpack.c.l.b16 %v2811
        %v2932 = vunpack.c.l.b16 %v2815
        %v2933 = vunpack.c.l.b16 %v2818
        %v2934 = vunpack.c.l.b16 %v2822
        %v2935 = vunpack.c.l.b16 %v2825
        %v2936 = vunpack.c.l.b16 %v2829
        %v2937 = vunpack.c.l.b16 %v2832
        %v2938 = vunpack.c.l.b16 %v2836
        %v2939 = vunpack.c.l.b16 %v2839
        %v2940 = vpack.c.b16 %v2921, %v2920
        %v2941 = vpack.c.b16 %v2923, %v2922
        %v2942 = vpack.c.b16 %v2925, %v2924
        %v2943 = vpack.c.b16 %v2927, %v2926
        %v2944 = vpack.c.b16 %v2929, %v2928
        %v2945 = vpack.c.b16 %v2931, %v2930
        %v2946 = vpack.c.b16 %v2933, %v2932
        %v2947 = vpack.c.b16 %v2935, %v2934
        %v2948 = vpack.c.b16 %v2937, %v2936
        %v2949 = vpack.c.b16 %v2939, %v2938
        %v2952 = vsel %vm1422, %v2860, %v2901
        %v2956 = vsel %vm1422, %v2861, %v2903
        %v2960 = vsel %vm1422, %v2862, %v2905
        %v2964 = vsel %vm1422, %v2863, %v2907
        %v2968 = vsel %vm1422, %v2864, %v2909
        %v2972 = vsel %vm1422, %v2865, %v2911
        %v2976 = vsel %vm1422, %v2866, %v2913
        %v2980 = vsel %vm1422, %v2867, %v2915
        %v2984 = vsel %vm1422, %v2868, %v2917
        %v2988 = vsel %vm1422, %v2869, %v2919
        %s2990 = scalar_lea.vmem %s1, 192
        %v2991 = vld [vmem:[%s2990] sm:$0xf]
        %v2992 = vld [vmem:[%s2990 + $0x4] sm:$0xf]
        %v2993 = vld [vmem:[%s2990 + $0x8] sm:$0xf]
        %v2994 = vld [vmem:[%s2990 + $0xc] sm:$0xf]
        %v2995 = vld [vmem:[%s2990 + $0x10] sm:$0xf]
        %v2996 = vld [vmem:[%s2990 + $0x14] sm:$0xf]
        %v2997 = vld [vmem:[%s2990 + $0x18] sm:$0xf]
        %v2998 = vld [vmem:[%s2990 + $0x1c] sm:$0xf]
        %v2999 = vld [vmem:[%s2990 + $0x20] sm:$0xf]
        %v3000 = vld [vmem:[%s2990 + $0x24] sm:$0xf]
        %v3001 = vld [vmem:[%s2990 + $0x28] sm:$0xf]
        %v3002 = vld [vmem:[%s2990 + $0x2c] sm:$0xf]
        %v3003 = vld [vmem:[%s2990 + $0x30] sm:$0xf]
        %v3004 = vld [vmem:[%s2990 + $0x34] sm:$0xf]
        %v3005 = vld [vmem:[%s2990 + $0x38] sm:$0xf]
        %v3006 = vld [vmem:[%s2990 + $0x3c] sm:$0xf]
        %v3007 = vld [vmem:[%s2990 + $0x40] sm:$0xf]
        %v3008 = vld [vmem:[%s2990 + $0x44] sm:$0xf]
        %v3009 = vld [vmem:[%s2990 + $0x48] sm:$0xf]
        %v3010 = vld [vmem:[%s2990 + $0x4c] sm:$0xf]
        %v3011 = vld [vmem:[%s2990 + $0x50] sm:$0xf]
        %v3012 = vld [vmem:[%s2990 + $0x54] sm:$0xf]
        %v3013 = vld [vmem:[%s2990 + $0x58] sm:$0xf]
        %v3014 = vld [vmem:[%s2990 + $0x5c] sm:$0xf]
        %v3039 = vunpack.c.l.b16 %v2991
        %v3040 = vunpack.c.l.b16 %v2992
        %v3041 = vunpack.c.l.b16 %v2993
        %v3042 = vunpack.c.l.b16 %v2994
        %v3043 = vunpack.c.l.b16 %v2995
        %v3044 = vunpack.c.l.b16 %v2996
        %v3045 = vunpack.c.l.b16 %v2997
        %v3046 = vunpack.c.l.b16 %v2998
        %v3047 = vunpack.c.l.b16 %v2999
        %v3048 = vunpack.c.l.b16 %v3000
        %v3049 = vunpack.c.l.b16 %v3001
        %v3050 = vunpack.c.l.b16 %v3002
        %v3051 = vunpack.c.l.b16 %v3003
        %v3052 = vunpack.c.l.b16 %v3004
        %v3053 = vunpack.c.l.b16 %v3005
        %v3054 = vunpack.c.l.b16 %v3006
        %v3055 = vunpack.c.l.b16 %v3007
        %v3056 = vunpack.c.l.b16 %v3008
        %v3057 = vunpack.c.l.b16 %v3009
        %v3058 = vunpack.c.l.b16 %v3010
        %v3059 = vunpack.c.l.b16 %v3011
        %v3060 = vunpack.c.l.b16 %v3012
        %v3061 = vunpack.c.l.b16 %v3013
        %v3062 = vunpack.c.l.b16 %v3014
        %v3063 = vpack.c.b16 %v3040, %v3039
        %v3064 = vpack.c.b16 %v3042, %v3041
        %v3065 = vpack.c.b16 %v3044, %v3043
        %v3066 = vpack.c.b16 %v3046, %v3045
        %v3067 = vpack.c.b16 %v3048, %v3047
        %v3068 = vpack.c.b16 %v3050, %v3049
        %v3069 = vpack.c.b16 %v3052, %v3051
        %v3070 = vpack.c.b16 %v3054, %v3053
        %v3071 = vpack.c.b16 %v3056, %v3055
        %v3072 = vpack.c.b16 %v3058, %v3057
        %v3073 = vpack.c.b16 %v3060, %v3059
        %v3074 = vpack.c.b16 %v3062, %v3061
        %v3088 = vsel %vm1422, %v2940, 0
        %v3091 = vsel %vm1422, %v2941, 0
        %v3094 = vsel %vm1422, %v2942, 0
        %v3097 = vsel %vm1422, %v2943, 0
        %v3100 = vsel %vm1422, %v2944, 0
        %v3103 = vsel %vm1422, %v2945, 0
        %v3106 = vsel %vm1422, %v2946, 0
        %v3109 = vsel %vm1422, %v2947, 0
        %v3112 = vsel %vm1422, %v2948, 0
        %v3115 = vsel %vm1422, %v2949, 0
        %3117 = vmatprep.subr.bf16.mxu0 0
        %3118 = vmatpush1.bf16.msra.mxu0 %v3070
        %3119 = vmatprep.subr.bf16.mxu0 0
        %3120 = vmatpush1.bf16.msra.mxu0 %v3069
        %3121 = vmatprep.subr.bf16.mxu0 0
        %3122 = vmatpush1.bf16.msra.mxu0 %v3068
        %3123 = vmatprep.subr.bf16.mxu0 0
        %3124 = vmatpush1.bf16.msra.mxu0 %v3067
        %3125 = vmatprep.subr.bf16.mxu0 0
        %3126 = vmatpush1.bf16.msra.mxu0 %v3066
        %3127 = vmatprep.subr.bf16.mxu0 0
        %3128 = vmatpush1.bf16.msra.mxu0 %v3065
        %3129 = vmatprep.subr.bf16.mxu0 0
        %3130 = vmatpush1.bf16.msra.mxu0 %v3064
        %3131 = vmatprep.subr.bf16.mxu0 0
        %3132 = vmatpush1.bf16.msra.mxu0 %v3063
        %3133 = vmatprep.subr.bf16.mxu0 0
        %3134 = vmatpush2.bf16.msra.mxu0 0
        %3135 = vmatprep.subr.bf16.mxu0 0
        %3136 = vmatpush2.bf16.msra.mxu0 0
        %3137 = vmatprep.subr.bf16.mxu0 0
        %3138 = vmatpush2.bf16.msra.mxu0 0
        %3139 = vmatprep.subr.bf16.mxu0 0
        %3140 = vmatpush2.bf16.msra.mxu0 0
        %3141 = vmatprep.subr.bf16.mxu0 0
        %3142 = vmatpush2.bf16.msra.mxu0 %v3074
        %3143 = vmatprep.subr.bf16.mxu0 0
        %3144 = vmatpush2.bf16.msra.mxu0 %v3073
        %3145 = vmatprep.subr.bf16.mxu0 0
        %3146 = vmatpush2.bf16.msra.mxu0 %v3072
        %3147 = vmatprep.subr.bf16.mxu0 0
        %3148 = vmatpush2.bf16.msra.mxu0 %v3071
        %3149 = vmatprep.mubr.bf16.mxu0 %v3088
        %3150 = vmatmul.mubr.bf16.gmra.mxu0 %v2952
        %v3151 = vpop.f32.mrf.mxu0
        %v3152 = vadd.f32 0.0, %v3151
        %v3153 = vpop.f32.mrf.mxu0
        %v3154 = vpop.f32.mrf.mxu0
        %v3155 = vadd.f32 0.0, %v3154
        %v3156 = vpop.f32.mrf.mxu0
        %3157 = vmatprep.mubr.bf16.mxu0 %v3091
        %3158 = vmatmul.mubr.bf16.gmra.mxu0 %v2956
        %v3159 = vpop.f32.mrf.mxu0
        %v3160 = vadd.f32 0.0, %v3159
        %v3161 = vpop.f32.mrf.mxu0
        %v3162 = vpop.f32.mrf.mxu0
        %v3163 = vadd.f32 0.0, %v3162
        %v3164 = vpop.f32.mrf.mxu0
        %3165 = vmatprep.mubr.bf16.mxu0 %v3094
        %3166 = vmatmul.mubr.bf16.gmra.mxu0 %v2960
        %v3167 = vpop.f32.mrf.mxu0
        %v3168 = vadd.f32 0.0, %v3167
        %v3169 = vpop.f32.mrf.mxu0
        %v3170 = vpop.f32.mrf.mxu0
        %v3171 = vadd.f32 0.0, %v3170
        %v3172 = vpop.f32.mrf.mxu0
        %3173 = vmatprep.mubr.bf16.mxu0 %v3097
        %3174 = vmatmul.mubr.bf16.gmra.mxu0 %v2964
        %v3175 = vpop.f32.mrf.mxu0
        %v3176 = vadd.f32 0.0, %v3175
        %v3177 = vpop.f32.mrf.mxu0
        %v3178 = vpop.f32.mrf.mxu0
        %v3179 = vadd.f32 0.0, %v3178
        %v3180 = vpop.f32.mrf.mxu0
        %3181 = vmatprep.mubr.bf16.mxu0 %v3100
        %3182 = vmatmul.mubr.bf16.gmra.mxu0 %v2968
        %v3183 = vpop.f32.mrf.mxu0
        %v3184 = vadd.f32 0.0, %v3183
        %v3185 = vpop.f32.mrf.mxu0
        %v3186 = vpop.f32.mrf.mxu0
        %v3187 = vadd.f32 0.0, %v3186
        %v3188 = vpop.f32.mrf.mxu0
        %3189 = vmatprep.mubr.bf16.mxu0 %v3103
        %3190 = vmatmul.mubr.bf16.gmra.mxu0 %v2972
        %v3191 = vpop.f32.mrf.mxu0
        %v3192 = vadd.f32 0.0, %v3191
        %v3193 = vpop.f32.mrf.mxu0
        %v3194 = vpop.f32.mrf.mxu0
        %v3195 = vadd.f32 0.0, %v3194
        %v3196 = vpop.f32.mrf.mxu0
        %3197 = vmatprep.mubr.bf16.mxu0 %v3106
        %3198 = vmatmul.mubr.bf16.gmra.mxu0 %v2976
        %v3199 = vpop.f32.mrf.mxu0
        %v3200 = vadd.f32 0.0, %v3199
        %v3201 = vpop.f32.mrf.mxu0
        %v3202 = vpop.f32.mrf.mxu0
        %v3203 = vadd.f32 0.0, %v3202
        %v3204 = vpop.f32.mrf.mxu0
        %3205 = vmatprep.mubr.bf16.mxu0 %v3109
        %3206 = vmatmul.mubr.bf16.gmra.mxu0 %v2980
        %v3207 = vpop.f32.mrf.mxu0
        %v3208 = vadd.f32 0.0, %v3207
        %v3209 = vpop.f32.mrf.mxu0
        %v3210 = vpop.f32.mrf.mxu0
        %v3211 = vadd.f32 0.0, %v3210
        %v3212 = vpop.f32.mrf.mxu0
        %3213 = vmatprep.mubr.bf16.mxu0 %v3112
        %3214 = vmatmul.mubr.bf16.gmra.mxu0 %v2984
        %v3215 = vpop.f32.mrf.mxu0
        %v3216 = vadd.f32 0.0, %v3215
        %v3217 = vpop.f32.mrf.mxu0
        %v3218 = vpop.f32.mrf.mxu0
        %v3219 = vadd.f32 0.0, %v3218
        %v3220 = vpop.f32.mrf.mxu0
        %3221 = vmatprep.mubr.bf16.mxu0 %v3115
        %3222 = vmatmul.mubr.bf16.gmra.mxu0 %v2988
        %v3223 = vpop.f32.mrf.mxu0
        %v3224 = vadd.f32 0.0, %v3223
        %v3225 = vpop.f32.mrf.mxu0
        %v3226 = vpop.f32.mrf.mxu0
        %v3227 = vadd.f32 0.0, %v3226
        %v3228 = vpop.f32.mrf.mxu0
        %3229 = vdwg.mxu0
        %v3230 = vadd.f32 %v2388, %v3152
        %v3231 = vadd.f32 %v2391, %v3155
        %v3232 = vadd.f32 %v2396, %v3160
        %v3233 = vadd.f32 %v2399, %v3163
        %v3234 = vadd.f32 %v2404, %v3168
        %v3235 = vadd.f32 %v2407, %v3171
        %v3236 = vadd.f32 %v2412, %v3176
        %v3237 = vadd.f32 %v2415, %v3179
        %v3238 = vadd.f32 %v2420, %v3184
        %v3239 = vadd.f32 %v2423, %v3187
        %v3240 = vadd.f32 %v2428, %v3192
        %v3241 = vadd.f32 %v2431, %v3195
        %v3242 = vadd.f32 %v2436, %v3200
        %v3243 = vadd.f32 %v2439, %v3203
        %v3244 = vadd.f32 %v2444, %v3208
        %v3245 = vadd.f32 %v2447, %v3211
        %v3246 = vadd.f32 %v2452, %v3216
        %v3247 = vadd.f32 %v2455, %v3219
        %v3248 = vadd.f32 %v2460, %v3224
        %v3249 = vadd.f32 %v2463, %v3227
        %v3250 = vld [vmem:[%s2] sm:$0x1]
        %v3252 = vlaneseq
        %v3253 = vshrl.u32 %v3252, 7
        %v3254 = vsub.s32 0, %v3253
        %v3255 = vrot.slane %v3250, %v3254
        %v3257 = vadd.f32 %v3230, %v3255
        %v3258 = vadd.f32 %v3231, %v3255
        %v3259 = vadd.f32 %v3232, %v3255
        %v3260 = vadd.f32 %v3233, %v3255
        %v3261 = vadd.f32 %v3234, %v3255
        %v3262 = vadd.f32 %v3235, %v3255
        %v3263 = vadd.f32 %v3236, %v3255
        %v3264 = vadd.f32 %v3237, %v3255
        %v3265 = vadd.f32 %v3238, %v3255
        %v3266 = vadd.f32 %v3239, %v3255
        %v3267 = vadd.f32 %v3240, %v3255
        %v3268 = vadd.f32 %v3241, %v3255
        %v3269 = vadd.f32 %v3242, %v3255
        %v3270 = vadd.f32 %v3243, %v3255
        %v3271 = vadd.f32 %v3244, %v3255
        %v3272 = vadd.f32 %v3245, %v3255
        %v3273 = vadd.f32 %v3246, %v3255
        %v3274 = vadd.f32 %v3247, %v3255
        %v3275 = vadd.f32 %v3248, %v3255
        %v3276 = vadd.f32 %v3249, %v3255
        %s3277 = sld [smem:[#allocation4]]
        %vm3278 = vcmp.gt.f32.partialorder %v3257, 0.0
        %vm3279 = vcmp.gt.f32.partialorder %v3258, 0.0
        %vm3280 = vcmp.gt.f32.partialorder %v3259, 0.0
        %vm3281 = vcmp.gt.f32.partialorder %v3260, 0.0
        %vm3282 = vcmp.gt.f32.partialorder %v3261, 0.0
        %vm3283 = vcmp.gt.f32.partialorder %v3262, 0.0
        %vm3284 = vcmp.gt.f32.partialorder %v3263, 0.0
        %vm3285 = vcmp.gt.f32.partialorder %v3264, 0.0
        %vm3286 = vcmp.gt.f32.partialorder %v3265, 0.0
        %vm3287 = vcmp.gt.f32.partialorder %v3266, 0.0
        %vm3288 = vcmp.gt.f32.partialorder %v3267, 0.0
        %vm3289 = vcmp.gt.f32.partialorder %v3268, 0.0
        %vm3290 = vcmp.gt.f32.partialorder %v3269, 0.0
        %vm3291 = vcmp.gt.f32.partialorder %v3270, 0.0
        %vm3292 = vcmp.gt.f32.partialorder %v3271, 0.0
        %vm3293 = vcmp.gt.f32.partialorder %v3272, 0.0
        %vm3294 = vcmp.gt.f32.partialorder %v3273, 0.0
        %vm3295 = vcmp.gt.f32.partialorder %v3274, 0.0
        %vm3296 = vcmp.gt.f32.partialorder %v3275, 0.0
        %vm3297 = vcmp.gt.f32.partialorder %v3276, 0.0
        %v3298 = vstv %s3277
        %v3299 = vmul.f32 %v3298, %v3257
        %v3300 = vmul.f32 %v3298, %v3258
        %v3301 = vmul.f32 %v3298, %v3259
        %v3302 = vmul.f32 %v3298, %v3260
        %v3303 = vmul.f32 %v3298, %v3261
        %v3304 = vmul.f32 %v3298, %v3262
        %v3305 = vmul.f32 %v3298, %v3263
        %v3306 = vmul.f32 %v3298, %v3264
        %v3307 = vmul.f32 %v3298, %v3265
        %v3308 = vmul.f32 %v3298, %v3266
        %v3309 = vmul.f32 %v3298, %v3267
        %v3310 = vmul.f32 %v3298, %v3268
        %v3311 = vmul.f32 %v3298, %v3269
        %v3312 = vmul.f32 %v3298, %v3270
        %v3313 = vmul.f32 %v3298, %v3271
        %v3314 = vmul.f32 %v3298, %v3272
        %v3315 = vmul.f32 %v3298, %v3273
        %v3316 = vmul.f32 %v3298, %v3274
        %v3317 = vmul.f32 %v3298, %v3275
        %v3318 = vmul.f32 %v3298, %v3276
        %v3319 = vsel %vm3278, %v3257, %v3299
        %v3320 = vsel %vm3279, %v3258, %v3300
        %v3321 = vsel %vm3280, %v3259, %v3301
        %v3322 = vsel %vm3281, %v3260, %v3302
        %v3323 = vsel %vm3282, %v3261, %v3303
        %v3324 = vsel %vm3283, %v3262, %v3304
        %v3325 = vsel %vm3284, %v3263, %v3305
        %v3326 = vsel %vm3285, %v3264, %v3306
        %v3327 = vsel %vm3286, %v3265, %v3307
        %v3328 = vsel %vm3287, %v3266, %v3308
        %v3329 = vsel %vm3288, %v3267, %v3309
        %v3330 = vsel %vm3289, %v3268, %v3310
        %v3331 = vsel %vm3290, %v3269, %v3311
        %v3332 = vsel %vm3291, %v3270, %v3312
        %v3333 = vsel %vm3292, %v3271, %v3313
        %v3334 = vsel %vm3293, %v3272, %v3314
        %v3335 = vsel %vm3294, %v3273, %v3315
        %v3336 = vsel %vm3295, %v3274, %v3316
        %v3337 = vsel %vm3296, %v3275, %v3317
        %v3338 = vsel %vm3297, %v3276, %v3318
        %s3339 = ssub.s32 %s267, 1
        %v3340 = vstv %s3339
        %v3341 = vadd.s32 %v3340, 1
        %v3342 = vadd.s32 %v3340, 2
        %v3343 = vadd.s32 %v3340, 3
        %v3344 = vadd.s32 %v3340, 4
        %v3345 = vadd.s32 %v3340, 5
        %v3346 = vadd.s32 %v3340, 6
        %v3347 = vadd.s32 %v3340, 7
        %v3348 = vadd.s32 %v3340, 8
        %v3349 = vadd.s32 %v3340, 9
        %vm3350 = vcmp.ge.s32.totalorder %v3340, 0
        %vm3351 = vcmp.ge.s32.totalorder %v3341, 0
        %vm3352 = vcmp.ge.s32.totalorder %v3342, 0
        %vm3353 = vcmp.ge.s32.totalorder %v3343, 0
        %vm3354 = vcmp.ge.s32.totalorder %v3344, 0
        %vm3355 = vcmp.ge.s32.totalorder %v3345, 0
        %vm3356 = vcmp.ge.s32.totalorder %v3346, 0
        %vm3357 = vcmp.ge.s32.totalorder %v3347, 0
        %vm3358 = vcmp.ge.s32.totalorder %v3348, 0
        %vm3359 = vcmp.ge.s32.totalorder %v3349, 0
        %vm3360 = vcmp.lt.s32.totalorder %v3340, 16
        %vm3361 = vcmp.lt.s32.totalorder %v3341, 16
        %vm3362 = vcmp.lt.s32.totalorder %v3342, 16
        %vm3363 = vcmp.lt.s32.totalorder %v3343, 16
        %vm3364 = vcmp.lt.s32.totalorder %v3344, 16
        %vm3365 = vcmp.lt.s32.totalorder %v3345, 16
        %vm3366 = vcmp.lt.s32.totalorder %v3346, 16
        %vm3367 = vcmp.lt.s32.totalorder %v3347, 16
        %vm3368 = vcmp.lt.s32.totalorder %v3348, 16
        %vm3369 = vcmp.lt.s32.totalorder %v3349, 16
        %vm3370 = vmand %vm3350, %vm3360
        %vm3371 = vmand %vm3351, %vm3361
        %vm3372 = vmand %vm3352, %vm3362
        %vm3373 = vmand %vm3353, %vm3363
        %vm3374 = vmand %vm3354, %vm3364
        %vm3375 = vmand %vm3355, %vm3365
        %vm3376 = vmand %vm3356, %vm3366
        %vm3377 = vmand %vm3357, %vm3367
        %vm3378 = vmand %vm3358, %vm3368
        %vm3379 = vmand %vm3359, %vm3369
        %v3380 = vsel %vm3370, %v3319, 0.0
        %v3381 = vsel %vm3370, %v3320, 0.0
        %v3382 = vsel %vm3371, %v3321, 0.0
        %v3383 = vsel %vm3371, %v3322, 0.0
        %v3384 = vsel %vm3372, %v3323, 0.0
        %v3385 = vsel %vm3372, %v3324, 0.0
        %v3386 = vsel %vm3373, %v3325, 0.0
        %v3387 = vsel %vm3373, %v3326, 0.0
        %v3388 = vsel %vm3374, %v3327, 0.0
        %v3389 = vsel %vm3374, %v3328, 0.0
        %v3390 = vsel %vm3375, %v3329, 0.0
        %v3391 = vsel %vm3375, %v3330, 0.0
        %v3392 = vsel %vm3376, %v3331, 0.0
        %v3393 = vsel %vm3376, %v3332, 0.0
        %v3394 = vsel %vm3377, %v3333, 0.0
        %v3395 = vsel %vm3377, %v3334, 0.0
        %v3396 = vsel %vm3378, %v3335, 0.0
        %v3397 = vsel %vm3378, %v3336, 0.0
        %v3398 = vsel %vm3379, %v3337, 0.0
        %v3399 = vsel %vm3379, %v3338, 0.0
        %v3400 = vpack.c.bf16 %v3381, %v3380
        %v3401 = vpack.c.bf16 %v3383, %v3382
        %v3402 = vpack.c.bf16 %v3385, %v3384
        %v3403 = vpack.c.bf16 %v3387, %v3386
        %v3404 = vpack.c.bf16 %v3389, %v3388
        %v3405 = vpack.c.bf16 %v3391, %v3390
        %v3406 = vpack.c.bf16 %v3393, %v3392
        %v3407 = vpack.c.bf16 %v3395, %v3394
        %v3408 = vpack.c.bf16 %v3397, %v3396
        %v3409 = vpack.c.bf16 %v3399, %v3398
        %v3420 = vunpack.c.l.b16 %v3400
        %v3421 = vunpack.c.h.b16 %v3400
        %v3422 = vunpack.c.l.b16 %v3401
        %v3423 = vunpack.c.h.b16 %v3401
        %v3424 = vunpack.c.l.b16 %v3402
        %v3425 = vunpack.c.h.b16 %v3402
        %v3426 = vunpack.c.l.b16 %v3403
        %v3427 = vunpack.c.h.b16 %v3403
        %v3428 = vunpack.c.l.b16 %v3404
        %v3429 = vunpack.c.h.b16 %v3404
        %v3430 = vunpack.c.l.b16 %v3405
        %v3431 = vunpack.c.h.b16 %v3405
        %v3432 = vunpack.c.l.b16 %v3406
        %v3433 = vunpack.c.h.b16 %v3406
        %v3434 = vunpack.c.l.b16 %v3407
        %v3435 = vunpack.c.h.b16 %v3407
        %v3436 = vunpack.c.l.b16 %v3408
        %v3437 = vunpack.c.h.b16 %v3408
        %v3438 = vunpack.c.l.b16 %v3409
        %v3439 = vunpack.c.h.b16 %v3409
        %v3440 = vpack.c.b16 %v3420, %v3420
        %v3441 = vpack.c.b16 %v3421, %v3421
        %v3442 = vpack.c.b16 %v3422, %v3422
        %v3443 = vpack.c.b16 %v3423, %v3423
        %v3444 = vpack.c.b16 %v3424, %v3424
        %v3445 = vpack.c.b16 %v3425, %v3425
        %v3446 = vpack.c.b16 %v3426, %v3426
        %v3447 = vpack.c.b16 %v3427, %v3427
        %v3448 = vpack.c.b16 %v3428, %v3428
        %v3449 = vpack.c.b16 %v3429, %v3429
        %v3450 = vpack.c.b16 %v3430, %v3430
        %v3451 = vpack.c.b16 %v3431, %v3431
        %v3452 = vpack.c.b16 %v3432, %v3432
        %v3453 = vpack.c.b16 %v3433, %v3433
        %v3454 = vpack.c.b16 %v3434, %v3434
        %v3455 = vpack.c.b16 %v3435, %v3435
        %v3456 = vpack.c.b16 %v3436, %v3436
        %v3457 = vpack.c.b16 %v3437, %v3437
        %v3458 = vpack.c.b16 %v3438, %v3438
        %v3459 = vpack.c.b16 %v3439, %v3439
        %vm3460 = vsmask.f32 256
        %vm3461 = vsmask.f32 4368
        %vm3462 = vmor %vm3460, %vm3461
        %v3464 = vshrl.u32 %v3440, 16
        %v3466 = vrot.slane %v3464, 7
        %v3467 = vshll.u32 %v3440, 16
        %v3469 = vor.u32 %v3466, %v3467
        %v3470 = vrot.slane %v3466, 4
        %v3472 = vshrl.u32 %v3441, 16
        %v3474 = vrot.slane %v3472, 7
        %v3475 = vshll.u32 %v3441, 16
        %v3477 = vor.u32 %v3474, %v3475
        %v3478 = vsel %vm3462, %v3470, %v3477
        %v3479 = vrot.slane %v3474, 4
        %v3481 = vshrl.u32 %v3442, 16
        %v3483 = vrot.slane %v3481, 7
        %v3484 = vshll.u32 %v3442, 16
        %v3486 = vor.u32 %v3483, %v3484
        %v3487 = vrot.slane %v3483, 4
        %v3489 = vshrl.u32 %v3443, 16
        %v3491 = vrot.slane %v3489, 7
        %v3492 = vshll.u32 %v3443, 16
        %v3494 = vor.u32 %v3491, %v3492
        %v3495 = vsel %vm3462, %v3487, %v3494
        %v3496 = vrot.slane %v3491, 4
        %v3498 = vshrl.u32 %v3444, 16
        %v3500 = vrot.slane %v3498, 7
        %v3501 = vshll.u32 %v3444, 16
        %v3503 = vor.u32 %v3500, %v3501
        %v3504 = vrot.slane %v3500, 4
        %v3506 = vshrl.u32 %v3445, 16
        %v3508 = vrot.slane %v3506, 7
        %v3509 = vshll.u32 %v3445, 16
        %v3511 = vor.u32 %v3508, %v3509
        %v3512 = vsel %vm3462, %v3504, %v3511
        %v3513 = vrot.slane %v3508, 4
        %v3515 = vshrl.u32 %v3446, 16
        %v3517 = vrot.slane %v3515, 7
        %v3518 = vshll.u32 %v3446, 16
        %v3520 = vor.u32 %v3517, %v3518
        %v3521 = vrot.slane %v3517, 4
        %v3523 = vshrl.u32 %v3447, 16
        %v3525 = vrot.slane %v3523, 7
        %v3526 = vshll.u32 %v3447, 16
        %v3528 = vor.u32 %v3525, %v3526
        %v3529 = vsel %vm3462, %v3521, %v3528
        %v3530 = vrot.slane %v3525, 4
        %v3532 = vshrl.u32 %v3448, 16
        %v3534 = vrot.slane %v3532, 7
        %v3535 = vshll.u32 %v3448, 16
        %v3537 = vor.u32 %v3534, %v3535
        %v3538 = vrot.slane %v3534, 4
        %v3540 = vshrl.u32 %v3449, 16
        %v3542 = vrot.slane %v3540, 7
        %v3543 = vshll.u32 %v3449, 16
        %v3545 = vor.u32 %v3542, %v3543
        %v3546 = vsel %vm3462, %v3538, %v3545
        %v3547 = vrot.slane %v3542, 4
        %v3549 = vshrl.u32 %v3450, 16
        %v3551 = vrot.slane %v3549, 7
        %v3552 = vshll.u32 %v3450, 16
        %v3554 = vor.u32 %v3551, %v3552
        %v3555 = vrot.slane %v3551, 4
        %v3557 = vshrl.u32 %v3451, 16
        %v3559 = vrot.slane %v3557, 7
        %v3560 = vshll.u32 %v3451, 16
        %v3562 = vor.u32 %v3559, %v3560
        %v3563 = vsel %vm3462, %v3555, %v3562
        %v3564 = vrot.slane %v3559, 4
        %v3566 = vshrl.u32 %v3452, 16
        %v3568 = vrot.slane %v3566, 7
        %v3569 = vshll.u32 %v3452, 16
        %v3571 = vor.u32 %v3568, %v3569
        %v3572 = vrot.slane %v3568, 4
        %v3574 = vshrl.u32 %v3453, 16
        %v3576 = vrot.slane %v3574, 7
        %v3577 = vshll.u32 %v3453, 16
        %v3579 = vor.u32 %v3576, %v3577
        %v3580 = vsel %vm3462, %v3572, %v3579
        %v3581 = vrot.slane %v3576, 4
        %v3583 = vshrl.u32 %v3454, 16
        %v3585 = vrot.slane %v3583, 7
        %v3586 = vshll.u32 %v3454, 16
        %v3588 = vor.u32 %v3585, %v3586
        %v3589 = vrot.slane %v3585, 4
        %v3591 = vshrl.u32 %v3455, 16
        %v3593 = vrot.slane %v3591, 7
        %v3594 = vshll.u32 %v3455, 16
        %v3596 = vor.u32 %v3593, %v3594
        %v3597 = vsel %vm3462, %v3589, %v3596
        %v3598 = vrot.slane %v3593, 4
        %v3600 = vshrl.u32 %v3456, 16
        %v3602 = vrot.slane %v3600, 7
        %v3603 = vshll.u32 %v3456, 16
        %v3605 = vor.u32 %v3602, %v3603
        %v3606 = vrot.slane %v3602, 4
        %v3608 = vshrl.u32 %v3457, 16
        %v3610 = vrot.slane %v3608, 7
        %v3611 = vshll.u32 %v3457, 16
        %v3613 = vor.u32 %v3610, %v3611
        %v3614 = vsel %vm3462, %v3606, %v3613
        %v3615 = vrot.slane %v3610, 4
        %v3617 = vshrl.u32 %v3458, 16
        %v3619 = vrot.slane %v3617, 7
        %v3620 = vshll.u32 %v3458, 16
        %v3622 = vor.u32 %v3619, %v3620
        %v3623 = vrot.slane %v3619, 4
        %v3625 = vshrl.u32 %v3459, 16
        %v3627 = vrot.slane %v3625, 7
        %v3628 = vshll.u32 %v3459, 16
        %v3630 = vor.u32 %v3627, %v3628
        %v3631 = vsel %vm3462, %v3623, %v3630
        %v3632 = vrot.slane %v3627, 4
        %vm3663 = vcmask 519168
        %vm3664 = vsmask.f32 7938
        %vm3665 = vmand %vm3663, %vm3664
        %v3666 = vld [vmem:[#allocation3] sm:$0xf]
        %v3667 = vsel %vm3665, %v3469, %v3666
        %3668 = vst [vmem:[#allocation3] sm:$0xf] %v3667
        %vm3669 = vcmask 519168
        %3670 = vst.msk [vmem:[#allocation3 + $0x4] sm:$0xf] %vm3669, %v3478
        %vm3671 = vcmask 516096
        %vm3672 = vmand %vm3671, %vm3460
        %v3673 = vld [vmem:[#allocation3 + $0x8] sm:$0x1]
        %v3674 = vsel %vm3672, %v3479, %v3673
        %3675 = vst [vmem:[#allocation3 + $0x8] sm:$0x1] %v3674
        %v3676 = vld [vmem:[#allocation3 + $0xc] sm:$0xf]
        %v3677 = vsel %vm3665, %v3486, %v3676
        %3678 = vst [vmem:[#allocation3 + $0xc] sm:$0xf] %v3677
        %3679 = vst.msk [vmem:[#allocation3 + $0x10] sm:$0xf] %vm3669, %v3495
        %v3680 = vld [vmem:[#allocation3 + $0x14] sm:$0x1]
        %v3681 = vsel %vm3672, %v3496, %v3680
        %3682 = vst [vmem:[#allocation3 + $0x14] sm:$0x1] %v3681
        %v3683 = vld [vmem:[#allocation3 + $0x18] sm:$0xf]
        %v3684 = vsel %vm3665, %v3503, %v3683
        %3685 = vst [vmem:[#allocation3 + $0x18] sm:$0xf] %v3684
        %3686 = vst.msk [vmem:[#allocation3 + $0x1c] sm:$0xf] %vm3669, %v3512
        %v3687 = vld [vmem:[#allocation3 + $0x20] sm:$0x1]
        %v3688 = vsel %vm3672, %v3513, %v3687
        %3689 = vst [vmem:[#allocation3 + $0x20] sm:$0x1] %v3688
        %v3690 = vld [vmem:[#allocation3 + $0x24] sm:$0xf]
        %v3691 = vsel %vm3665, %v3520, %v3690
        %3692 = vst [vmem:[#allocation3 + $0x24] sm:$0xf] %v3691
        %3693 = vst.msk [vmem:[#allocation3 + $0x28] sm:$0xf] %vm3669, %v3529
        %v3694 = vld [vmem:[#allocation3 + $0x2c] sm:$0x1]
        %v3695 = vsel %vm3672, %v3530, %v3694
        %3696 = vst [vmem:[#allocation3 + $0x2c] sm:$0x1] %v3695
        %v3697 = vld [vmem:[#allocation3 + $0x30] sm:$0xf]
        %v3698 = vsel %vm3665, %v3537, %v3697
        %3699 = vst [vmem:[#allocation3 + $0x30] sm:$0xf] %v3698
        %3700 = vst.msk [vmem:[#allocation3 + $0x34] sm:$0xf] %vm3669, %v3546
        %v3701 = vld [vmem:[#allocation3 + $0x38] sm:$0x1]
        %v3702 = vsel %vm3672, %v3547, %v3701
        %3703 = vst [vmem:[#allocation3 + $0x38] sm:$0x1] %v3702
        %v3704 = vld [vmem:[#allocation3 + $0x3c] sm:$0xf]
        %v3705 = vsel %vm3665, %v3554, %v3704
        %3706 = vst [vmem:[#allocation3 + $0x3c] sm:$0xf] %v3705
        %3707 = vst.msk [vmem:[#allocation3 + $0x40] sm:$0xf] %vm3669, %v3563
        %v3708 = vld [vmem:[#allocation3 + $0x44] sm:$0x1]
        %v3709 = vsel %vm3672, %v3564, %v3708
        %3710 = vst [vmem:[#allocation3 + $0x44] sm:$0x1] %v3709
        %v3711 = vld [vmem:[#allocation3 + $0x48] sm:$0xf]
        %v3712 = vsel %vm3665, %v3571, %v3711
        %3713 = vst [vmem:[#allocation3 + $0x48] sm:$0xf] %v3712
        %3714 = vst.msk [vmem:[#allocation3 + $0x4c] sm:$0xf] %vm3669, %v3580
        %v3715 = vld [vmem:[#allocation3 + $0x50] sm:$0x1]
        %v3716 = vsel %vm3672, %v3581, %v3715
        %3717 = vst [vmem:[#allocation3 + $0x50] sm:$0x1] %v3716
        %v3718 = vld [vmem:[#allocation3 + $0x54] sm:$0xf]
        %v3719 = vsel %vm3665, %v3588, %v3718
        %3720 = vst [vmem:[#allocation3 + $0x54] sm:$0xf] %v3719
        %3721 = vst.msk [vmem:[#allocation3 + $0x58] sm:$0xf] %vm3669, %v3597
        %v3722 = vld [vmem:[#allocation3 + $0x5c] sm:$0x1]
        %v3723 = vsel %vm3672, %v3598, %v3722
        %3724 = vst [vmem:[#allocation3 + $0x5c] sm:$0x1] %v3723
        %v3725 = vld [vmem:[#allocation3 + $0x60] sm:$0xf]
        %v3726 = vsel %vm3665, %v3605, %v3725
        %3727 = vst [vmem:[#allocation3 + $0x60] sm:$0xf] %v3726
        %3728 = vst.msk [vmem:[#allocation3 + $0x64] sm:$0xf] %vm3669, %v3614
        %v3729 = vld [vmem:[#allocation3 + $0x68] sm:$0x1]
        %v3730 = vsel %vm3672, %v3615, %v3729
        %3731 = vst [vmem:[#allocation3 + $0x68] sm:$0x1] %v3730
        %v3732 = vld [vmem:[#allocation3 + $0x6c] sm:$0xf]
        %v3733 = vsel %vm3665, %v3622, %v3732
        %3734 = vst [vmem:[#allocation3 + $0x6c] sm:$0xf] %v3733
        %3735 = vst.msk [vmem:[#allocation3 + $0x70] sm:$0xf] %vm3669, %v3631
        %v3736 = vld [vmem:[#allocation3 + $0x74] sm:$0x1]
        %v3737 = vsel %vm3672, %v3632, %v3736
        %3738 = vst [vmem:[#allocation3 + $0x74] sm:$0x1] %v3737
        %v3739 = vld [vmem:[#allocation3] sm:$0xf]
        %v3740 = vld [vmem:[#allocation3 + $0x4] sm:$0xf]
        %v3741 = vld [vmem:[#allocation3 + $0x8] sm:$0x1]
        %v3742 = vld [vmem:[#allocation3 + $0xc] sm:$0xf]
        %v3743 = vld [vmem:[#allocation3 + $0x10] sm:$0xf]
        %v3744 = vld [vmem:[#allocation3 + $0x14] sm:$0x1]
        %v3745 = vld [vmem:[#allocation3 + $0x18] sm:$0xf]
        %v3746 = vld [vmem:[#allocation3 + $0x1c] sm:$0xf]
        %v3747 = vld [vmem:[#allocation3 + $0x20] sm:$0x1]
        %v3748 = vld [vmem:[#allocation3 + $0x24] sm:$0xf]
        %v3749 = vld [vmem:[#allocation3 + $0x28] sm:$0xf]
        %v3750 = vld [vmem:[#allocation3 + $0x2c] sm:$0x1]
        %v3751 = vld [vmem:[#allocation3 + $0x30] sm:$0xf]
        %v3752 = vld [vmem:[#allocation3 + $0x34] sm:$0xf]
        %v3753 = vld [vmem:[#allocation3 + $0x38] sm:$0x1]
        %v3754 = vld [vmem:[#allocation3 + $0x3c] sm:$0xf]
        %v3755 = vld [vmem:[#allocation3 + $0x40] sm:$0xf]
        %v3756 = vld [vmem:[#allocation3 + $0x44] sm:$0x1]
        %v3757 = vld [vmem:[#allocation3 + $0x48] sm:$0xf]
        %v3758 = vld [vmem:[#allocation3 + $0x4c] sm:$0xf]
        %v3759 = vld [vmem:[#allocation3 + $0x50] sm:$0x1]
        %v3760 = vld [vmem:[#allocation3 + $0x54] sm:$0xf]
        %v3761 = vld [vmem:[#allocation3 + $0x58] sm:$0xf]
        %v3762 = vld [vmem:[#allocation3 + $0x5c] sm:$0x1]
        %v3764 = vshrl.u32 %v3739, 16
        %v3766 = vrot.slane %v3764, 4
        %v3767 = vshll.u32 %v3739, 16
        %v3769 = vrot.slane %v3767, 5
        %v3770 = vor.u32 %v3766, %v3769
        %v3771 = vrot.slane %v3770, 4
        %v3773 = vshll.u32 %v3740, 16
        %v3775 = vrot.slane %v3773, 5
        %v3776 = vsel %vm968, %v3771, %v3775
        %v3777 = vshrl.u32 %v3740, 16
        %v3779 = vrot.slane %v3777, 4
        %v3780 = vor.u32 %v3779, %v3775
        %v3781 = vrot.slane %v3780, 4
        %v3783 = vshll.u32 %v3741, 16
        %v3785 = vrot.slane %v3783, 5
        %v3786 = vsel %vm968, %v3781, %v3785
        %v3788 = vshrl.u32 %v3742, 16
        %v3790 = vrot.slane %v3788, 4
        %v3791 = vshll.u32 %v3742, 16
        %v3793 = vrot.slane %v3791, 5
        %v3794 = vor.u32 %v3790, %v3793
        %v3795 = vrot.slane %v3794, 4
        %v3797 = vshll.u32 %v3743, 16
        %v3799 = vrot.slane %v3797, 5
        %v3800 = vsel %vm968, %v3795, %v3799
        %v3801 = vshrl.u32 %v3743, 16
        %v3803 = vrot.slane %v3801, 4
        %v3804 = vor.u32 %v3803, %v3799
        %v3805 = vrot.slane %v3804, 4
        %v3807 = vshll.u32 %v3744, 16
        %v3809 = vrot.slane %v3807, 5
        %v3810 = vsel %vm968, %v3805, %v3809
        %v3812 = vshrl.u32 %v3745, 16
        %v3814 = vrot.slane %v3812, 4
        %v3815 = vshll.u32 %v3745, 16
        %v3817 = vrot.slane %v3815, 5
        %v3818 = vor.u32 %v3814, %v3817
        %v3819 = vrot.slane %v3818, 4
        %v3821 = vshll.u32 %v3746, 16
        %v3823 = vrot.slane %v3821, 5
        %v3824 = vsel %vm968, %v3819, %v3823
        %v3825 = vshrl.u32 %v3746, 16
        %v3827 = vrot.slane %v3825, 4
        %v3828 = vor.u32 %v3827, %v3823
        %v3829 = vrot.slane %v3828, 4
        %v3831 = vshll.u32 %v3747, 16
        %v3833 = vrot.slane %v3831, 5
        %v3834 = vsel %vm968, %v3829, %v3833
        %v3836 = vshrl.u32 %v3748, 16
        %v3838 = vrot.slane %v3836, 4
        %v3839 = vshll.u32 %v3748, 16
        %v3841 = vrot.slane %v3839, 5
        %v3842 = vor.u32 %v3838, %v3841
        %v3843 = vrot.slane %v3842, 4
        %v3845 = vshll.u32 %v3749, 16
        %v3847 = vrot.slane %v3845, 5
        %v3848 = vsel %vm968, %v3843, %v3847
        %v3849 = vshrl.u32 %v3749, 16
        %v3851 = vrot.slane %v3849, 4
        %v3852 = vor.u32 %v3851, %v3847
        %v3853 = vrot.slane %v3852, 4
        %v3855 = vshll.u32 %v3750, 16
        %v3857 = vrot.slane %v3855, 5
        %v3858 = vsel %vm968, %v3853, %v3857
        %v3860 = vshrl.u32 %v3751, 16
        %v3862 = vrot.slane %v3860, 4
        %v3863 = vshll.u32 %v3751, 16
        %v3865 = vrot.slane %v3863, 5
        %v3866 = vor.u32 %v3862, %v3865
        %v3867 = vrot.slane %v3866, 4
        %v3869 = vshll.u32 %v3752, 16
        %v3871 = vrot.slane %v3869, 5
        %v3872 = vsel %vm968, %v3867, %v3871
        %v3873 = vshrl.u32 %v3752, 16
        %v3875 = vrot.slane %v3873, 4
        %v3876 = vor.u32 %v3875, %v3871
        %v3877 = vrot.slane %v3876, 4
        %v3879 = vshll.u32 %v3753, 16
        %v3881 = vrot.slane %v3879, 5
        %v3882 = vsel %vm968, %v3877, %v3881
        %v3884 = vshrl.u32 %v3754, 16
        %v3886 = vrot.slane %v3884, 4
        %v3887 = vshll.u32 %v3754, 16
        %v3889 = vrot.slane %v3887, 5
        %v3890 = vor.u32 %v3886, %v3889
        %v3891 = vrot.slane %v3890, 4
        %v3893 = vshll.u32 %v3755, 16
        %v3895 = vrot.slane %v3893, 5
        %v3896 = vsel %vm968, %v3891, %v3895
        %v3897 = vshrl.u32 %v3755, 16
        %v3899 = vrot.slane %v3897, 4
        %v3900 = vor.u32 %v3899, %v3895
        %v3901 = vrot.slane %v3900, 4
        %v3903 = vshll.u32 %v3756, 16
        %v3905 = vrot.slane %v3903, 5
        %v3906 = vsel %vm968, %v3901, %v3905
        %v3908 = vshrl.u32 %v3757, 16
        %v3910 = vrot.slane %v3908, 4
        %v3911 = vshll.u32 %v3757, 16
        %v3913 = vrot.slane %v3911, 5
        %v3914 = vor.u32 %v3910, %v3913
        %v3915 = vrot.slane %v3914, 4
        %v3917 = vshll.u32 %v3758, 16
        %v3919 = vrot.slane %v3917, 5
        %v3920 = vsel %vm968, %v3915, %v3919
        %v3921 = vshrl.u32 %v3758, 16
        %v3923 = vrot.slane %v3921, 4
        %v3924 = vor.u32 %v3923, %v3919
        %v3925 = vrot.slane %v3924, 4
        %v3927 = vshll.u32 %v3759, 16
        %v3929 = vrot.slane %v3927, 5
        %v3930 = vsel %vm968, %v3925, %v3929
        %v3932 = vshrl.u32 %v3760, 16
        %v3934 = vrot.slane %v3932, 4
        %v3935 = vshll.u32 %v3760, 16
        %v3937 = vrot.slane %v3935, 5
        %v3938 = vor.u32 %v3934, %v3937
        %v3939 = vrot.slane %v3938, 4
        %v3941 = vshll.u32 %v3761, 16
        %v3943 = vrot.slane %v3941, 5
        %v3944 = vsel %vm968, %v3939, %v3943
        %v3945 = vshrl.u32 %v3761, 16
        %v3947 = vrot.slane %v3945, 4
        %v3948 = vor.u32 %v3947, %v3943
        %v3949 = vrot.slane %v3948, 4
        %v3951 = vshll.u32 %v3762, 16
        %v3953 = vrot.slane %v3951, 5
        %v3954 = vsel %vm968, %v3949, %v3953
        %v3979 = vrot.slane %v3739, 5
        %v3980 = vrot.slane %v3979, 4
        %v3981 = vrot.slane %v3740, 5
        %v3982 = vsel %vm1241, %v3980, %v3981
        %v3983 = vrot.slane %v3981, 4
        %v3984 = vrot.slane %v3741, 5
        %v3985 = vsel %vm1241, %v3983, %v3984
        %v3986 = vrot.slane %v3742, 5
        %v3987 = vrot.slane %v3986, 4
        %v3988 = vrot.slane %v3743, 5
        %v3989 = vsel %vm1241, %v3987, %v3988
        %v3990 = vrot.slane %v3988, 4
        %v3991 = vrot.slane %v3744, 5
        %v3992 = vsel %vm1241, %v3990, %v3991
        %v3993 = vrot.slane %v3745, 5
        %v3994 = vrot.slane %v3993, 4
        %v3995 = vrot.slane %v3746, 5
        %v3996 = vsel %vm1241, %v3994, %v3995
        %v3997 = vrot.slane %v3995, 4
        %v3998 = vrot.slane %v3747, 5
        %v3999 = vsel %vm1241, %v3997, %v3998
        %v4000 = vrot.slane %v3748, 5
        %v4001 = vrot.slane %v4000, 4
        %v4002 = vrot.slane %v3749, 5
        %v4003 = vsel %vm1241, %v4001, %v4002
        %v4004 = vrot.slane %v4002, 4
        %v4005 = vrot.slane %v3750, 5
        %v4006 = vsel %vm1241, %v4004, %v4005
        %v4007 = vrot.slane %v3751, 5
        %v4008 = vrot.slane %v4007, 4
        %v4009 = vrot.slane %v3752, 5
        %v4010 = vsel %vm1241, %v4008, %v4009
        %v4011 = vrot.slane %v4009, 4
        %v4012 = vrot.slane %v3753, 5
        %v4013 = vsel %vm1241, %v4011, %v4012
        %v4014 = vrot.slane %v3754, 5
        %v4015 = vrot.slane %v4014, 4
        %v4016 = vrot.slane %v3755, 5
        %v4017 = vsel %vm1241, %v4015, %v4016
        %v4018 = vrot.slane %v4016, 4
        %v4019 = vrot.slane %v3756, 5
        %v4020 = vsel %vm1241, %v4018, %v4019
        %v4021 = vrot.slane %v3757, 5
        %v4022 = vrot.slane %v4021, 4
        %v4023 = vrot.slane %v3758, 5
        %v4024 = vsel %vm1241, %v4022, %v4023
        %v4025 = vrot.slane %v4023, 4
        %v4026 = vrot.slane %v3759, 5
        %v4027 = vsel %vm1241, %v4025, %v4026
        %v4028 = vrot.slane %v3760, 5
        %v4029 = vrot.slane %v4028, 4
        %v4030 = vrot.slane %v3761, 5
        %v4031 = vsel %vm1241, %v4029, %v4030
        %v4032 = vrot.slane %v4030, 4
        %v4033 = vrot.slane %v3762, 5
        %v4034 = vsel %vm1241, %v4032, %v4033
        %v4035 = vunpack.c.l.b16 %v3739
        %v4036 = vunpack.c.l.b16 %v3740
        %v4037 = vunpack.c.l.b16 %v3742
        %v4038 = vunpack.c.l.b16 %v3743
        %v4039 = vunpack.c.l.b16 %v3745
        %v4040 = vunpack.c.l.b16 %v3746
        %v4041 = vunpack.c.l.b16 %v3748
        %v4042 = vunpack.c.l.b16 %v3749
        %v4043 = vunpack.c.l.b16 %v3751
        %v4044 = vunpack.c.l.b16 %v3752
        %v4045 = vunpack.c.l.b16 %v3754
        %v4046 = vunpack.c.l.b16 %v3755
        %v4047 = vunpack.c.l.b16 %v3757
        %v4048 = vunpack.c.l.b16 %v3758
        %v4049 = vunpack.c.l.b16 %v3760
        %v4050 = vunpack.c.l.b16 %v3761
        %v4051 = vpack.c.b16 %v4036, %v4035
        %v4052 = vpack.c.b16 %v4038, %v4037
        %v4053 = vpack.c.b16 %v4040, %v4039
        %v4054 = vpack.c.b16 %v4042, %v4041
        %v4055 = vpack.c.b16 %v4044, %v4043
        %v4056 = vpack.c.b16 %v4046, %v4045
        %v4057 = vpack.c.b16 %v4048, %v4047
        %v4058 = vpack.c.b16 %v4050, %v4049
        %v4059 = vunpack.c.l.b16 %v3776
        %v4060 = vunpack.c.l.b16 %v3786
        %v4061 = vunpack.c.l.b16 %v3800
        %v4062 = vunpack.c.l.b16 %v3810
        %v4063 = vunpack.c.l.b16 %v3824
        %v4064 = vunpack.c.l.b16 %v3834
        %v4065 = vunpack.c.l.b16 %v3848
        %v4066 = vunpack.c.l.b16 %v3858
        %v4067 = vunpack.c.l.b16 %v3872
        %v4068 = vunpack.c.l.b16 %v3882
        %v4069 = vunpack.c.l.b16 %v3896
        %v4070 = vunpack.c.l.b16 %v3906
        %v4071 = vunpack.c.l.b16 %v3920
        %v4072 = vunpack.c.l.b16 %v3930
        %v4073 = vunpack.c.l.b16 %v3944
        %v4074 = vunpack.c.l.b16 %v3954
        %v4075 = vpack.c.b16 %v4060, %v4059
        %v4076 = vpack.c.b16 %v4062, %v4061
        %v4077 = vpack.c.b16 %v4064, %v4063
        %v4078 = vpack.c.b16 %v4066, %v4065
        %v4079 = vpack.c.b16 %v4068, %v4067
        %v4080 = vpack.c.b16 %v4070, %v4069
        %v4081 = vpack.c.b16 %v4072, %v4071
        %v4082 = vpack.c.b16 %v4074, %v4073
        %4083 = vrot.lane.b32.xlu0 %v4075, 64
        %v4084 = vpop.permute.xlu0 %4083
        %4085 = vrot.lane.b32.xlu0 %v4076, 64
        %v4086 = vpop.permute.xlu0 %4085
        %4087 = vrot.lane.b32.xlu0 %v4077, 64
        %v4088 = vpop.permute.xlu0 %4087
        %4089 = vrot.lane.b32.xlu0 %v4078, 64
        %v4090 = vpop.permute.xlu0 %4089
        %4091 = vrot.lane.b32.xlu0 %v4079, 64
        %v4092 = vpop.permute.xlu0 %4091
        %4093 = vrot.lane.b32.xlu0 %v4080, 64
        %v4094 = vpop.permute.xlu0 %4093
        %4095 = vrot.lane.b32.xlu0 %v4081, 64
        %v4096 = vpop.permute.xlu0 %4095
        %4097 = vrot.lane.b32.xlu0 %v4082, 64
        %v4098 = vpop.permute.xlu0 %4097
        %v4099 = vunpack.c.l.b16 %v3982
        %v4100 = vunpack.c.l.b16 %v3985
        %v4101 = vunpack.c.l.b16 %v3989
        %v4102 = vunpack.c.l.b16 %v3992
        %v4103 = vunpack.c.l.b16 %v3996
        %v4104 = vunpack.c.l.b16 %v3999
        %v4105 = vunpack.c.l.b16 %v4003
        %v4106 = vunpack.c.l.b16 %v4006
        %v4107 = vunpack.c.l.b16 %v4010
        %v4108 = vunpack.c.l.b16 %v4013
        %v4109 = vunpack.c.l.b16 %v4017
        %v4110 = vunpack.c.l.b16 %v4020
        %v4111 = vunpack.c.l.b16 %v4024
        %v4112 = vunpack.c.l.b16 %v4027
        %v4113 = vunpack.c.l.b16 %v4031
        %v4114 = vunpack.c.l.b16 %v4034
        %v4115 = vpack.c.b16 %v4100, %v4099
        %v4116 = vpack.c.b16 %v4102, %v4101
        %v4117 = vpack.c.b16 %v4104, %v4103
        %v4118 = vpack.c.b16 %v4106, %v4105
        %v4119 = vpack.c.b16 %v4108, %v4107
        %v4120 = vpack.c.b16 %v4110, %v4109
        %v4121 = vpack.c.b16 %v4112, %v4111
        %v4122 = vpack.c.b16 %v4114, %v4113
        %v4125 = vsel %vm1422, %v4051, %v4084
        %v4129 = vsel %vm1422, %v4052, %v4086
        %v4133 = vsel %vm1422, %v4053, %v4088
        %v4137 = vsel %vm1422, %v4054, %v4090
        %v4141 = vsel %vm1422, %v4055, %v4092
        %v4145 = vsel %vm1422, %v4056, %v4094
        %v4149 = vsel %vm1422, %v4057, %v4096
        %v4153 = vsel %vm1422, %v4058, %v4098
        %v4155 = vld [vmem:[%s3] sm:$0xf]
        %v4156 = vld [vmem:[%s3 + $0x4] sm:$0xf]
        %v4157 = vld [vmem:[%s3 + $0x8] sm:$0xf]
        %v4158 = vld [vmem:[%s3 + $0xc] sm:$0xf]
        %v4159 = vld [vmem:[%s3 + $0x10] sm:$0xf]
        %v4160 = vld [vmem:[%s3 + $0x14] sm:$0xf]
        %v4161 = vld [vmem:[%s3 + $0x18] sm:$0xf]
        %v4162 = vld [vmem:[%s3 + $0x1c] sm:$0xf]
        %v4163 = vld [vmem:[%s3 + $0x20] sm:$0xf]
        %v4164 = vld [vmem:[%s3 + $0x24] sm:$0xf]
        %v4165 = vld [vmem:[%s3 + $0x28] sm:$0xf]
        %v4166 = vld [vmem:[%s3 + $0x2c] sm:$0xf]
        %v4167 = vld [vmem:[%s3 + $0x30] sm:$0xf]
        %v4168 = vld [vmem:[%s3 + $0x34] sm:$0xf]
        %v4169 = vld [vmem:[%s3 + $0x38] sm:$0xf]
        %v4170 = vld [vmem:[%s3 + $0x3c] sm:$0xf]
        %v4171 = vld [vmem:[%s3 + $0x40] sm:$0xf]
        %v4172 = vld [vmem:[%s3 + $0x44] sm:$0xf]
        %v4173 = vld [vmem:[%s3 + $0x48] sm:$0xf]
        %v4174 = vld [vmem:[%s3 + $0x4c] sm:$0xf]
        %v4175 = vld [vmem:[%s3 + $0x50] sm:$0xf]
        %v4176 = vld [vmem:[%s3 + $0x54] sm:$0xf]
        %v4177 = vld [vmem:[%s3 + $0x58] sm:$0xf]
        %v4178 = vld [vmem:[%s3 + $0x5c] sm:$0xf]
        %s4179 = scalar_lea.vmem [#allocation3], 12
        %v4180 = vld [vmem:[%s4179] sm:$0xf]
        %v4181 = vld [vmem:[%s4179 + $0x4] sm:$0xf]
        %v4182 = vld [vmem:[%s4179 + $0x8] sm:$0x1]
        %v4183 = vld [vmem:[%s4179 + $0xc] sm:$0xf]
        %v4184 = vld [vmem:[%s4179 + $0x10] sm:$0xf]
        %v4185 = vld [vmem:[%s4179 + $0x14] sm:$0x1]
        %v4186 = vld [vmem:[%s4179 + $0x18] sm:$0xf]
        %v4187 = vld [vmem:[%s4179 + $0x1c] sm:$0xf]
        %v4188 = vld [vmem:[%s4179 + $0x20] sm:$0x1]
        %v4189 = vld [vmem:[%s4179 + $0x24] sm:$0xf]
        %v4190 = vld [vmem:[%s4179 + $0x28] sm:$0xf]
        %v4191 = vld [vmem:[%s4179 + $0x2c] sm:$0x1]
        %v4192 = vld [vmem:[%s4179 + $0x30] sm:$0xf]
        %v4193 = vld [vmem:[%s4179 + $0x34] sm:$0xf]
        %v4194 = vld [vmem:[%s4179 + $0x38] sm:$0x1]
        %v4195 = vld [vmem:[%s4179 + $0x3c] sm:$0xf]
        %v4196 = vld [vmem:[%s4179 + $0x40] sm:$0xf]
        %v4197 = vld [vmem:[%s4179 + $0x44] sm:$0x1]
        %v4198 = vld [vmem:[%s4179 + $0x48] sm:$0xf]
        %v4199 = vld [vmem:[%s4179 + $0x4c] sm:$0xf]
        %v4200 = vld [vmem:[%s4179 + $0x50] sm:$0x1]
        %v4201 = vld [vmem:[%s4179 + $0x54] sm:$0xf]
        %v4202 = vld [vmem:[%s4179 + $0x58] sm:$0xf]
        %v4203 = vld [vmem:[%s4179 + $0x5c] sm:$0x1]
        %v4205 = vshrl.u32 %v4180, 16
        %v4207 = vrot.slane %v4205, 4
        %v4208 = vshll.u32 %v4180, 16
        %v4210 = vrot.slane %v4208, 5
        %v4211 = vor.u32 %v4207, %v4210
        %v4212 = vrot.slane %v4211, 4
        %v4214 = vshll.u32 %v4181, 16
        %v4216 = vrot.slane %v4214, 5
        %v4217 = vsel %vm968, %v4212, %v4216
        %v4218 = vshrl.u32 %v4181, 16
        %v4220 = vrot.slane %v4218, 4
        %v4221 = vor.u32 %v4220, %v4216
        %v4222 = vrot.slane %v4221, 4
        %v4224 = vshll.u32 %v4182, 16
        %v4226 = vrot.slane %v4224, 5
        %v4227 = vsel %vm968, %v4222, %v4226
        %v4229 = vshrl.u32 %v4183, 16
        %v4231 = vrot.slane %v4229, 4
        %v4232 = vshll.u32 %v4183, 16
        %v4234 = vrot.slane %v4232, 5
        %v4235 = vor.u32 %v4231, %v4234
        %v4236 = vrot.slane %v4235, 4
        %v4238 = vshll.u32 %v4184, 16
        %v4240 = vrot.slane %v4238, 5
        %v4241 = vsel %vm968, %v4236, %v4240
        %v4242 = vshrl.u32 %v4184, 16
        %v4244 = vrot.slane %v4242, 4
        %v4245 = vor.u32 %v4244, %v4240
        %v4246 = vrot.slane %v4245, 4
        %v4248 = vshll.u32 %v4185, 16
        %v4250 = vrot.slane %v4248, 5
        %v4251 = vsel %vm968, %v4246, %v4250
        %v4253 = vshrl.u32 %v4186, 16
        %v4255 = vrot.slane %v4253, 4
        %v4256 = vshll.u32 %v4186, 16
        %v4258 = vrot.slane %v4256, 5
        %v4259 = vor.u32 %v4255, %v4258
        %v4260 = vrot.slane %v4259, 4
        %v4262 = vshll.u32 %v4187, 16
        %v4264 = vrot.slane %v4262, 5
        %v4265 = vsel %vm968, %v4260, %v4264
        %v4266 = vshrl.u32 %v4187, 16
        %v4268 = vrot.slane %v4266, 4
        %v4269 = vor.u32 %v4268, %v4264
        %v4270 = vrot.slane %v4269, 4
        %v4272 = vshll.u32 %v4188, 16
        %v4274 = vrot.slane %v4272, 5
        %v4275 = vsel %vm968, %v4270, %v4274
        %v4277 = vshrl.u32 %v4189, 16
        %v4279 = vrot.slane %v4277, 4
        %v4280 = vshll.u32 %v4189, 16
        %v4282 = vrot.slane %v4280, 5
        %v4283 = vor.u32 %v4279, %v4282
        %v4284 = vrot.slane %v4283, 4
        %v4286 = vshll.u32 %v4190, 16
        %v4288 = vrot.slane %v4286, 5
        %v4289 = vsel %vm968, %v4284, %v4288
        %v4290 = vshrl.u32 %v4190, 16
        %v4292 = vrot.slane %v4290, 4
        %v4293 = vor.u32 %v4292, %v4288
        %v4294 = vrot.slane %v4293, 4
        %v4296 = vshll.u32 %v4191, 16
        %v4298 = vrot.slane %v4296, 5
        %v4299 = vsel %vm968, %v4294, %v4298
        %v4301 = vshrl.u32 %v4192, 16
        %v4303 = vrot.slane %v4301, 4
        %v4304 = vshll.u32 %v4192, 16
        %v4306 = vrot.slane %v4304, 5
        %v4307 = vor.u32 %v4303, %v4306
        %v4308 = vrot.slane %v4307, 4
        %v4310 = vshll.u32 %v4193, 16
        %v4312 = vrot.slane %v4310, 5
        %v4313 = vsel %vm968, %v4308, %v4312
        %v4314 = vshrl.u32 %v4193, 16
        %v4316 = vrot.slane %v4314, 4
        %v4317 = vor.u32 %v4316, %v4312
        %v4318 = vrot.slane %v4317, 4
        %v4320 = vshll.u32 %v4194, 16
        %v4322 = vrot.slane %v4320, 5
        %v4323 = vsel %vm968, %v4318, %v4322
        %v4325 = vshrl.u32 %v4195, 16
        %v4327 = vrot.slane %v4325, 4
        %v4328 = vshll.u32 %v4195, 16
        %v4330 = vrot.slane %v4328, 5
        %v4331 = vor.u32 %v4327, %v4330
        %v4332 = vrot.slane %v4331, 4
        %v4334 = vshll.u32 %v4196, 16
        %v4336 = vrot.slane %v4334, 5
        %v4337 = vsel %vm968, %v4332, %v4336
        %v4338 = vshrl.u32 %v4196, 16
        %v4340 = vrot.slane %v4338, 4
        %v4341 = vor.u32 %v4340, %v4336
        %v4342 = vrot.slane %v4341, 4
        %v4344 = vshll.u32 %v4197, 16
        %v4346 = vrot.slane %v4344, 5
        %v4347 = vsel %vm968, %v4342, %v4346
        %v4349 = vshrl.u32 %v4198, 16
        %v4351 = vrot.slane %v4349, 4
        %v4352 = vshll.u32 %v4198, 16
        %v4354 = vrot.slane %v4352, 5
        %v4355 = vor.u32 %v4351, %v4354
        %v4356 = vrot.slane %v4355, 4
        %v4358 = vshll.u32 %v4199, 16
        %v4360 = vrot.slane %v4358, 5
        %v4361 = vsel %vm968, %v4356, %v4360
        %v4362 = vshrl.u32 %v4199, 16
        %v4364 = vrot.slane %v4362, 4
        %v4365 = vor.u32 %v4364, %v4360
        %v4366 = vrot.slane %v4365, 4
        %v4368 = vshll.u32 %v4200, 16
        %v4370 = vrot.slane %v4368, 5
        %v4371 = vsel %vm968, %v4366, %v4370
        %v4373 = vshrl.u32 %v4201, 16
        %v4375 = vrot.slane %v4373, 4
        %v4376 = vshll.u32 %v4201, 16
        %v4378 = vrot.slane %v4376, 5
        %v4379 = vor.u32 %v4375, %v4378
        %v4380 = vrot.slane %v4379, 4
        %v4382 = vshll.u32 %v4202, 16
        %v4384 = vrot.slane %v4382, 5
        %v4385 = vsel %vm968, %v4380, %v4384
        %v4386 = vshrl.u32 %v4202, 16
        %v4388 = vrot.slane %v4386, 4
        %v4389 = vor.u32 %v4388, %v4384
        %v4390 = vrot.slane %v4389, 4
        %v4392 = vshll.u32 %v4203, 16
        %v4394 = vrot.slane %v4392, 5
        %v4395 = vsel %vm968, %v4390, %v4394
        %v4420 = vrot.slane %v4180, 5
        %v4421 = vrot.slane %v4420, 4
        %v4422 = vrot.slane %v4181, 5
        %v4423 = vsel %vm1241, %v4421, %v4422
        %v4424 = vrot.slane %v4422, 4
        %v4425 = vrot.slane %v4182, 5
        %v4426 = vsel %vm1241, %v4424, %v4425
        %v4427 = vrot.slane %v4183, 5
        %v4428 = vrot.slane %v4427, 4
        %v4429 = vrot.slane %v4184, 5
        %v4430 = vsel %vm1241, %v4428, %v4429
        %v4431 = vrot.slane %v4429, 4
        %v4432 = vrot.slane %v4185, 5
        %v4433 = vsel %vm1241, %v4431, %v4432
        %v4434 = vrot.slane %v4186, 5
        %v4435 = vrot.slane %v4434, 4
        %v4436 = vrot.slane %v4187, 5
        %v4437 = vsel %vm1241, %v4435, %v4436
        %v4438 = vrot.slane %v4436, 4
        %v4439 = vrot.slane %v4188, 5
        %v4440 = vsel %vm1241, %v4438, %v4439
        %v4441 = vrot.slane %v4189, 5
        %v4442 = vrot.slane %v4441, 4
        %v4443 = vrot.slane %v4190, 5
        %v4444 = vsel %vm1241, %v4442, %v4443
        %v4445 = vrot.slane %v4443, 4
        %v4446 = vrot.slane %v4191, 5
        %v4447 = vsel %vm1241, %v4445, %v4446
        %v4448 = vrot.slane %v4192, 5
        %v4449 = vrot.slane %v4448, 4
        %v4450 = vrot.slane %v4193, 5
        %v4451 = vsel %vm1241, %v4449, %v4450
        %v4452 = vrot.slane %v4450, 4
        %v4453 = vrot.slane %v4194, 5
        %v4454 = vsel %vm1241, %v4452, %v4453
        %v4455 = vrot.slane %v4195, 5
        %v4456 = vrot.slane %v4455, 4
        %v4457 = vrot.slane %v4196, 5
        %v4458 = vsel %vm1241, %v4456, %v4457
        %v4459 = vrot.slane %v4457, 4
        %v4460 = vrot.slane %v4197, 5
        %v4461 = vsel %vm1241, %v4459, %v4460
        %v4462 = vrot.slane %v4198, 5
        %v4463 = vrot.slane %v4462, 4
        %v4464 = vrot.slane %v4199, 5
        %v4465 = vsel %vm1241, %v4463, %v4464
        %v4466 = vrot.slane %v4464, 4
        %v4467 = vrot.slane %v4200, 5
        %v4468 = vsel %vm1241, %v4466, %v4467
        %v4469 = vrot.slane %v4201, 5
        %v4470 = vrot.slane %v4469, 4
        %v4471 = vrot.slane %v4202, 5
        %v4472 = vsel %vm1241, %v4470, %v4471
        %v4473 = vrot.slane %v4471, 4
        %v4474 = vrot.slane %v4203, 5
        %v4475 = vsel %vm1241, %v4473, %v4474
        %v4476 = vunpack.c.l.b16 %v4180
        %v4477 = vunpack.c.l.b16 %v4181
        %v4478 = vunpack.c.l.b16 %v4183
        %v4479 = vunpack.c.l.b16 %v4184
        %v4480 = vunpack.c.l.b16 %v4186
        %v4481 = vunpack.c.l.b16 %v4187
        %v4482 = vunpack.c.l.b16 %v4189
        %v4483 = vunpack.c.l.b16 %v4190
        %v4484 = vunpack.c.l.b16 %v4192
        %v4485 = vunpack.c.l.b16 %v4193
        %v4486 = vunpack.c.l.b16 %v4195
        %v4487 = vunpack.c.l.b16 %v4196
        %v4488 = vunpack.c.l.b16 %v4198
        %v4489 = vunpack.c.l.b16 %v4199
        %v4490 = vunpack.c.l.b16 %v4201
        %v4491 = vunpack.c.l.b16 %v4202
        %v4492 = vpack.c.b16 %v4477, %v4476
        %v4493 = vpack.c.b16 %v4479, %v4478
        %v4494 = vpack.c.b16 %v4481, %v4480
        %v4495 = vpack.c.b16 %v4483, %v4482
        %v4496 = vpack.c.b16 %v4485, %v4484
        %v4497 = vpack.c.b16 %v4487, %v4486
        %v4498 = vpack.c.b16 %v4489, %v4488
        %v4499 = vpack.c.b16 %v4491, %v4490
        %v4500 = vunpack.c.l.b16 %v4217
        %v4501 = vunpack.c.l.b16 %v4227
        %v4502 = vunpack.c.l.b16 %v4241
        %v4503 = vunpack.c.l.b16 %v4251
        %v4504 = vunpack.c.l.b16 %v4265
        %v4505 = vunpack.c.l.b16 %v4275
        %v4506 = vunpack.c.l.b16 %v4289
        %v4507 = vunpack.c.l.b16 %v4299
        %v4508 = vunpack.c.l.b16 %v4313
        %v4509 = vunpack.c.l.b16 %v4323
        %v4510 = vunpack.c.l.b16 %v4337
        %v4511 = vunpack.c.l.b16 %v4347
        %v4512 = vunpack.c.l.b16 %v4361
        %v4513 = vunpack.c.l.b16 %v4371
        %v4514 = vunpack.c.l.b16 %v4385
        %v4515 = vunpack.c.l.b16 %v4395
        %v4516 = vpack.c.b16 %v4501, %v4500
        %v4517 = vpack.c.b16 %v4503, %v4502
        %v4518 = vpack.c.b16 %v4505, %v4504
        %v4519 = vpack.c.b16 %v4507, %v4506
        %v4520 = vpack.c.b16 %v4509, %v4508
        %v4521 = vpack.c.b16 %v4511, %v4510
        %v4522 = vpack.c.b16 %v4513, %v4512
        %v4523 = vpack.c.b16 %v4515, %v4514
        %4524 = vrot.lane.b32.xlu0 %v4516, 64
        %v4525 = vpop.permute.xlu0 %4524
        %4526 = vrot.lane.b32.xlu0 %v4517, 64
        %v4527 = vpop.permute.xlu0 %4526
        %4528 = vrot.lane.b32.xlu0 %v4518, 64
        %v4529 = vpop.permute.xlu0 %4528
        %4530 = vrot.lane.b32.xlu0 %v4519, 64
        %v4531 = vpop.permute.xlu0 %4530
        %4532 = vrot.lane.b32.xlu0 %v4520, 64
        %v4533 = vpop.permute.xlu0 %4532
        %4534 = vrot.lane.b32.xlu0 %v4521, 64
        %v4535 = vpop.permute.xlu0 %4534
        %4536 = vrot.lane.b32.xlu0 %v4522, 64
        %v4537 = vpop.permute.xlu0 %4536
        %4538 = vrot.lane.b32.xlu0 %v4523, 64
        %v4539 = vpop.permute.xlu0 %4538
        %v4540 = vunpack.c.l.b16 %v4423
        %v4541 = vunpack.c.l.b16 %v4426
        %v4542 = vunpack.c.l.b16 %v4430
        %v4543 = vunpack.c.l.b16 %v4433
        %v4544 = vunpack.c.l.b16 %v4437
        %v4545 = vunpack.c.l.b16 %v4440
        %v4546 = vunpack.c.l.b16 %v4444
        %v4547 = vunpack.c.l.b16 %v4447
        %v4548 = vunpack.c.l.b16 %v4451
        %v4549 = vunpack.c.l.b16 %v4454
        %v4550 = vunpack.c.l.b16 %v4458
        %v4551 = vunpack.c.l.b16 %v4461
        %v4552 = vunpack.c.l.b16 %v4465
        %v4553 = vunpack.c.l.b16 %v4468
        %v4554 = vunpack.c.l.b16 %v4472
        %v4555 = vunpack.c.l.b16 %v4475
        %v4556 = vpack.c.b16 %v4541, %v4540
        %v4557 = vpack.c.b16 %v4543, %v4542
        %v4558 = vpack.c.b16 %v4545, %v4544
        %v4559 = vpack.c.b16 %v4547, %v4546
        %v4560 = vpack.c.b16 %v4549, %v4548
        %v4561 = vpack.c.b16 %v4551, %v4550
        %v4562 = vpack.c.b16 %v4553, %v4552
        %v4563 = vpack.c.b16 %v4555, %v4554
        %v4566 = vsel %vm1422, %v4492, %v4525
        %v4570 = vsel %vm1422, %v4493, %v4527
        %v4574 = vsel %vm1422, %v4494, %v4529
        %v4578 = vsel %vm1422, %v4495, %v4531
        %v4582 = vsel %vm1422, %v4496, %v4533
        %v4586 = vsel %vm1422, %v4497, %v4535
        %v4590 = vsel %vm1422, %v4498, %v4537
        %v4594 = vsel %vm1422, %v4499, %v4539
        %s4596 = scalar_lea.vmem %s3, 96
        %v4597 = vld [vmem:[%s4596] sm:$0xf]
        %v4598 = vld [vmem:[%s4596 + $0x4] sm:$0xf]
        %v4599 = vld [vmem:[%s4596 + $0x8] sm:$0xf]
        %v4600 = vld [vmem:[%s4596 + $0xc] sm:$0xf]
        %v4601 = vld [vmem:[%s4596 + $0x10] sm:$0xf]
        %v4602 = vld [vmem:[%s4596 + $0x14] sm:$0xf]
        %v4603 = vld [vmem:[%s4596 + $0x18] sm:$0xf]
        %v4604 = vld [vmem:[%s4596 + $0x1c] sm:$0xf]
        %v4605 = vld [vmem:[%s4596 + $0x20] sm:$0xf]
        %v4606 = vld [vmem:[%s4596 + $0x24] sm:$0xf]
        %v4607 = vld [vmem:[%s4596 + $0x28] sm:$0xf]
        %v4608 = vld [vmem:[%s4596 + $0x2c] sm:$0xf]
        %v4609 = vld [vmem:[%s4596 + $0x30] sm:$0xf]
        %v4610 = vld [vmem:[%s4596 + $0x34] sm:$0xf]
        %v4611 = vld [vmem:[%s4596 + $0x38] sm:$0xf]
        %v4612 = vld [vmem:[%s4596 + $0x3c] sm:$0xf]
        %v4613 = vld [vmem:[%s4596 + $0x40] sm:$0xf]
        %v4614 = vld [vmem:[%s4596 + $0x44] sm:$0xf]
        %v4615 = vld [vmem:[%s4596 + $0x48] sm:$0xf]
        %v4616 = vld [vmem:[%s4596 + $0x4c] sm:$0xf]
        %v4617 = vld [vmem:[%s4596 + $0x50] sm:$0xf]
        %v4618 = vld [vmem:[%s4596 + $0x54] sm:$0xf]
        %v4619 = vld [vmem:[%s4596 + $0x58] sm:$0xf]
        %v4620 = vld [vmem:[%s4596 + $0x5c] sm:$0xf]
        %v4645 = vunpack.c.l.b16 %v4597
        %v4646 = vunpack.c.l.b16 %v4598
        %v4647 = vunpack.c.l.b16 %v4599
        %v4648 = vunpack.c.l.b16 %v4600
        %v4649 = vunpack.c.l.b16 %v4601
        %v4650 = vunpack.c.l.b16 %v4602
        %v4651 = vunpack.c.l.b16 %v4603
        %v4652 = vunpack.c.l.b16 %v4604
        %v4653 = vunpack.c.l.b16 %v4605
        %v4654 = vunpack.c.l.b16 %v4606
        %v4655 = vunpack.c.l.b16 %v4607
        %v4656 = vunpack.c.l.b16 %v4608
        %v4657 = vunpack.c.l.b16 %v4609
        %v4658 = vunpack.c.l.b16 %v4610
        %v4659 = vunpack.c.l.b16 %v4611
        %v4660 = vunpack.c.l.b16 %v4612
        %v4661 = vunpack.c.l.b16 %v4613
        %v4662 = vunpack.c.l.b16 %v4614
        %v4663 = vunpack.c.l.b16 %v4615
        %v4664 = vunpack.c.l.b16 %v4616
        %v4665 = vunpack.c.l.b16 %v4617
        %v4666 = vunpack.c.l.b16 %v4618
        %v4667 = vunpack.c.l.b16 %v4619
        %v4668 = vunpack.c.l.b16 %v4620
        %v4669 = vpack.c.b16 %v4646, %v4645
        %v4670 = vpack.c.b16 %v4648, %v4647
        %v4671 = vpack.c.b16 %v4650, %v4649
        %v4672 = vpack.c.b16 %v4652, %v4651
        %v4673 = vpack.c.b16 %v4654, %v4653
        %v4674 = vpack.c.b16 %v4656, %v4655
        %v4675 = vpack.c.b16 %v4658, %v4657
        %v4676 = vpack.c.b16 %v4660, %v4659
        %v4677 = vpack.c.b16 %v4662, %v4661
        %v4678 = vpack.c.b16 %v4664, %v4663
        %v4679 = vpack.c.b16 %v4666, %v4665
        %v4680 = vpack.c.b16 %v4668, %v4667
        %v4694 = vsel %vm1422, %v4556, 0
        %v4697 = vsel %vm1422, %v4557, 0
        %v4700 = vsel %vm1422, %v4558, 0
        %v4703 = vsel %vm1422, %v4559, 0
        %v4706 = vsel %vm1422, %v4560, 0
        %v4709 = vsel %vm1422, %v4561, 0
        %v4712 = vsel %vm1422, %v4562, 0
        %v4715 = vsel %vm1422, %v4563, 0
        %4717 = vmatprep.subr.bf16.mxu0 0
        %4718 = vmatpush1.bf16.msra.mxu0 %v4676
        %4719 = vmatprep.subr.bf16.mxu0 0
        %4720 = vmatpush1.bf16.msra.mxu0 %v4675
        %4721 = vmatprep.subr.bf16.mxu0 0
        %4722 = vmatpush1.bf16.msra.mxu0 %v4674
        %4723 = vmatprep.subr.bf16.mxu0 0
        %4724 = vmatpush1.bf16.msra.mxu0 %v4673
        %4725 = vmatprep.subr.bf16.mxu0 0
        %4726 = vmatpush1.bf16.msra.mxu0 %v4672
        %4727 = vmatprep.subr.bf16.mxu0 0
        %4728 = vmatpush1.bf16.msra.mxu0 %v4671
        %4729 = vmatprep.subr.bf16.mxu0 0
        %4730 = vmatpush1.bf16.msra.mxu0 %v4670
        %4731 = vmatprep.subr.bf16.mxu0 0
        %4732 = vmatpush1.bf16.msra.mxu0 %v4669
        %4733 = vmatprep.subr.bf16.mxu0 0
        %4734 = vmatpush2.bf16.msra.mxu0 0
        %4735 = vmatprep.subr.bf16.mxu0 0
        %4736 = vmatpush2.bf16.msra.mxu0 0
        %4737 = vmatprep.subr.bf16.mxu0 0
        %4738 = vmatpush2.bf16.msra.mxu0 0
        %4739 = vmatprep.subr.bf16.mxu0 0
        %4740 = vmatpush2.bf16.msra.mxu0 0
        %4741 = vmatprep.subr.bf16.mxu0 0
        %4742 = vmatpush2.bf16.msra.mxu0 %v4680
        %4743 = vmatprep.subr.bf16.mxu0 0
        %4744 = vmatpush2.bf16.msra.mxu0 %v4679
        %4745 = vmatprep.subr.bf16.mxu0 0
        %4746 = vmatpush2.bf16.msra.mxu0 %v4678
        %4747 = vmatprep.subr.bf16.mxu0 0
        %4748 = vmatpush2.bf16.msra.mxu0 %v4677
        %4749 = vmatprep.mubr.bf16.mxu0 %v4694
        %4750 = vmatmul.mubr.bf16.gmra.mxu0 %v4566
        %v4751 = vpop.f32.mrf.mxu0
        %v4752 = vadd.f32 0.0, %v4751
        %v4753 = vpop.f32.mrf.mxu0
        %v4754 = vpop.f32.mrf.mxu0
        %v4755 = vadd.f32 0.0, %v4754
        %v4756 = vpop.f32.mrf.mxu0
        %4757 = vmatprep.mubr.bf16.mxu0 %v4697
        %4758 = vmatmul.mubr.bf16.gmra.mxu0 %v4570
        %v4759 = vpop.f32.mrf.mxu0
        %v4760 = vadd.f32 0.0, %v4759
        %v4761 = vpop.f32.mrf.mxu0
        %v4762 = vpop.f32.mrf.mxu0
        %v4763 = vadd.f32 0.0, %v4762
        %v4764 = vpop.f32.mrf.mxu0
        %4765 = vmatprep.mubr.bf16.mxu0 %v4700
        %4766 = vmatmul.mubr.bf16.gmra.mxu0 %v4574
        %v4767 = vpop.f32.mrf.mxu0
        %v4768 = vadd.f32 0.0, %v4767
        %v4769 = vpop.f32.mrf.mxu0
        %v4770 = vpop.f32.mrf.mxu0
        %v4771 = vadd.f32 0.0, %v4770
        %v4772 = vpop.f32.mrf.mxu0
        %4773 = vmatprep.mubr.bf16.mxu0 %v4703
        %4774 = vmatmul.mubr.bf16.gmra.mxu0 %v4578
        %v4775 = vpop.f32.mrf.mxu0
        %v4776 = vadd.f32 0.0, %v4775
        %v4777 = vpop.f32.mrf.mxu0
        %v4778 = vpop.f32.mrf.mxu0
        %v4779 = vadd.f32 0.0, %v4778
        %v4780 = vpop.f32.mrf.mxu0
        %4781 = vmatprep.mubr.bf16.mxu0 %v4706
        %4782 = vmatmul.mubr.bf16.gmra.mxu0 %v4582
        %v4783 = vpop.f32.mrf.mxu0
        %v4784 = vadd.f32 0.0, %v4783
        %v4785 = vpop.f32.mrf.mxu0
        %v4786 = vpop.f32.mrf.mxu0
        %v4787 = vadd.f32 0.0, %v4786
        %v4788 = vpop.f32.mrf.mxu0
        %4789 = vmatprep.mubr.bf16.mxu0 %v4709
        %4790 = vmatmul.mubr.bf16.gmra.mxu0 %v4586
        %v4791 = vpop.f32.mrf.mxu0
        %v4792 = vadd.f32 0.0, %v4791
        %v4793 = vpop.f32.mrf.mxu0
        %v4794 = vpop.f32.mrf.mxu0
        %v4795 = vadd.f32 0.0, %v4794
        %v4796 = vpop.f32.mrf.mxu0
        %4797 = vmatprep.mubr.bf16.mxu0 %v4712
        %4798 = vmatmul.mubr.bf16.gmra.mxu0 %v4590
        %v4799 = vpop.f32.mrf.mxu0
        %v4800 = vadd.f32 0.0, %v4799
        %v4801 = vpop.f32.mrf.mxu0
        %v4802 = vpop.f32.mrf.mxu0
        %v4803 = vadd.f32 0.0, %v4802
        %v4804 = vpop.f32.mrf.mxu0
        %4805 = vmatprep.mubr.bf16.mxu0 %v4715
        %4806 = vmatmul.mubr.bf16.gmra.mxu0 %v4594
        %v4807 = vpop.f32.mrf.mxu0
        %v4808 = vadd.f32 0.0, %v4807
        %v4809 = vpop.f32.mrf.mxu0
        %v4810 = vpop.f32.mrf.mxu0
        %v4811 = vadd.f32 0.0, %v4810
        %v4812 = vpop.f32.mrf.mxu0
        %4813 = vdwg.mxu0
        %v4838 = vunpack.c.l.b16 %v4155
        %v4839 = vunpack.c.l.b16 %v4156
        %v4840 = vunpack.c.l.b16 %v4157
        %v4841 = vunpack.c.l.b16 %v4158
        %v4842 = vunpack.c.l.b16 %v4159
        %v4843 = vunpack.c.l.b16 %v4160
        %v4844 = vunpack.c.l.b16 %v4161
        %v4845 = vunpack.c.l.b16 %v4162
        %v4846 = vunpack.c.l.b16 %v4163
        %v4847 = vunpack.c.l.b16 %v4164
        %v4848 = vunpack.c.l.b16 %v4165
        %v4849 = vunpack.c.l.b16 %v4166
        %v4850 = vunpack.c.l.b16 %v4167
        %v4851 = vunpack.c.l.b16 %v4168
        %v4852 = vunpack.c.l.b16 %v4169
        %v4853 = vunpack.c.l.b16 %v4170
        %v4854 = vunpack.c.l.b16 %v4171
        %v4855 = vunpack.c.l.b16 %v4172
        %v4856 = vunpack.c.l.b16 %v4173
        %v4857 = vunpack.c.l.b16 %v4174
        %v4858 = vunpack.c.l.b16 %v4175
        %v4859 = vunpack.c.l.b16 %v4176
        %v4860 = vunpack.c.l.b16 %v4177
        %v4861 = vunpack.c.l.b16 %v4178
        %v4862 = vpack.c.b16 %v4839, %v4838
        %v4863 = vpack.c.b16 %v4841, %v4840
        %v4864 = vpack.c.b16 %v4843, %v4842
        %v4865 = vpack.c.b16 %v4845, %v4844
        %v4866 = vpack.c.b16 %v4847, %v4846
        %v4867 = vpack.c.b16 %v4849, %v4848
        %v4868 = vpack.c.b16 %v4851, %v4850
        %v4869 = vpack.c.b16 %v4853, %v4852
        %v4870 = vpack.c.b16 %v4855, %v4854
        %v4871 = vpack.c.b16 %v4857, %v4856
        %v4872 = vpack.c.b16 %v4859, %v4858
        %v4873 = vpack.c.b16 %v4861, %v4860
        %v4887 = vsel %vm1422, %v4115, 0
        %v4890 = vsel %vm1422, %v4116, 0
        %v4893 = vsel %vm1422, %v4117, 0
        %v4896 = vsel %vm1422, %v4118, 0
        %v4899 = vsel %vm1422, %v4119, 0
        %v4902 = vsel %vm1422, %v4120, 0
        %v4905 = vsel %vm1422, %v4121, 0
        %v4908 = vsel %vm1422, %v4122, 0
        %4910 = vmatprep.subr.bf16.mxu0 0
        %4911 = vmatpush1.bf16.msra.mxu0 %v4869
        %4912 = vmatprep.subr.bf16.mxu0 0
        %4913 = vmatpush1.bf16.msra.mxu0 %v4868
        %4914 = vmatprep.subr.bf16.mxu0 0
        %4915 = vmatpush1.bf16.msra.mxu0 %v4867
        %4916 = vmatprep.subr.bf16.mxu0 0
        %4917 = vmatpush1.bf16.msra.mxu0 %v4866
        %4918 = vmatprep.subr.bf16.mxu0 0
        %4919 = vmatpush1.bf16.msra.mxu0 %v4865
        %4920 = vmatprep.subr.bf16.mxu0 0
        %4921 = vmatpush1.bf16.msra.mxu0 %v4864
        %4922 = vmatprep.subr.bf16.mxu0 0
        %4923 = vmatpush1.bf16.msra.mxu0 %v4863
        %4924 = vmatprep.subr.bf16.mxu0 0
        %4925 = vmatpush1.bf16.msra.mxu0 %v4862
        %4926 = vmatprep.subr.bf16.mxu0 0
        %4927 = vmatpush2.bf16.msra.mxu0 0
        %4928 = vmatprep.subr.bf16.mxu0 0
        %4929 = vmatpush2.bf16.msra.mxu0 0
        %4930 = vmatprep.subr.bf16.mxu0 0
        %4931 = vmatpush2.bf16.msra.mxu0 0
        %4932 = vmatprep.subr.bf16.mxu0 0
        %4933 = vmatpush2.bf16.msra.mxu0 0
        %4934 = vmatprep.subr.bf16.mxu0 0
        %4935 = vmatpush2.bf16.msra.mxu0 %v4873
        %4936 = vmatprep.subr.bf16.mxu0 0
        %4937 = vmatpush2.bf16.msra.mxu0 %v4872
        %4938 = vmatprep.subr.bf16.mxu0 0
        %4939 = vmatpush2.bf16.msra.mxu0 %v4871
        %4940 = vmatprep.subr.bf16.mxu0 0
        %4941 = vmatpush2.bf16.msra.mxu0 %v4870
        %4942 = vmatprep.mubr.bf16.mxu0 %v4887
        %4943 = vmatmul.mubr.bf16.gmra.mxu0 %v4125
        %v4944 = vpop.f32.mrf.mxu0
        %v4945 = vadd.f32 %v4752, %v4944
        %v4946 = vpop.f32.mrf.mxu0
        %v4947 = vpop.f32.mrf.mxu0
        %v4948 = vadd.f32 %v4755, %v4947
        %v4949 = vpop.f32.mrf.mxu0
        %4950 = vmatprep.mubr.bf16.mxu0 %v4890
        %4951 = vmatmul.mubr.bf16.gmra.mxu0 %v4129
        %v4952 = vpop.f32.mrf.mxu0
        %v4953 = vadd.f32 %v4760, %v4952
        %v4954 = vpop.f32.mrf.mxu0
        %v4955 = vpop.f32.mrf.mxu0
        %v4956 = vadd.f32 %v4763, %v4955
        %v4957 = vpop.f32.mrf.mxu0
        %4958 = vmatprep.mubr.bf16.mxu0 %v4893
        %4959 = vmatmul.mubr.bf16.gmra.mxu0 %v4133
        %v4960 = vpop.f32.mrf.mxu0
        %v4961 = vadd.f32 %v4768, %v4960
        %v4962 = vpop.f32.mrf.mxu0
        %v4963 = vpop.f32.mrf.mxu0
        %v4964 = vadd.f32 %v4771, %v4963
        %v4965 = vpop.f32.mrf.mxu0
        %4966 = vmatprep.mubr.bf16.mxu0 %v4896
        %4967 = vmatmul.mubr.bf16.gmra.mxu0 %v4137
        %v4968 = vpop.f32.mrf.mxu0
        %v4969 = vadd.f32 %v4776, %v4968
        %v4970 = vpop.f32.mrf.mxu0
        %v4971 = vpop.f32.mrf.mxu0
        %v4972 = vadd.f32 %v4779, %v4971
        %v4973 = vpop.f32.mrf.mxu0
        %4974 = vmatprep.mubr.bf16.mxu0 %v4899
        %4975 = vmatmul.mubr.bf16.gmra.mxu0 %v4141
        %v4976 = vpop.f32.mrf.mxu0
        %v4977 = vadd.f32 %v4784, %v4976
        %v4978 = vpop.f32.mrf.mxu0
        %v4979 = vpop.f32.mrf.mxu0
        %v4980 = vadd.f32 %v4787, %v4979
        %v4981 = vpop.f32.mrf.mxu0
        %4982 = vmatprep.mubr.bf16.mxu0 %v4902
        %4983 = vmatmul.mubr.bf16.gmra.mxu0 %v4145
        %v4984 = vpop.f32.mrf.mxu0
        %v4985 = vadd.f32 %v4792, %v4984
        %v4986 = vpop.f32.mrf.mxu0
        %v4987 = vpop.f32.mrf.mxu0
        %v4988 = vadd.f32 %v4795, %v4987
        %v4989 = vpop.f32.mrf.mxu0
        %4990 = vmatprep.mubr.bf16.mxu0 %v4905
        %4991 = vmatmul.mubr.bf16.gmra.mxu0 %v4149
        %v4992 = vpop.f32.mrf.mxu0
        %v4993 = vadd.f32 %v4800, %v4992
        %v4994 = vpop.f32.mrf.mxu0
        %v4995 = vpop.f32.mrf.mxu0
        %v4996 = vadd.f32 %v4803, %v4995
        %v4997 = vpop.f32.mrf.mxu0
        %4998 = vmatprep.mubr.bf16.mxu0 %v4908
        %4999 = vmatmul.mubr.bf16.gmra.mxu0 %v4153
        %v5000 = vpop.f32.mrf.mxu0
        %v5001 = vadd.f32 %v4808, %v5000
        %v5002 = vpop.f32.mrf.mxu0
        %v5003 = vpop.f32.mrf.mxu0
        %v5004 = vadd.f32 %v4811, %v5003
        %v5005 = vpop.f32.mrf.mxu0
        %5006 = vdwg.mxu0
        %s5007 = scalar_lea.vmem [#allocation3], 24
        %v5008 = vld [vmem:[%s5007] sm:$0xf]
        %v5009 = vld [vmem:[%s5007 + $0x4] sm:$0xf]
        %v5010 = vld [vmem:[%s5007 + $0x8] sm:$0x1]
        %v5011 = vld [vmem:[%s5007 + $0xc] sm:$0xf]
        %v5012 = vld [vmem:[%s5007 + $0x10] sm:$0xf]
        %v5013 = vld [vmem:[%s5007 + $0x14] sm:$0x1]
        %v5014 = vld [vmem:[%s5007 + $0x18] sm:$0xf]
        %v5015 = vld [vmem:[%s5007 + $0x1c] sm:$0xf]
        %v5016 = vld [vmem:[%s5007 + $0x20] sm:$0x1]
        %v5017 = vld [vmem:[%s5007 + $0x24] sm:$0xf]
        %v5018 = vld [vmem:[%s5007 + $0x28] sm:$0xf]
        %v5019 = vld [vmem:[%s5007 + $0x2c] sm:$0x1]
        %v5020 = vld [vmem:[%s5007 + $0x30] sm:$0xf]
        %v5021 = vld [vmem:[%s5007 + $0x34] sm:$0xf]
        %v5022 = vld [vmem:[%s5007 + $0x38] sm:$0x1]
        %v5023 = vld [vmem:[%s5007 + $0x3c] sm:$0xf]
        %v5024 = vld [vmem:[%s5007 + $0x40] sm:$0xf]
        %v5025 = vld [vmem:[%s5007 + $0x44] sm:$0x1]
        %v5026 = vld [vmem:[%s5007 + $0x48] sm:$0xf]
        %v5027 = vld [vmem:[%s5007 + $0x4c] sm:$0xf]
        %v5028 = vld [vmem:[%s5007 + $0x50] sm:$0x1]
        %v5029 = vld [vmem:[%s5007 + $0x54] sm:$0xf]
        %v5030 = vld [vmem:[%s5007 + $0x58] sm:$0xf]
        %v5031 = vld [vmem:[%s5007 + $0x5c] sm:$0x1]
        %v5033 = vshrl.u32 %v5008, 16
        %v5035 = vrot.slane %v5033, 4
        %v5036 = vshll.u32 %v5008, 16
        %v5038 = vrot.slane %v5036, 5
        %v5039 = vor.u32 %v5035, %v5038
        %v5040 = vrot.slane %v5039, 4
        %v5042 = vshll.u32 %v5009, 16
        %v5044 = vrot.slane %v5042, 5
        %v5045 = vsel %vm968, %v5040, %v5044
        %v5046 = vshrl.u32 %v5009, 16
        %v5048 = vrot.slane %v5046, 4
        %v5049 = vor.u32 %v5048, %v5044
        %v5050 = vrot.slane %v5049, 4
        %v5052 = vshll.u32 %v5010, 16
        %v5054 = vrot.slane %v5052, 5
        %v5055 = vsel %vm968, %v5050, %v5054
        %v5057 = vshrl.u32 %v5011, 16
        %v5059 = vrot.slane %v5057, 4
        %v5060 = vshll.u32 %v5011, 16
        %v5062 = vrot.slane %v5060, 5
        %v5063 = vor.u32 %v5059, %v5062
        %v5064 = vrot.slane %v5063, 4
        %v5066 = vshll.u32 %v5012, 16
        %v5068 = vrot.slane %v5066, 5
        %v5069 = vsel %vm968, %v5064, %v5068
        %v5070 = vshrl.u32 %v5012, 16
        %v5072 = vrot.slane %v5070, 4
        %v5073 = vor.u32 %v5072, %v5068
        %v5074 = vrot.slane %v5073, 4
        %v5076 = vshll.u32 %v5013, 16
        %v5078 = vrot.slane %v5076, 5
        %v5079 = vsel %vm968, %v5074, %v5078
        %v5081 = vshrl.u32 %v5014, 16
        %v5083 = vrot.slane %v5081, 4
        %v5084 = vshll.u32 %v5014, 16
        %v5086 = vrot.slane %v5084, 5
        %v5087 = vor.u32 %v5083, %v5086
        %v5088 = vrot.slane %v5087, 4
        %v5090 = vshll.u32 %v5015, 16
        %v5092 = vrot.slane %v5090, 5
        %v5093 = vsel %vm968, %v5088, %v5092
        %v5094 = vshrl.u32 %v5015, 16
        %v5096 = vrot.slane %v5094, 4
        %v5097 = vor.u32 %v5096, %v5092
        %v5098 = vrot.slane %v5097, 4
        %v5100 = vshll.u32 %v5016, 16
        %v5102 = vrot.slane %v5100, 5
        %v5103 = vsel %vm968, %v5098, %v5102
        %v5105 = vshrl.u32 %v5017, 16
        %v5107 = vrot.slane %v5105, 4
        %v5108 = vshll.u32 %v5017, 16
        %v5110 = vrot.slane %v5108, 5
        %v5111 = vor.u32 %v5107, %v5110
        %v5112 = vrot.slane %v5111, 4
        %v5114 = vshll.u32 %v5018, 16
        %v5116 = vrot.slane %v5114, 5
        %v5117 = vsel %vm968, %v5112, %v5116
        %v5118 = vshrl.u32 %v5018, 16
        %v5120 = vrot.slane %v5118, 4
        %v5121 = vor.u32 %v5120, %v5116
        %v5122 = vrot.slane %v5121, 4
        %v5124 = vshll.u32 %v5019, 16
        %v5126 = vrot.slane %v5124, 5
        %v5127 = vsel %vm968, %v5122, %v5126
        %v5129 = vshrl.u32 %v5020, 16
        %v5131 = vrot.slane %v5129, 4
        %v5132 = vshll.u32 %v5020, 16
        %v5134 = vrot.slane %v5132, 5
        %v5135 = vor.u32 %v5131, %v5134
        %v5136 = vrot.slane %v5135, 4
        %v5138 = vshll.u32 %v5021, 16
        %v5140 = vrot.slane %v5138, 5
        %v5141 = vsel %vm968, %v5136, %v5140
        %v5142 = vshrl.u32 %v5021, 16
        %v5144 = vrot.slane %v5142, 4
        %v5145 = vor.u32 %v5144, %v5140
        %v5146 = vrot.slane %v5145, 4
        %v5148 = vshll.u32 %v5022, 16
        %v5150 = vrot.slane %v5148, 5
        %v5151 = vsel %vm968, %v5146, %v5150
        %v5153 = vshrl.u32 %v5023, 16
        %v5155 = vrot.slane %v5153, 4
        %v5156 = vshll.u32 %v5023, 16
        %v5158 = vrot.slane %v5156, 5
        %v5159 = vor.u32 %v5155, %v5158
        %v5160 = vrot.slane %v5159, 4
        %v5162 = vshll.u32 %v5024, 16
        %v5164 = vrot.slane %v5162, 5
        %v5165 = vsel %vm968, %v5160, %v5164
        %v5166 = vshrl.u32 %v5024, 16
        %v5168 = vrot.slane %v5166, 4
        %v5169 = vor.u32 %v5168, %v5164
        %v5170 = vrot.slane %v5169, 4
        %v5172 = vshll.u32 %v5025, 16
        %v5174 = vrot.slane %v5172, 5
        %v5175 = vsel %vm968, %v5170, %v5174
        %v5177 = vshrl.u32 %v5026, 16
        %v5179 = vrot.slane %v5177, 4
        %v5180 = vshll.u32 %v5026, 16
        %v5182 = vrot.slane %v5180, 5
        %v5183 = vor.u32 %v5179, %v5182
        %v5184 = vrot.slane %v5183, 4
        %v5186 = vshll.u32 %v5027, 16
        %v5188 = vrot.slane %v5186, 5
        %v5189 = vsel %vm968, %v5184, %v5188
        %v5190 = vshrl.u32 %v5027, 16
        %v5192 = vrot.slane %v5190, 4
        %v5193 = vor.u32 %v5192, %v5188
        %v5194 = vrot.slane %v5193, 4
        %v5196 = vshll.u32 %v5028, 16
        %v5198 = vrot.slane %v5196, 5
        %v5199 = vsel %vm968, %v5194, %v5198
        %v5201 = vshrl.u32 %v5029, 16
        %v5203 = vrot.slane %v5201, 4
        %v5204 = vshll.u32 %v5029, 16
        %v5206 = vrot.slane %v5204, 5
        %v5207 = vor.u32 %v5203, %v5206
        %v5208 = vrot.slane %v5207, 4
        %v5210 = vshll.u32 %v5030, 16
        %v5212 = vrot.slane %v5210, 5
        %v5213 = vsel %vm968, %v5208, %v5212
        %v5214 = vshrl.u32 %v5030, 16
        %v5216 = vrot.slane %v5214, 4
        %v5217 = vor.u32 %v5216, %v5212
        %v5218 = vrot.slane %v5217, 4
        %v5220 = vshll.u32 %v5031, 16
        %v5222 = vrot.slane %v5220, 5
        %v5223 = vsel %vm968, %v5218, %v5222
        %v5248 = vrot.slane %v5008, 5
        %v5249 = vrot.slane %v5248, 4
        %v5250 = vrot.slane %v5009, 5
        %v5251 = vsel %vm1241, %v5249, %v5250
        %v5252 = vrot.slane %v5250, 4
        %v5253 = vrot.slane %v5010, 5
        %v5254 = vsel %vm1241, %v5252, %v5253
        %v5255 = vrot.slane %v5011, 5
        %v5256 = vrot.slane %v5255, 4
        %v5257 = vrot.slane %v5012, 5
        %v5258 = vsel %vm1241, %v5256, %v5257
        %v5259 = vrot.slane %v5257, 4
        %v5260 = vrot.slane %v5013, 5
        %v5261 = vsel %vm1241, %v5259, %v5260
        %v5262 = vrot.slane %v5014, 5
        %v5263 = vrot.slane %v5262, 4
        %v5264 = vrot.slane %v5015, 5
        %v5265 = vsel %vm1241, %v5263, %v5264
        %v5266 = vrot.slane %v5264, 4
        %v5267 = vrot.slane %v5016, 5
        %v5268 = vsel %vm1241, %v5266, %v5267
        %v5269 = vrot.slane %v5017, 5
        %v5270 = vrot.slane %v5269, 4
        %v5271 = vrot.slane %v5018, 5
        %v5272 = vsel %vm1241, %v5270, %v5271
        %v5273 = vrot.slane %v5271, 4
        %v5274 = vrot.slane %v5019, 5
        %v5275 = vsel %vm1241, %v5273, %v5274
        %v5276 = vrot.slane %v5020, 5
        %v5277 = vrot.slane %v5276, 4
        %v5278 = vrot.slane %v5021, 5
        %v5279 = vsel %vm1241, %v5277, %v5278
        %v5280 = vrot.slane %v5278, 4
        %v5281 = vrot.slane %v5022, 5
        %v5282 = vsel %vm1241, %v5280, %v5281
        %v5283 = vrot.slane %v5023, 5
        %v5284 = vrot.slane %v5283, 4
        %v5285 = vrot.slane %v5024, 5
        %v5286 = vsel %vm1241, %v5284, %v5285
        %v5287 = vrot.slane %v5285, 4
        %v5288 = vrot.slane %v5025, 5
        %v5289 = vsel %vm1241, %v5287, %v5288
        %v5290 = vrot.slane %v5026, 5
        %v5291 = vrot.slane %v5290, 4
        %v5292 = vrot.slane %v5027, 5
        %v5293 = vsel %vm1241, %v5291, %v5292
        %v5294 = vrot.slane %v5292, 4
        %v5295 = vrot.slane %v5028, 5
        %v5296 = vsel %vm1241, %v5294, %v5295
        %v5297 = vrot.slane %v5029, 5
        %v5298 = vrot.slane %v5297, 4
        %v5299 = vrot.slane %v5030, 5
        %v5300 = vsel %vm1241, %v5298, %v5299
        %v5301 = vrot.slane %v5299, 4
        %v5302 = vrot.slane %v5031, 5
        %v5303 = vsel %vm1241, %v5301, %v5302
        %v5304 = vunpack.c.l.b16 %v5008
        %v5305 = vunpack.c.l.b16 %v5009
        %v5306 = vunpack.c.l.b16 %v5011
        %v5307 = vunpack.c.l.b16 %v5012
        %v5308 = vunpack.c.l.b16 %v5014
        %v5309 = vunpack.c.l.b16 %v5015
        %v5310 = vunpack.c.l.b16 %v5017
        %v5311 = vunpack.c.l.b16 %v5018
        %v5312 = vunpack.c.l.b16 %v5020
        %v5313 = vunpack.c.l.b16 %v5021
        %v5314 = vunpack.c.l.b16 %v5023
        %v5315 = vunpack.c.l.b16 %v5024
        %v5316 = vunpack.c.l.b16 %v5026
        %v5317 = vunpack.c.l.b16 %v5027
        %v5318 = vunpack.c.l.b16 %v5029
        %v5319 = vunpack.c.l.b16 %v5030
        %v5320 = vpack.c.b16 %v5305, %v5304
        %v5321 = vpack.c.b16 %v5307, %v5306
        %v5322 = vpack.c.b16 %v5309, %v5308
        %v5323 = vpack.c.b16 %v5311, %v5310
        %v5324 = vpack.c.b16 %v5313, %v5312
        %v5325 = vpack.c.b16 %v5315, %v5314
        %v5326 = vpack.c.b16 %v5317, %v5316
        %v5327 = vpack.c.b16 %v5319, %v5318
        %v5328 = vunpack.c.l.b16 %v5045
        %v5329 = vunpack.c.l.b16 %v5055
        %v5330 = vunpack.c.l.b16 %v5069
        %v5331 = vunpack.c.l.b16 %v5079
        %v5332 = vunpack.c.l.b16 %v5093
        %v5333 = vunpack.c.l.b16 %v5103
        %v5334 = vunpack.c.l.b16 %v5117
        %v5335 = vunpack.c.l.b16 %v5127
        %v5336 = vunpack.c.l.b16 %v5141
        %v5337 = vunpack.c.l.b16 %v5151
        %v5338 = vunpack.c.l.b16 %v5165
        %v5339 = vunpack.c.l.b16 %v5175
        %v5340 = vunpack.c.l.b16 %v5189
        %v5341 = vunpack.c.l.b16 %v5199
        %v5342 = vunpack.c.l.b16 %v5213
        %v5343 = vunpack.c.l.b16 %v5223
        %v5344 = vpack.c.b16 %v5329, %v5328
        %v5345 = vpack.c.b16 %v5331, %v5330
        %v5346 = vpack.c.b16 %v5333, %v5332
        %v5347 = vpack.c.b16 %v5335, %v5334
        %v5348 = vpack.c.b16 %v5337, %v5336
        %v5349 = vpack.c.b16 %v5339, %v5338
        %v5350 = vpack.c.b16 %v5341, %v5340
        %v5351 = vpack.c.b16 %v5343, %v5342
        %5352 = vrot.lane.b32.xlu0 %v5344, 64
        %v5353 = vpop.permute.xlu0 %5352
        %5354 = vrot.lane.b32.xlu0 %v5345, 64
        %v5355 = vpop.permute.xlu0 %5354
        %5356 = vrot.lane.b32.xlu0 %v5346, 64
        %v5357 = vpop.permute.xlu0 %5356
        %5358 = vrot.lane.b32.xlu0 %v5347, 64
        %v5359 = vpop.permute.xlu0 %5358
        %5360 = vrot.lane.b32.xlu0 %v5348, 64
        %v5361 = vpop.permute.xlu0 %5360
        %5362 = vrot.lane.b32.xlu0 %v5349, 64
        %v5363 = vpop.permute.xlu0 %5362
        %5364 = vrot.lane.b32.xlu0 %v5350, 64
        %v5365 = vpop.permute.xlu0 %5364
        %5366 = vrot.lane.b32.xlu0 %v5351, 64
        %v5367 = vpop.permute.xlu0 %5366
        %v5368 = vunpack.c.l.b16 %v5251
        %v5369 = vunpack.c.l.b16 %v5254
        %v5370 = vunpack.c.l.b16 %v5258
        %v5371 = vunpack.c.l.b16 %v5261
        %v5372 = vunpack.c.l.b16 %v5265
        %v5373 = vunpack.c.l.b16 %v5268
        %v5374 = vunpack.c.l.b16 %v5272
        %v5375 = vunpack.c.l.b16 %v5275
        %v5376 = vunpack.c.l.b16 %v5279
        %v5377 = vunpack.c.l.b16 %v5282
        %v5378 = vunpack.c.l.b16 %v5286
        %v5379 = vunpack.c.l.b16 %v5289
        %v5380 = vunpack.c.l.b16 %v5293
        %v5381 = vunpack.c.l.b16 %v5296
        %v5382 = vunpack.c.l.b16 %v5300
        %v5383 = vunpack.c.l.b16 %v5303
        %v5384 = vpack.c.b16 %v5369, %v5368
        %v5385 = vpack.c.b16 %v5371, %v5370
        %v5386 = vpack.c.b16 %v5373, %v5372
        %v5387 = vpack.c.b16 %v5375, %v5374
        %v5388 = vpack.c.b16 %v5377, %v5376
        %v5389 = vpack.c.b16 %v5379, %v5378
        %v5390 = vpack.c.b16 %v5381, %v5380
        %v5391 = vpack.c.b16 %v5383, %v5382
        %v5394 = vsel %vm1422, %v5320, %v5353
        %v5398 = vsel %vm1422, %v5321, %v5355
        %v5402 = vsel %vm1422, %v5322, %v5357
        %v5406 = vsel %vm1422, %v5323, %v5359
        %v5410 = vsel %vm1422, %v5324, %v5361
        %v5414 = vsel %vm1422, %v5325, %v5363
        %v5418 = vsel %vm1422, %v5326, %v5365
        %v5422 = vsel %vm1422, %v5327, %v5367
        %s5424 = scalar_lea.vmem %s3, 192
        %v5425 = vld [vmem:[%s5424] sm:$0xf]
        %v5426 = vld [vmem:[%s5424 + $0x4] sm:$0xf]
        %v5427 = vld [vmem:[%s5424 + $0x8] sm:$0xf]
        %v5428 = vld [vmem:[%s5424 + $0xc] sm:$0xf]
        %v5429 = vld [vmem:[%s5424 + $0x10] sm:$0xf]
        %v5430 = vld [vmem:[%s5424 + $0x14] sm:$0xf]
        %v5431 = vld [vmem:[%s5424 + $0x18] sm:$0xf]
        %v5432 = vld [vmem:[%s5424 + $0x1c] sm:$0xf]
        %v5433 = vld [vmem:[%s5424 + $0x20] sm:$0xf]
        %v5434 = vld [vmem:[%s5424 + $0x24] sm:$0xf]
        %v5435 = vld [vmem:[%s5424 + $0x28] sm:$0xf]
        %v5436 = vld [vmem:[%s5424 + $0x2c] sm:$0xf]
        %v5437 = vld [vmem:[%s5424 + $0x30] sm:$0xf]
        %v5438 = vld [vmem:[%s5424 + $0x34] sm:$0xf]
        %v5439 = vld [vmem:[%s5424 + $0x38] sm:$0xf]
        %v5440 = vld [vmem:[%s5424 + $0x3c] sm:$0xf]
        %v5441 = vld [vmem:[%s5424 + $0x40] sm:$0xf]
        %v5442 = vld [vmem:[%s5424 + $0x44] sm:$0xf]
        %v5443 = vld [vmem:[%s5424 + $0x48] sm:$0xf]
        %v5444 = vld [vmem:[%s5424 + $0x4c] sm:$0xf]
        %v5445 = vld [vmem:[%s5424 + $0x50] sm:$0xf]
        %v5446 = vld [vmem:[%s5424 + $0x54] sm:$0xf]
        %v5447 = vld [vmem:[%s5424 + $0x58] sm:$0xf]
        %v5448 = vld [vmem:[%s5424 + $0x5c] sm:$0xf]
        %v5473 = vunpack.c.l.b16 %v5425
        %v5474 = vunpack.c.l.b16 %v5426
        %v5475 = vunpack.c.l.b16 %v5427
        %v5476 = vunpack.c.l.b16 %v5428
        %v5477 = vunpack.c.l.b16 %v5429
        %v5478 = vunpack.c.l.b16 %v5430
        %v5479 = vunpack.c.l.b16 %v5431
        %v5480 = vunpack.c.l.b16 %v5432
        %v5481 = vunpack.c.l.b16 %v5433
        %v5482 = vunpack.c.l.b16 %v5434
        %v5483 = vunpack.c.l.b16 %v5435
        %v5484 = vunpack.c.l.b16 %v5436
        %v5485 = vunpack.c.l.b16 %v5437
        %v5486 = vunpack.c.l.b16 %v5438
        %v5487 = vunpack.c.l.b16 %v5439
        %v5488 = vunpack.c.l.b16 %v5440
        %v5489 = vunpack.c.l.b16 %v5441
        %v5490 = vunpack.c.l.b16 %v5442
        %v5491 = vunpack.c.l.b16 %v5443
        %v5492 = vunpack.c.l.b16 %v5444
        %v5493 = vunpack.c.l.b16 %v5445
        %v5494 = vunpack.c.l.b16 %v5446
        %v5495 = vunpack.c.l.b16 %v5447
        %v5496 = vunpack.c.l.b16 %v5448
        %v5497 = vpack.c.b16 %v5474, %v5473
        %v5498 = vpack.c.b16 %v5476, %v5475
        %v5499 = vpack.c.b16 %v5478, %v5477
        %v5500 = vpack.c.b16 %v5480, %v5479
        %v5501 = vpack.c.b16 %v5482, %v5481
        %v5502 = vpack.c.b16 %v5484, %v5483
        %v5503 = vpack.c.b16 %v5486, %v5485
        %v5504 = vpack.c.b16 %v5488, %v5487
        %v5505 = vpack.c.b16 %v5490, %v5489
        %v5506 = vpack.c.b16 %v5492, %v5491
        %v5507 = vpack.c.b16 %v5494, %v5493
        %v5508 = vpack.c.b16 %v5496, %v5495
        %v5522 = vsel %vm1422, %v5384, 0
        %v5525 = vsel %vm1422, %v5385, 0
        %v5528 = vsel %vm1422, %v5386, 0
        %v5531 = vsel %vm1422, %v5387, 0
        %v5534 = vsel %vm1422, %v5388, 0
        %v5537 = vsel %vm1422, %v5389, 0
        %v5540 = vsel %vm1422, %v5390, 0
        %v5543 = vsel %vm1422, %v5391, 0
        %5545 = vmatprep.subr.bf16.mxu0 0
        %5546 = vmatpush1.bf16.msra.mxu0 %v5504
        %5547 = vmatprep.subr.bf16.mxu0 0
        %5548 = vmatpush1.bf16.msra.mxu0 %v5503
        %5549 = vmatprep.subr.bf16.mxu0 0
        %5550 = vmatpush1.bf16.msra.mxu0 %v5502
        %5551 = vmatprep.subr.bf16.mxu0 0
        %5552 = vmatpush1.bf16.msra.mxu0 %v5501
        %5553 = vmatprep.subr.bf16.mxu0 0
        %5554 = vmatpush1.bf16.msra.mxu0 %v5500
        %5555 = vmatprep.subr.bf16.mxu0 0
        %5556 = vmatpush1.bf16.msra.mxu0 %v5499
        %5557 = vmatprep.subr.bf16.mxu0 0
        %5558 = vmatpush1.bf16.msra.mxu0 %v5498
        %5559 = vmatprep.subr.bf16.mxu0 0
        %5560 = vmatpush1.bf16.msra.mxu0 %v5497
        %5561 = vmatprep.subr.bf16.mxu0 0
        %5562 = vmatpush2.bf16.msra.mxu0 0
        %5563 = vmatprep.subr.bf16.mxu0 0
        %5564 = vmatpush2.bf16.msra.mxu0 0
        %5565 = vmatprep.subr.bf16.mxu0 0
        %5566 = vmatpush2.bf16.msra.mxu0 0
        %5567 = vmatprep.subr.bf16.mxu0 0
        %5568 = vmatpush2.bf16.msra.mxu0 0
        %5569 = vmatprep.subr.bf16.mxu0 0
        %5570 = vmatpush2.bf16.msra.mxu0 %v5508
        %5571 = vmatprep.subr.bf16.mxu0 0
        %5572 = vmatpush2.bf16.msra.mxu0 %v5507
        %5573 = vmatprep.subr.bf16.mxu0 0
        %5574 = vmatpush2.bf16.msra.mxu0 %v5506
        %5575 = vmatprep.subr.bf16.mxu0 0
        %5576 = vmatpush2.bf16.msra.mxu0 %v5505
        %5577 = vmatprep.mubr.bf16.mxu0 %v5522
        %5578 = vmatmul.mubr.bf16.gmra.mxu0 %v5394
        %v5579 = vpop.f32.mrf.mxu0
        %v5580 = vadd.f32 0.0, %v5579
        %v5581 = vpop.f32.mrf.mxu0
        %v5582 = vpop.f32.mrf.mxu0
        %v5583 = vadd.f32 0.0, %v5582
        %v5584 = vpop.f32.mrf.mxu0
        %5585 = vmatprep.mubr.bf16.mxu0 %v5525
        %5586 = vmatmul.mubr.bf16.gmra.mxu0 %v5398
        %v5587 = vpop.f32.mrf.mxu0
        %v5588 = vadd.f32 0.0, %v5587
        %v5589 = vpop.f32.mrf.mxu0
        %v5590 = vpop.f32.mrf.mxu0
        %v5591 = vadd.f32 0.0, %v5590
        %v5592 = vpop.f32.mrf.mxu0
        %5593 = vmatprep.mubr.bf16.mxu0 %v5528
        %5594 = vmatmul.mubr.bf16.gmra.mxu0 %v5402
        %v5595 = vpop.f32.mrf.mxu0
        %v5596 = vadd.f32 0.0, %v5595
        %v5597 = vpop.f32.mrf.mxu0
        %v5598 = vpop.f32.mrf.mxu0
        %v5599 = vadd.f32 0.0, %v5598
        %v5600 = vpop.f32.mrf.mxu0
        %5601 = vmatprep.mubr.bf16.mxu0 %v5531
        %5602 = vmatmul.mubr.bf16.gmra.mxu0 %v5406
        %v5603 = vpop.f32.mrf.mxu0
        %v5604 = vadd.f32 0.0, %v5603
        %v5605 = vpop.f32.mrf.mxu0
        %v5606 = vpop.f32.mrf.mxu0
        %v5607 = vadd.f32 0.0, %v5606
        %v5608 = vpop.f32.mrf.mxu0
        %5609 = vmatprep.mubr.bf16.mxu0 %v5534
        %5610 = vmatmul.mubr.bf16.gmra.mxu0 %v5410
        %v5611 = vpop.f32.mrf.mxu0
        %v5612 = vadd.f32 0.0, %v5611
        %v5613 = vpop.f32.mrf.mxu0
        %v5614 = vpop.f32.mrf.mxu0
        %v5615 = vadd.f32 0.0, %v5614
        %v5616 = vpop.f32.mrf.mxu0
        %5617 = vmatprep.mubr.bf16.mxu0 %v5537
        %5618 = vmatmul.mubr.bf16.gmra.mxu0 %v5414
        %v5619 = vpop.f32.mrf.mxu0
        %v5620 = vadd.f32 0.0, %v5619
        %v5621 = vpop.f32.mrf.mxu0
        %v5622 = vpop.f32.mrf.mxu0
        %v5623 = vadd.f32 0.0, %v5622
        %v5624 = vpop.f32.mrf.mxu0
        %5625 = vmatprep.mubr.bf16.mxu0 %v5540
        %5626 = vmatmul.mubr.bf16.gmra.mxu0 %v5418
        %v5627 = vpop.f32.mrf.mxu0
        %v5628 = vadd.f32 0.0, %v5627
        %v5629 = vpop.f32.mrf.mxu0
        %v5630 = vpop.f32.mrf.mxu0
        %v5631 = vadd.f32 0.0, %v5630
        %v5632 = vpop.f32.mrf.mxu0
        %5633 = vmatprep.mubr.bf16.mxu0 %v5543
        %5634 = vmatmul.mubr.bf16.gmra.mxu0 %v5422
        %v5635 = vpop.f32.mrf.mxu0
        %v5636 = vadd.f32 0.0, %v5635
        %v5637 = vpop.f32.mrf.mxu0
        %v5638 = vpop.f32.mrf.mxu0
        %v5639 = vadd.f32 0.0, %v5638
        %v5640 = vpop.f32.mrf.mxu0
        %5641 = vdwg.mxu0
        %v5642 = vadd.f32 %v4945, %v5580
        %v5643 = vadd.f32 %v4948, %v5583
        %v5644 = vadd.f32 %v4953, %v5588
        %v5645 = vadd.f32 %v4956, %v5591
        %v5646 = vadd.f32 %v4961, %v5596
        %v5647 = vadd.f32 %v4964, %v5599
        %v5648 = vadd.f32 %v4969, %v5604
        %v5649 = vadd.f32 %v4972, %v5607
        %v5650 = vadd.f32 %v4977, %v5612
        %v5651 = vadd.f32 %v4980, %v5615
        %v5652 = vadd.f32 %v4985, %v5620
        %v5653 = vadd.f32 %v4988, %v5623
        %v5654 = vadd.f32 %v4993, %v5628
        %v5655 = vadd.f32 %v4996, %v5631
        %v5656 = vadd.f32 %v5001, %v5636
        %v5657 = vadd.f32 %v5004, %v5639
        %v5658 = vld [vmem:[%s4] sm:$0x1]
        %v5660 = vlaneseq
        %v5661 = vshrl.u32 %v5660, 7
        %v5662 = vsub.s32 0, %v5661
        %v5663 = vrot.slane %v5658, %v5662
        %v5665 = vadd.f32 %v5642, %v5663
        %v5666 = vadd.f32 %v5643, %v5663
        %v5667 = vadd.f32 %v5644, %v5663
        %v5668 = vadd.f32 %v5645, %v5663
        %v5669 = vadd.f32 %v5646, %v5663
        %v5670 = vadd.f32 %v5647, %v5663
        %v5671 = vadd.f32 %v5648, %v5663
        %v5672 = vadd.f32 %v5649, %v5663
        %v5673 = vadd.f32 %v5650, %v5663
        %v5674 = vadd.f32 %v5651, %v5663
        %v5675 = vadd.f32 %v5652, %v5663
        %v5676 = vadd.f32 %v5653, %v5663
        %v5677 = vadd.f32 %v5654, %v5663
        %v5678 = vadd.f32 %v5655, %v5663
        %v5679 = vadd.f32 %v5656, %v5663
        %v5680 = vadd.f32 %v5657, %v5663
        %s5681 = smul.u32 %s267, 16
        %s5682 = scalar_lea.vmem %s264, %s5681
        %v5683 = vld [vmem:[%s5682] sm:$0xff]
        %v5684 = vld [vmem:[%s5682 + $0x8] sm:$0xff]
        %v5685 = vld [vmem:[%s5682 + $0x10] sm:$0xff]
        %v5686 = vld [vmem:[%s5682 + $0x18] sm:$0xff]
        %v5687 = vld [vmem:[%s5682 + $0x20] sm:$0xff]
        %v5688 = vld [vmem:[%s5682 + $0x28] sm:$0xff]
        %v5689 = vld [vmem:[%s5682 + $0x30] sm:$0xff]
        %v5690 = vld [vmem:[%s5682 + $0x38] sm:$0xff]
        %v5691 = vld [vmem:[%s5682 + $0x40] sm:$0xff]
        %v5692 = vld [vmem:[%s5682 + $0x48] sm:$0xff]
        %v5693 = vld [vmem:[%s5682 + $0x50] sm:$0xff]
        %v5694 = vld [vmem:[%s5682 + $0x58] sm:$0xff]
        %v5695 = vld [vmem:[%s5682 + $0x60] sm:$0xff]
        %v5696 = vld [vmem:[%s5682 + $0x68] sm:$0xff]
        %v5697 = vld [vmem:[%s5682 + $0x70] sm:$0xff]
        %v5698 = vld [vmem:[%s5682 + $0x78] sm:$0xff]
        %v5699 = vadd.f32 %v5665, %v5683
        %v5700 = vadd.f32 %v5666, %v5684
        %v5701 = vadd.f32 %v5667, %v5685
        %v5702 = vadd.f32 %v5668, %v5686
        %v5703 = vadd.f32 %v5669, %v5687
        %v5704 = vadd.f32 %v5670, %v5688
        %v5705 = vadd.f32 %v5671, %v5689
        %v5706 = vadd.f32 %v5672, %v5690
        %v5707 = vadd.f32 %v5673, %v5691
        %v5708 = vadd.f32 %v5674, %v5692
        %v5709 = vadd.f32 %v5675, %v5693
        %v5710 = vadd.f32 %v5676, %v5694
        %v5711 = vadd.f32 %v5677, %v5695
        %v5712 = vadd.f32 %v5678, %v5696
        %v5713 = vadd.f32 %v5679, %v5697
        %v5714 = vadd.f32 %v5680, %v5698
        %5715 = vst.msk [vmem:[%s259] sm:$0xff] %vm1422, %v5699
        %5716 = vst.msk [vmem:[%s259 + $0x8] sm:$0xff] %vm1422, %v5700
        %5717 = vst.msk [vmem:[%s259 + $0x10] sm:$0xff] %vm1422, %v5701
        %5718 = vst.msk [vmem:[%s259 + $0x18] sm:$0xff] %vm1422, %v5702
        %5719 = vst.msk [vmem:[%s259 + $0x20] sm:$0xff] %vm1422, %v5703
        %5720 = vst.msk [vmem:[%s259 + $0x28] sm:$0xff] %vm1422, %v5704
        %5721 = vst.msk [vmem:[%s259 + $0x30] sm:$0xff] %vm1422, %v5705
        %5722 = vst.msk [vmem:[%s259 + $0x38] sm:$0xff] %vm1422, %v5706
        %5723 = vst.msk [vmem:[%s259 + $0x40] sm:$0xff] %vm1422, %v5707
        %5724 = vst.msk [vmem:[%s259 + $0x48] sm:$0xff] %vm1422, %v5708
        %5725 = vst.msk [vmem:[%s259 + $0x50] sm:$0xff] %vm1422, %v5709
        %5726 = vst.msk [vmem:[%s259 + $0x58] sm:$0xff] %vm1422, %v5710
        %5727 = vst.msk [vmem:[%s259 + $0x60] sm:$0xff] %vm1422, %v5711
        %5728 = vst.msk [vmem:[%s259 + $0x68] sm:$0xff] %vm1422, %v5712
        %5729 = vst.msk [vmem:[%s259 + $0x70] sm:$0xff] %vm1422, %v5713
        %5730 = vst.msk [vmem:[%s259 + $0x78] sm:$0xff] %vm1422, %v5714
        %s5731 = sand.u32 %s174, 1
        %s5732 = scalar_lea.sflag [#allocation6], %s5731
        %s5733 = sand.u32 %s174, 1
        %s5734 = smul.addr %s5733, 128
        %s5735 = scalar_lea.vmem [#allocation5], %s5734
        // Predicated region
        $region49: #{tpu_custom_call.1} parent=43 // pred_check
          %p5736 = pneg %p184
        $region50: #{tpu_custom_call.1} parent=43 // pred_check_branch
          %5738 = sbr.rel (%p5736) target = $region52
        $region51: #{tpu_custom_call.1} parent=43 // pred_region
          %s5739 = smul.u32 8, %s26
          %s5741 = ssub.s32 2048, 2048
          %5742 = vsyncadd %s5732, %s5741
          %s5743 = smul.addr %s5739, 2
          %s5744 = smul.addr %s25, 32
          %s5745 = sadd.s32 %s5743, %s5744
          %s5746 = smul.addr %s5745, 128
          %s5747 = scalar_lea.hbm %s6, %s5746
          %s5748 = sshll.u32 %s5735, 4
          %s5749 = int_to_ptr.vmem [resolvable:$true] %s5748
          %5754 = dma.vmem_to_hbm [thread:$0]  %s5749, 2048, %s5747, %s5732, 128, 128, 8
        $region52: #{tpu_custom_call.1} parent=43 // pred_fallthru
          _
      $region44: #{tpu_custom_call.1} parent=5 // pred_fallthru
        _
      %p5755 = scmp.le.s32.totalorder 2, %s16
      // Predicated region
      $region53: #{tpu_custom_call.1} parent=5 // pred_check
        %p5756 = pneg %p5755
      $region54: #{tpu_custom_call.1} parent=5 // pred_check_branch
        %5758 = sbr.rel (%p5756) target = $region56
      $region55: #{tpu_custom_call.1} parent=5 // pred_region
        %s5759 = ssub.s32 %s16, 2
        // Predicated region
        $region57: #{tpu_custom_call.1} parent=55 // pred_check
          %p5760 = pneg %p190
        $region58: #{tpu_custom_call.1} parent=55 // pred_check_branch
          %5762 = sbr.rel (%p5760) target = $region60
        $region59: #{tpu_custom_call.1} parent=55 // pred_region
          %s5763 = sand.u32 %s175, 1
          %s5764 = scalar_lea.sflag [#allocation6], %s5763
          %s5765 = sand.u32 %s175, 1
          %s5766 = smul.addr %s5765, 128
          %s5767 = scalar_lea.vmem [#allocation5], %s5766
          %5768 = dma.done %s5764, 2048
        $region60: #{tpu_custom_call.1} parent=55 // pred_fallthru
          _
      $region56: #{tpu_custom_call.1} parent=5 // pred_fallthru
        _
    $region6: #{tpu_custom_call.1} parent=1 // loop_footer
      %s20 = sadd.s32 1, %s16
    $region7: #{tpu_custom_call.1} parent=1 // loop_footer_branch
      %15 = sbr.rel target = $region3
    $region8: #{tpu_custom_call.1} parent=1 // loop_exit
      _
    %5769 = vsyncpa [#allocation6], 1
    %s5770 = scalar_lea.sflag [#allocation6], 1
    %5771 = vsyncpa %s5770, 1

</llo_original>
